<compile_context>
chip_gen: v6e
topology: v6e:2x2x1
jax: 0.10.0
libtpu: 0.0.40
codegen_flags: <defaults>
</compile_context>

<pallas_src>
import jax
import jax.numpy as jnp
import numpy as np
from jax.experimental import pallas as pl
from jax.experimental.pallas import tpu as pltpu


# ----------------------------------------------------------------------------
# small helpers
# ----------------------------------------------------------------------------
def _round_up(x, m):
    return ((x + m - 1) // m) * m


def _pick_group(batch, max_g=32):
    """Images per grid step: prefer multiples of 8, keep >= 2 grid steps."""
    cands = [g for g in range(1, min(batch, max_g) + 1)
             if batch % g == 0 and batch // g >= 2]
    if not cands:
        cands = [g for g in range(1, min(batch, max_g) + 1) if batch % g == 0]
    mult8 = [g for g in cands if g % 8 == 0]
    return max(mult8) if mult8 else max(cands)


# ----------------------------------------------------------------------------
# Pallas kernels
# ----------------------------------------------------------------------------
def _make_stage1_kernel(G, H, rpad):
    """Fused conv1 (one K=5*W matmul) + bias + ReLU + 2x2 max-pool + re-layout."""
    hout = H // 2

    def kernel(lhs_ref, kw_ref, b_ref, o_ref):
        # lhs_ref: (1, H*G, 5*W) bf16  rows ordered (conv-row, image-in-group)
        # kw_ref : (5*W, 2*half)  bf16  band weights, even widths then odd widths
        # b_ref  : (1, 2*half)    f32
        # o_ref  : (1, (hout+2*rpad)*G, half) bf16  next stage's padded input
        half = kw_ref.shape[1] // 2
        lhs = lhs_ref[0]                                            # (H*G, 5W)
        acc = jnp.dot(lhs, kw_ref[...], preferred_element_type=jnp.float32)
        act = jnp.maximum(acc + b_ref[...], 0.0)
        # 2-wide column pool: even widths live in [:half], odd in [half:].
        cm = jnp.maximum(act[:, :half], act[:, half:])              # (H*G, half)
        zeros = jnp.zeros((rpad * G, half), o_ref.dtype)
        if rpad:
            o_ref[0, : rpad * G, :] = zeros
            o_ref[0, (rpad + hout) * G:, :] = zeros
        # 2-high row pool: max of two contiguous G-row slabs per output row.
        for i in range(hout):
            pr = jnp.maximum(cm[(2 * i) * G:(2 * i + 1) * G],
                             cm[(2 * i + 1) * G:(2 * i + 2) * G])
            o_ref[0, (rpad + i) * G:(rpad + i + 1) * G, :] = pr.astype(o_ref.dtype)

    return kernel


def _make_stage2_kernel(G, Hp, KH):
    """Fused conv2 + bias + ReLU + 2x2 max-pool + Linear (logits) epilogue."""
    h2 = Hp - (KH - 1)          # conv output rows (14)
    hout = h2 // 2              # pooled rows (7)

    def kernel(x_ref, kw_ref, b_ref, wl_ref, bl_ref, o_ref):
        # x_ref : (1, Hp*G, cin)     bf16   stage-1 output (row-padded, zero pad lanes)
        # kw_ref: (KH*cin, 2*half)   bf16   band weights (even widths | odd widths)
        # b_ref : (1, 2*half)        f32
        # wl_ref: (hout*half, NPAD)  bf16   fused Linear weight (CHW order folded in)
        # bl_ref: (1, NPAD)          f32
        # o_ref : (1, G, NPAD)       f32    logits (padded to 128 lanes)
        n = kw_ref.shape[1]
        half = n // 2
        cin = x_ref.shape[2]
        xb = x_ref[0]                                               # (Hp*G, cin)
        acc = jnp.zeros((h2 * G, n), jnp.float32)
        for k in range(KH):     # 5 full-depth (K=cin) MXU matmuls on resident slabs
            acc = acc + jnp.dot(xb[k * G:(k + h2) * G, :],
                                kw_ref[k * cin:(k + 1) * cin, :],
                                preferred_element_type=jnp.float32)
        act = jnp.maximum(acc + b_ref[...], 0.0)
        cm = jnp.maximum(act[:, :half], act[:, half:])              # (h2*G, half)
        logits = jnp.zeros((G, o_ref.shape[2]), jnp.float32)
        for i in range(hout):   # row pool + fused Linear accumulation
            pr = jnp.maximum(cm[(2 * i) * G:(2 * i + 1) * G],
                             cm[(2 * i + 1) * G:(2 * i + 2) * G])
            logits = logits + jnp.dot(pr.astype(jnp.bfloat16),
                                      wl_ref[i * half:(i + 1) * half, :],
                                      preferred_element_type=jnp.float32)
        o_ref[0, :, :] = logits + bl_ref[...]

    return kernel


# ----------------------------------------------------------------------------
# Traceable constant preparation (all tiny, jit-friendly)
# ----------------------------------------------------------------------------
def _make_band_weight(w, W, in_stride, half, dtype=jnp.bfloat16):
    """w: (Cout, Cin, 5, 5) torch layout -> (5*in_stride, 2*half) band matrix.

    B[ki*in_stride + wi*Cin + ci, p*half + j*Cout + co] = w[co, ci, ki, kj]
    with output width wout = 2j + p and kj = wi - wout + PAD (valid taps only);
    out-of-range width taps are zero (== zero conv padding).  Even output
    widths occupy the first half of lanes, odd widths the second half.
    """
    Cout, Cin, KH, KW = w.shape
    PAD = KW // 2
    assert W % 2 == 0 and in_stride >= W * Cin and half >= (W // 2) * Cout
    T = np.zeros((KW, W, W), np.float32)
    for kj in range(KW):
        for wout in range(W):
            wi = wout + kj - PAD
            if 0 <= wi < W:
                T[kj, wi, wout] = 1.0
    band = jnp.einsum("jvw,cikj->kviwc", jnp.asarray(T), w)      # (KH,W,Cin,W,Cout)
    band = band.reshape(KH, W * Cin, W, Cout)
    band = jnp.pad(band, ((0, 0), (0, in_stride - W * Cin), (0, 0), (0, 0)))
    band = band.reshape(KH * in_stride, W, Cout)
    pad_n = half - (W // 2) * Cout
    even = jnp.pad(band[:, 0::2, :].reshape(KH * in_stride, (W // 2) * Cout),
                   ((0, 0), (0, pad_n)))
    odd = jnp.pad(band[:, 1::2, :].reshape(KH * in_stride, (W // 2) * Cout),
                  ((0, 0), (0, pad_n)))
    return jnp.concatenate([even, odd], axis=-1).astype(dtype)


def _make_bias_row(b, W, half):
    """Bias tiled over the (even|odd)-width lane layout; pad lanes stay zero."""
    Cout = b.shape[0]
    v = jnp.tile(b, W // 2)
    v = jnp.pad(v, (0, half - (W // 2) * Cout))
    return jnp.concatenate([v, v])[None, :].astype(jnp.float32)


def _make_linear_weight(wo, C, Hh, Ww, half, n_pad, dtype=jnp.bfloat16):
    """wo: (10, C*Hh*Ww) torch (C,H,W) flatten -> (Hh*half, n_pad) for our layout."""
    O = wo.shape[0]
    w4 = wo.reshape(O, C, Hh, Ww).transpose(2, 3, 1, 0)          # (Hh, Ww, C, O)
    w4 = w4.reshape(Hh, Ww * C, O)
    w4 = jnp.pad(w4, ((0, 0), (0, half - Ww * C), (0, 0)))
    w2 = w4.reshape(Hh * half, O)
    return jnp.pad(w2, ((0, 0), (0, n_pad - O))).astype(dtype)


# ----------------------------------------------------------------------------
# Full forward pass
# ----------------------------------------------------------------------------
def cnn_forward(x_nchw, params):
    B, Cin, H, W = x_nchw.shape                  # (B, 1, 28, 28)
    assert Cin == 1
    C1 = params["w1"].shape[0]                   # 16
    C2 = params["w2"].shape[0]                   # 32
    KH = params["w1"].shape[2]                   # 5
    RPAD = KH // 2                               # 2
    H2, W2 = H // 2, W // 2                      # 14, 14
    H3, W3 = H2 // 2, W2 // 2                    # 7, 7
    L1 = _round_up(W2 * C1, 128)                 # 256: stage-1 pooled lane width
    L2 = _round_up(W3 * C2, 128)                 # 256: stage-2 pooled lane width
    NPAD = 128                                   # padded logits width
    NOUT = params["wo"].shape[0]                 # 10

    G = _pick_group(B)                           # images per grid step
    nb = B // G
    Hp2 = H2 + 2 * RPAD                          # 18 padded rows into stage 2

    # ---- stage-1 LHS: row-pad, 5-tap im2row along lanes, group image-minor ---
    x2 = x_nchw.reshape(B, H, W)
    xp = jnp.pad(x2, ((0, 0), (RPAD, RPAD), (0, 0)))
    lhs = jnp.concatenate([xp[:, k:k + H, :] for k in range(KH)], axis=-1)
    lhs = lhs.reshape(nb, G, H, KH * W).transpose(0, 2, 1, 3)
    lhs = lhs.reshape(nb, H * G, KH * W).astype(jnp.bfloat16)      # (nb, 28G, 140)

    # ---- derived weights / biases (tiny, traceable) ---------------------------
    kw1 = _make_band_weight(params["w1"], W, W * Cin, L1)          # (140, 512)
    b1r = _make_bias_row(params["b1"], W, L1)                      # (1, 512)
    kw2 = _make_band_weight(params["w2"], W2, L1, L2)              # (1280, 512)
    b2r = _make_bias_row(params["b2"], W2, L2)                     # (1, 512)
    wl = _make_linear_weight(params["wo"], C2, H3, W3, L2, NPAD)   # (1792, 128)
    bl = jnp.pad(params["bo"], (0, NPAD - NOUT)).astype(jnp.float32)[None, :]

    # ---- stage 1: conv1 + ReLU + pool, emits stage-2's padded bf16 input ------
    y1 = pl.pallas_call(
        _make_stage1_kernel(G, H, RPAD),
        out_shape=jax.ShapeDtypeStruct((nb, Hp2 * G, L1), jnp.bfloat16),
        grid_spec=pltpu.PrefetchScalarGridSpec(
            num_scalar_prefetch=0,
            grid=(nb,),
            in_specs=[
                pl.BlockSpec((1, H * G, KH * W), lambda b: (b, 0, 0)),
                pl.BlockSpec(kw1.shape, lambda b: (0, 0)),
                pl.BlockSpec(b1r.shape, lambda b: (0, 0)),
            ],
            out_specs=pl.BlockSpec((1, Hp2 * G, L1), lambda b: (b, 0, 0)),
        ),
        compiler_params=pltpu.CompilerParams(
            dimension_semantics=("parallel",)),
    )(lhs, kw1, b1r)

    # ---- stage 2: conv2 + ReLU + pool + fused Linear ---------------------------
    logits = pl.pallas_call(
        _make_stage2_kernel(G, Hp2, KH),
        out_shape=jax.ShapeDtypeStruct((nb, G, NPAD), jnp.float32),
        grid_spec=pltpu.PrefetchScalarGridSpec(
            num_scalar_prefetch=0,
            grid=(nb,),
            in_specs=[
                pl.BlockSpec((1, Hp2 * G, L1), lambda b: (b, 0, 0)),
                pl.BlockSpec(kw2.shape, lambda b: (0, 0)),
                pl.BlockSpec(b2r.shape, lambda b: (0, 0)),
                pl.BlockSpec(wl.shape, lambda b: (0, 0)),
                pl.BlockSpec(bl.shape, lambda b: (0, 0)),
            ],
            out_specs=pl.BlockSpec((1, G, NPAD), lambda b: (b, 0, 0)),
        ),
        compiler_params=pltpu.CompilerParams(
            dimension_semantics=("parallel",)),
    )(y1, kw2, b2r, wl, bl)

    return logits.reshape(B, NPAD)[:, :NOUT]


# ----------------------------------------------------------------------------
# Pure-JAX reference (mirrors the PyTorch module exactly, NCHW semantics)
# ----------------------------------------------------------------------------
def ref_forward(x_nchw, params):
    hp = jax.lax.Precision.HIGHEST

    def conv(x, w, b):
        y = jax.lax.conv_general_dilated(
            x, w, window_strides=(1, 1), padding=((2, 2), (2, 2)),
            dimension_numbers=("NCHW", "OIHW", "NCHW"), precision=hp)
        return jnp.maximum(y + b[None, :, None, None], 0.0)

    def pool(x):
        B, C, H, W = x.shape
        return x.reshape(B, C, H // 2, 2, W // 2, 2).max(axis=(3, 5))

    x = pool(conv(x_nchw, params["w1"], params["b1"]))
    x = pool(conv(x, params["w2"], params["b2"]))
    x = x.reshape(x.shape[0], -1)
    return jnp.dot(x, params["wo"].T, precision=hp) + params["bo"]


def init_params(key):
    """Deterministic init mimicking PyTorch defaults (uniform(+-1/sqrt(fan_in)))."""
    ks = jax.random.split(key, 6)

    def u(k, shape, fan_in):
        bound = 1.0 / np.sqrt(fan_in)
        return jax.random.uniform(k, shape, jnp.float32, -bound, bound)

    return {
        "w1": u(ks[0], (16, 1, 5, 5), 1 * 25),
        "b1": u(ks[1], (16,), 1 * 25),
        "w2": u(ks[2], (32, 16, 5, 5), 16 * 25),
        "b2": u(ks[3], (32,), 16 * 25),
        "wo": u(ks[4], (10, 32 * 7 * 7), 32 * 7 * 7),
        "bo": u(ks[5], (10,), 32 * 7 * 7),
    }


if __name__ == "__main__":
    key = jax.random.PRNGKey(0)
    k_x, k_p = jax.random.split(key)
    # 28x28 spatial is implied by the Linear(32*7*7, 10) layer (two 2x pools).
    x = jax.random.normal(k_x, (2, 1, 28, 28), jnp.float32)
    params = init_params(k_p)

    out = jax.block_until_ready(jax.jit(cnn_forward)(x, params))
    assert out.shape == (2, 10), out.shape

    ref = jax.block_until_ready(ref_forward(x, params))
    # bf16 MXU inputs with f32 accumulation vs f32/HIGHEST reference.
    np.testing.assert_allclose(np.asarray(out), np.asarray(ref),
                               rtol=2e-2, atol=2e-2)
    print("KERNEL_OK")
</pallas_src>

<mosaic_0001>
module attributes {stable_mosaic.version = 11 : i64} {
  func.func @kernel(%arg0: i32, %arg1: memref<1x28x140xbf16, #tpu.memory_space<vmem>>, %arg2: memref<140x512xbf16, #tpu.memory_space<vmem>>, %arg3: memref<1x512xf32, #tpu.memory_space<vmem>>, %arg4: memref<1x18x256xbf16, #tpu.memory_space<vmem>>) attributes {dimension_semantics = [#tpu.dimension_semantics<parallel>], iteration_bounds = array<i64: 2>, scalar_prefetch = 0 : i64, scratch_operands = 0 : i64, tpu.core_type = #tpu.core_type<tc>, window_params = [{transform_indices = @transform_0, window_bounds = array<i64: 1, 28, 140>}, {pipeline_mode = #tpu.pipeline_mode<synchronous>, transform_indices = @transform_1, window_bounds = array<i64: 140, 512>}, {pipeline_mode = #tpu.pipeline_mode<synchronous>, transform_indices = @transform_2, window_bounds = array<i64: 1, 512>}, {transform_indices = @transform_3, window_bounds = array<i64: 1, 18, 256>}]} {
    %c0 = arith.constant 0 : index
    %c0_0 = arith.constant 0 : index
    %c0_1 = arith.constant 0 : index
    %0 = vector.load %arg1[%c0, %c0_0, %c0_1] : memref<1x28x140xbf16, #tpu.memory_space<vmem>>, vector<1x28x140xbf16>
    %1 = vector.shape_cast %0 : vector<1x28x140xbf16> to vector<28x140xbf16>
    %c0_2 = arith.constant 0 : index
    %c0_3 = arith.constant 0 : index
    %2 = vector.load %arg2[%c0_2, %c0_3] : memref<140x512xbf16, #tpu.memory_space<vmem>>, vector<140x512xbf16>
    %cst = arith.constant dense<0.000000e+00> : vector<28x512xf32>
    %3 = tpu.matmul %1, %2, %cst {dimension_numbers = #tpu.dot_dimension_numbers<[1], [0], [0], [1], [0, 0, 1, 1], [], []>} : vector<28x140xbf16>, vector<140x512xbf16>, vector<28x512xf32> -> vector<28x512xf32>
    %c0_4 = arith.constant 0 : index
    %c0_5 = arith.constant 0 : index
    %4 = vector.load %arg3[%c0_4, %c0_5] : memref<1x512xf32, #tpu.memory_space<vmem>>, vector<1x512xf32>
    %5 = vector.broadcast %4 : vector<1x512xf32> to vector<28x512xf32>
    %6 = arith.addf %3, %5 : vector<28x512xf32>
    %cst_6 = arith.constant 0.000000e+00 : f32
    %7 = vector.broadcast %cst_6 : f32 to vector<28x512xf32>
    %8 = arith.maximumf %6, %7 : vector<28x512xf32>
    %9 = vector.extract_strided_slice %8 {offsets = [0, 0], sizes = [28, 256], strides = [1, 1]} : vector<28x512xf32> to vector<28x256xf32>
    %10 = vector.extract_strided_slice %8 {offsets = [0, 256], sizes = [28, 256], strides = [1, 1]} : vector<28x512xf32> to vector<28x256xf32>
    %11 = arith.maximumf %9, %10 : vector<28x256xf32>
    %cst_7 = arith.constant 0.000000e+00 : bf16
    %12 = vector.broadcast %cst_7 : bf16 to vector<2x256xbf16>
    %c0_8 = arith.constant 0 : index
    %c0_9 = arith.constant 0 : index
    %c0_10 = arith.constant 0 : index
    %13 = vector.load %arg4[%c0_8, %c0_9, %c0_10] : memref<1x18x256xbf16, #tpu.memory_space<vmem>>, vector<1x2x256xbf16>
    %14 = vector.shape_cast %13 : vector<1x2x256xbf16> to vector<2x256xbf16>
    %15 = vector.shape_cast %12 : vector<2x256xbf16> to vector<1x2x256xbf16>
    tpu.vector_store %arg4[%c0_8, %c0_9, %c0_10], %15 {strides = array<i32>} : memref<1x18x256xbf16, #tpu.memory_space<vmem>>, vector<1x2x256xbf16>,
    %c0_11 = arith.constant 0 : index
    %c16 = arith.constant 16 : index
    %c0_12 = arith.constant 0 : index
    %16 = vector.load %arg4[%c0_11, %c16, %c0_12] : memref<1x18x256xbf16, #tpu.memory_space<vmem>>, vector<1x2x256xbf16>
    %17 = vector.shape_cast %16 : vector<1x2x256xbf16> to vector<2x256xbf16>
    %18 = vector.shape_cast %12 : vector<2x256xbf16> to vector<1x2x256xbf16>
    tpu.vector_store %arg4[%c0_11, %c16, %c0_12], %18 {strides = array<i32>} : memref<1x18x256xbf16, #tpu.memory_space<vmem>>, vector<1x2x256xbf16>,
    %19 = vector.extract_strided_slice %11 {offsets = [0, 0], sizes = [1, 256], strides = [1, 1]} : vector<28x256xf32> to vector<1x256xf32>
    %20 = vector.extract_strided_slice %11 {offsets = [1, 0], sizes = [1, 256], strides = [1, 1]} : vector<28x256xf32> to vector<1x256xf32>
    %21 = arith.maximumf %19, %20 : vector<1x256xf32>
    %22 = arith.truncf %21 : vector<1x256xf32> to vector<1x256xbf16>
    %c0_13 = arith.constant 0 : index
    %c2 = arith.constant 2 : index
    %c0_14 = arith.constant 0 : index
    %23 = vector.load %arg4[%c0_13, %c2, %c0_14] : memref<1x18x256xbf16, #tpu.memory_space<vmem>>, vector<1x1x256xbf16>
    %24 = vector.shape_cast %23 : vector<1x1x256xbf16> to vector<1x256xbf16>
    %25 = vector.shape_cast %22 : vector<1x256xbf16> to vector<1x1x256xbf16>
    tpu.vector_store %arg4[%c0_13, %c2, %c0_14], %25 {strides = array<i32>} : memref<1x18x256xbf16, #tpu.memory_space<vmem>>, vector<1x1x256xbf16>,
    %26 = vector.extract_strided_slice %11 {offsets = [2, 0], sizes = [1, 256], strides = [1, 1]} : vector<28x256xf32> to vector<1x256xf32>
    %27 = vector.extract_strided_slice %11 {offsets = [3, 0], sizes = [1, 256], strides = [1, 1]} : vector<28x256xf32> to vector<1x256xf32>
    %28 = arith.maximumf %26, %27 : vector<1x256xf32>
    %29 = arith.truncf %28 : vector<1x256xf32> to vector<1x256xbf16>
    %c0_15 = arith.constant 0 : index
    %c3 = arith.constant 3 : index
    %c0_16 = arith.constant 0 : index
    %30 = vector.load %arg4[%c0_15, %c3, %c0_16] : memref<1x18x256xbf16, #tpu.memory_space<vmem>>, vector<1x1x256xbf16>
    %31 = vector.shape_cast %30 : vector<1x1x256xbf16> to vector<1x256xbf16>
    %32 = vector.shape_cast %29 : vector<1x256xbf16> to vector<1x1x256xbf16>
    tpu.vector_store %arg4[%c0_15, %c3, %c0_16], %32 {strides = array<i32>} : memref<1x18x256xbf16, #tpu.memory_space<vmem>>, vector<1x1x256xbf16>,
    %33 = vector.extract_strided_slice %11 {offsets = [4, 0], sizes = [1, 256], strides = [1, 1]} : vector<28x256xf32> to vector<1x256xf32>
    %34 = vector.extract_strided_slice %11 {offsets = [5, 0], sizes = [1, 256], strides = [1, 1]} : vector<28x256xf32> to vector<1x256xf32>
    %35 = arith.maximumf %33, %34 : vector<1x256xf32>
    %36 = arith.truncf %35 : vector<1x256xf32> to vector<1x256xbf16>
    %c0_17 = arith.constant 0 : index
    %c4 = arith.constant 4 : index
    %c0_18 = arith.constant 0 : index
    %37 = vector.load %arg4[%c0_17, %c4, %c0_18] : memref<1x18x256xbf16, #tpu.memory_space<vmem>>, vector<1x1x256xbf16>
    %38 = vector.shape_cast %37 : vector<1x1x256xbf16> to vector<1x256xbf16>
    %39 = vector.shape_cast %36 : vector<1x256xbf16> to vector<1x1x256xbf16>
    tpu.vector_store %arg4[%c0_17, %c4, %c0_18], %39 {strides = array<i32>} : memref<1x18x256xbf16, #tpu.memory_space<vmem>>, vector<1x1x256xbf16>,
    %40 = vector.extract_strided_slice %11 {offsets = [6, 0], sizes = [1, 256], strides = [1, 1]} : vector<28x256xf32> to vector<1x256xf32>
    %41 = vector.extract_strided_slice %11 {offsets = [7, 0], sizes = [1, 256], strides = [1, 1]} : vector<28x256xf32> to vector<1x256xf32>
    %42 = arith.maximumf %40, %41 : vector<1x256xf32>
    %43 = arith.truncf %42 : vector<1x256xf32> to vector<1x256xbf16>
    %c0_19 = arith.constant 0 : index
    %c5 = arith.constant 5 : index
    %c0_20 = arith.constant 0 : index
    %44 = vector.load %arg4[%c0_19, %c5, %c0_20] : memref<1x18x256xbf16, #tpu.memory_space<vmem>>, vector<1x1x256xbf16>
    %45 = vector.shape_cast %44 : vector<1x1x256xbf16> to vector<1x256xbf16>
    %46 = vector.shape_cast %43 : vector<1x256xbf16> to vector<1x1x256xbf16>
    tpu.vector_store %arg4[%c0_19, %c5, %c0_20], %46 {strides = array<i32>} : memref<1x18x256xbf16, #tpu.memory_space<vmem>>, vector<1x1x256xbf16>,
    %47 = vector.extract_strided_slice %11 {offsets = [8, 0], sizes = [1, 256], strides = [1, 1]} : vector<28x256xf32> to vector<1x256xf32>
    %48 = vector.extract_strided_slice %11 {offsets = [9, 0], sizes = [1, 256], strides = [1, 1]} : vector<28x256xf32> to vector<1x256xf32>
    %49 = arith.maximumf %47, %48 : vector<1x256xf32>
    %50 = arith.truncf %49 : vector<1x256xf32> to vector<1x256xbf16>
    %c0_21 = arith.constant 0 : index
    %c6 = arith.constant 6 : index
    %c0_22 = arith.constant 0 : index
    %51 = vector.load %arg4[%c0_21, %c6, %c0_22] : memref<1x18x256xbf16, #tpu.memory_space<vmem>>, vector<1x1x256xbf16>
    %52 = vector.shape_cast %51 : vector<1x1x256xbf16> to vector<1x256xbf16>
    %53 = vector.shape_cast %50 : vector<1x256xbf16> to vector<1x1x256xbf16>
    tpu.vector_store %arg4[%c0_21, %c6, %c0_22], %53 {strides = array<i32>} : memref<1x18x256xbf16, #tpu.memory_space<vmem>>, vector<1x1x256xbf16>,
    %54 = vector.extract_strided_slice %11 {offsets = [10, 0], sizes = [1, 256], strides = [1, 1]} : vector<28x256xf32> to vector<1x256xf32>
    %55 = vector.extract_strided_slice %11 {offsets = [11, 0], sizes = [1, 256], strides = [1, 1]} : vector<28x256xf32> to vector<1x256xf32>
    %56 = arith.maximumf %54, %55 : vector<1x256xf32>
    %57 = arith.truncf %56 : vector<1x256xf32> to vector<1x256xbf16>
    %c0_23 = arith.constant 0 : index
    %c7 = arith.constant 7 : index
    %c0_24 = arith.constant 0 : index
    %58 = vector.load %arg4[%c0_23, %c7, %c0_24] : memref<1x18x256xbf16, #tpu.memory_space<vmem>>, vector<1x1x256xbf16>
    %59 = vector.shape_cast %58 : vector<1x1x256xbf16> to vector<1x256xbf16>
    %60 = vector.shape_cast %57 : vector<1x256xbf16> to vector<1x1x256xbf16>
    tpu.vector_store %arg4[%c0_23, %c7, %c0_24], %60 {strides = array<i32>} : memref<1x18x256xbf16, #tpu.memory_space<vmem>>, vector<1x1x256xbf16>,
    %61 = vector.extract_strided_slice %11 {offsets = [12, 0], sizes = [1, 256], strides = [1, 1]} : vector<28x256xf32> to vector<1x256xf32>
    %62 = vector.extract_strided_slice %11 {offsets = [13, 0], sizes = [1, 256], strides = [1, 1]} : vector<28x256xf32> to vector<1x256xf32>
    %63 = arith.maximumf %61, %62 : vector<1x256xf32>
    %64 = arith.truncf %63 : vector<1x256xf32> to vector<1x256xbf16>
    %c0_25 = arith.constant 0 : index
    %c8 = arith.constant 8 : index
    %c0_26 = arith.constant 0 : index
    %65 = vector.load %arg4[%c0_25, %c8, %c0_26] : memref<1x18x256xbf16, #tpu.memory_space<vmem>>, vector<1x1x256xbf16>
    %66 = vector.shape_cast %65 : vector<1x1x256xbf16> to vector<1x256xbf16>
    %67 = vector.shape_cast %64 : vector<1x256xbf16> to vector<1x1x256xbf16>
    tpu.vector_store %arg4[%c0_25, %c8, %c0_26], %67 {strides = array<i32>} : memref<1x18x256xbf16, #tpu.memory_space<vmem>>, vector<1x1x256xbf16>,
    %68 = vector.extract_strided_slice %11 {offsets = [14, 0], sizes = [1, 256], strides = [1, 1]} : vector<28x256xf32> to vector<1x256xf32>
    %69 = vector.extract_strided_slice %11 {offsets = [15, 0], sizes = [1, 256], strides = [1, 1]} : vector<28x256xf32> to vector<1x256xf32>
    %70 = arith.maximumf %68, %69 : vector<1x256xf32>
    %71 = arith.truncf %70 : vector<1x256xf32> to vector<1x256xbf16>
    %c0_27 = arith.constant 0 : index
    %c9 = arith.constant 9 : index
    %c0_28 = arith.constant 0 : index
    %72 = vector.load %arg4[%c0_27, %c9, %c0_28] : memref<1x18x256xbf16, #tpu.memory_space<vmem>>, vector<1x1x256xbf16>
    %73 = vector.shape_cast %72 : vector<1x1x256xbf16> to vector<1x256xbf16>
    %74 = vector.shape_cast %71 : vector<1x256xbf16> to vector<1x1x256xbf16>
    tpu.vector_store %arg4[%c0_27, %c9, %c0_28], %74 {strides = array<i32>} : memref<1x18x256xbf16, #tpu.memory_space<vmem>>, vector<1x1x256xbf16>,
    %75 = vector.extract_strided_slice %11 {offsets = [16, 0], sizes = [1, 256], strides = [1, 1]} : vector<28x256xf32> to vector<1x256xf32>
    %76 = vector.extract_strided_slice %11 {offsets = [17, 0], sizes = [1, 256], strides = [1, 1]} : vector<28x256xf32> to vector<1x256xf32>
    %77 = arith.maximumf %75, %76 : vector<1x256xf32>
    %78 = arith.truncf %77 : vector<1x256xf32> to vector<1x256xbf16>
    %c0_29 = arith.constant 0 : index
    %c10 = arith.constant 10 : index
    %c0_30 = arith.constant 0 : index
    %79 = vector.load %arg4[%c0_29, %c10, %c0_30] : memref<1x18x256xbf16, #tpu.memory_space<vmem>>, vector<1x1x256xbf16>
    %80 = vector.shape_cast %79 : vector<1x1x256xbf16> to vector<1x256xbf16>
    %81 = vector.shape_cast %78 : vector<1x256xbf16> to vector<1x1x256xbf16>
    tpu.vector_store %arg4[%c0_29, %c10, %c0_30], %81 {strides = array<i32>} : memref<1x18x256xbf16, #tpu.memory_space<vmem>>, vector<1x1x256xbf16>,
    %82 = vector.extract_strided_slice %11 {offsets = [18, 0], sizes = [1, 256], strides = [1, 1]} : vector<28x256xf32> to vector<1x256xf32>
    %83 = vector.extract_strided_slice %11 {offsets = [19, 0], sizes = [1, 256], strides = [1, 1]} : vector<28x256xf32> to vector<1x256xf32>
    %84 = arith.maximumf %82, %83 : vector<1x256xf32>
    %85 = arith.truncf %84 : vector<1x256xf32> to vector<1x256xbf16>
    %c0_31 = arith.constant 0 : index
    %c11 = arith.constant 11 : index
    %c0_32 = arith.constant 0 : index
    %86 = vector.load %arg4[%c0_31, %c11, %c0_32] : memref<1x18x256xbf16, #tpu.memory_space<vmem>>, vector<1x1x256xbf16>
    %87 = vector.shape_cast %86 : vector<1x1x256xbf16> to vector<1x256xbf16>
    %88 = vector.shape_cast %85 : vector<1x256xbf16> to vector<1x1x256xbf16>
    tpu.vector_store %arg4[%c0_31, %c11, %c0_32], %88 {strides = array<i32>} : memref<1x18x256xbf16, #tpu.memory_space<vmem>>, vector<1x1x256xbf16>,
    %89 = vector.extract_strided_slice %11 {offsets = [20, 0], sizes = [1, 256], strides = [1, 1]} : vector<28x256xf32> to vector<1x256xf32>
    %90 = vector.extract_strided_slice %11 {offsets = [21, 0], sizes = [1, 256], strides = [1, 1]} : vector<28x256xf32> to vector<1x256xf32>
    %91 = arith.maximumf %89, %90 : vector<1x256xf32>
    %92 = arith.truncf %91 : vector<1x256xf32> to vector<1x256xbf16>
    %c0_33 = arith.constant 0 : index
    %c12 = arith.constant 12 : index
    %c0_34 = arith.constant 0 : index
    %93 = vector.load %arg4[%c0_33, %c12, %c0_34] : memref<1x18x256xbf16, #tpu.memory_space<vmem>>, vector<1x1x256xbf16>
    %94 = vector.shape_cast %93 : vector<1x1x256xbf16> to vector<1x256xbf16>
    %95 = vector.shape_cast %92 : vector<1x256xbf16> to vector<1x1x256xbf16>
    tpu.vector_store %arg4[%c0_33, %c12, %c0_34], %95 {strides = array<i32>} : memref<1x18x256xbf16, #tpu.memory_space<vmem>>, vector<1x1x256xbf16>,
    %96 = vector.extract_strided_slice %11 {offsets = [22, 0], sizes = [1, 256], strides = [1, 1]} : vector<28x256xf32> to vector<1x256xf32>
    %97 = vector.extract_strided_slice %11 {offsets = [23, 0], sizes = [1, 256], strides = [1, 1]} : vector<28x256xf32> to vector<1x256xf32>
    %98 = arith.maximumf %96, %97 : vector<1x256xf32>
    %99 = arith.truncf %98 : vector<1x256xf32> to vector<1x256xbf16>
    %c0_35 = arith.constant 0 : index
    %c13 = arith.constant 13 : index
    %c0_36 = arith.constant 0 : index
    %100 = vector.load %arg4[%c0_35, %c13, %c0_36] : memref<1x18x256xbf16, #tpu.memory_space<vmem>>, vector<1x1x256xbf16>
    %101 = vector.shape_cast %100 : vector<1x1x256xbf16> to vector<1x256xbf16>
    %102 = vector.shape_cast %99 : vector<1x256xbf16> to vector<1x1x256xbf16>
    tpu.vector_store %arg4[%c0_35, %c13, %c0_36], %102 {strides = array<i32>} : memref<1x18x256xbf16, #tpu.memory_space<vmem>>, vector<1x1x256xbf16>,
    %103 = vector.extract_strided_slice %11 {offsets = [24, 0], sizes = [1, 256], strides = [1, 1]} : vector<28x256xf32> to vector<1x256xf32>
    %104 = vector.extract_strided_slice %11 {offsets = [25, 0], sizes = [1, 256], strides = [1, 1]} : vector<28x256xf32> to vector<1x256xf32>
    %105 = arith.maximumf %103, %104 : vector<1x256xf32>
    %106 = arith.truncf %105 : vector<1x256xf32> to vector<1x256xbf16>
    %c0_37 = arith.constant 0 : index
    %c14 = arith.constant 14 : index
    %c0_38 = arith.constant 0 : index
    %107 = vector.load %arg4[%c0_37, %c14, %c0_38] : memref<1x18x256xbf16, #tpu.memory_space<vmem>>, vector<1x1x256xbf16>
    %108 = vector.shape_cast %107 : vector<1x1x256xbf16> to vector<1x256xbf16>
    %109 = vector.shape_cast %106 : vector<1x256xbf16> to vector<1x1x256xbf16>
    tpu.vector_store %arg4[%c0_37, %c14, %c0_38], %109 {strides = array<i32>} : memref<1x18x256xbf16, #tpu.memory_space<vmem>>, vector<1x1x256xbf16>,
    %110 = vector.extract_strided_slice %11 {offsets = [26, 0], sizes = [1, 256], strides = [1, 1]} : vector<28x256xf32> to vector<1x256xf32>
    %111 = vector.extract_strided_slice %11 {offsets = [27, 0], sizes = [1, 256], strides = [1, 1]} : vector<28x256xf32> to vector<1x256xf32>
    %112 = arith.maximumf %110, %111 : vector<1x256xf32>
    %113 = arith.truncf %112 : vector<1x256xf32> to vector<1x256xbf16>
    %c0_39 = arith.constant 0 : index
    %c15 = arith.constant 15 : index
    %c0_40 = arith.constant 0 : index
    %114 = vector.load %arg4[%c0_39, %c15, %c0_40] : memref<1x18x256xbf16, #tpu.memory_space<vmem>>, vector<1x1x256xbf16>
    %115 = vector.shape_cast %114 : vector<1x1x256xbf16> to vector<1x256xbf16>
    %116 = vector.shape_cast %113 : vector<1x256xbf16> to vector<1x1x256xbf16>
    tpu.vector_store %arg4[%c0_39, %c15, %c0_40], %116 {strides = array<i32>} : memref<1x18x256xbf16, #tpu.memory_space<vmem>>, vector<1x1x256xbf16>,
    return
  }
  func.func @transform_0(%arg0: i32) -> (i32, i32, i32) {
    %c0_i32 = arith.constant 0 : i32
    %c0_i32_0 = arith.constant 0 : i32
    %c0_i32_1 = arith.constant 0 : i32
    return %arg0, %c0_i32, %c0_i32_0 : i32, i32, i32
  }
  func.func @transform_1(%arg0: i32) -> (i32, i32) {
    %c0_i32 = arith.constant 0 : i32
    %c0_i32_0 = arith.constant 0 : i32
    %c0_i32_1 = arith.constant 0 : i32
    return %c0_i32, %c0_i32_0 : i32, i32
  }
  func.func @transform_2(%arg0: i32) -> (i32, i32) {
    %c0_i32 = arith.constant 0 : i32
    %c0_i32_0 = arith.constant 0 : i32
    %c0_i32_1 = arith.constant 0 : i32
    return %c0_i32, %c0_i32_0 : i32, i32
  }
  func.func @transform_3(%arg0: i32) -> (i32, i32, i32) {
    %c0_i32 = arith.constant 0 : i32
    %c0_i32_0 = arith.constant 0 : i32
    %c0_i32_1 = arith.constant 0 : i32
    return %arg0, %c0_i32, %c0_i32_0 : i32, i32, i32
  }
}

module attributes {stable_mosaic.version = 11 : i64} {
  func.func @kernel(%arg0: i32, %arg1: memref<1x18x256xbf16, #tpu.memory_space<vmem>>, %arg2: memref<1280x512xbf16, #tpu.memory_space<vmem>>, %arg3: memref<1x512xf32, #tpu.memory_space<vmem>>, %arg4: memref<1792x128xbf16, #tpu.memory_space<vmem>>, %arg5: memref<1x128xf32, #tpu.memory_space<vmem>>, %arg6: memref<1x1x128xf32, #tpu.memory_space<vmem>>) attributes {dimension_semantics = [#tpu.dimension_semantics<parallel>], iteration_bounds = array<i64: 2>, scalar_prefetch = 0 : i64, scratch_operands = 0 : i64, tpu.core_type = #tpu.core_type<tc>, window_params = [{transform_indices = @transform_0, window_bounds = array<i64: 1, 18, 256>}, {pipeline_mode = #tpu.pipeline_mode<synchronous>, transform_indices = @transform_1, window_bounds = array<i64: 1280, 512>}, {pipeline_mode = #tpu.pipeline_mode<synchronous>, transform_indices = @transform_2, window_bounds = array<i64: 1, 512>}, {pipeline_mode = #tpu.pipeline_mode<synchronous>, transform_indices = @transform_3, window_bounds = array<i64: 1792, 128>}, {pipeline_mode = #tpu.pipeline_mode<synchronous>, transform_indices = @transform_4, window_bounds = array<i64: 1, 128>}, {transform_indices = @transform_5, window_bounds = array<i64: 1, 1, 128>}]} {
    %c0 = arith.constant 0 : index
    %c0_0 = arith.constant 0 : index
    %c0_1 = arith.constant 0 : index
    %0 = vector.load %arg1[%c0, %c0_0, %c0_1] : memref<1x18x256xbf16, #tpu.memory_space<vmem>>, vector<1x18x256xbf16>
    %1 = vector.shape_cast %0 : vector<1x18x256xbf16> to vector<18x256xbf16>
    %cst = arith.constant 0.000000e+00 : f32
    %2 = vector.broadcast %cst : f32 to vector<14x512xf32>
    %3 = vector.extract_strided_slice %1 {offsets = [0, 0], sizes = [14, 256], strides = [1, 1]} : vector<18x256xbf16> to vector<14x256xbf16>
    %c0_2 = arith.constant 0 : index
    %c0_3 = arith.constant 0 : index
    %4 = vector.load %arg2[%c0_2, %c0_3] : memref<1280x512xbf16, #tpu.memory_space<vmem>>, vector<256x512xbf16>
    %cst_4 = arith.constant dense<0.000000e+00> : vector<14x512xf32>
    %5 = tpu.matmul %3, %4, %cst_4 {dimension_numbers = #tpu.dot_dimension_numbers<[1], [0], [0], [1], [0, 0, 1, 1], [], []>} : vector<14x256xbf16>, vector<256x512xbf16>, vector<14x512xf32> -> vector<14x512xf32>
    %6 = arith.addf %2, %5 : vector<14x512xf32>
    %7 = vector.extract_strided_slice %1 {offsets = [1, 0], sizes = [14, 256], strides = [1, 1]} : vector<18x256xbf16> to vector<14x256xbf16>
    %c256 = arith.constant 256 : index
    %c0_5 = arith.constant 0 : index
    %8 = vector.load %arg2[%c256, %c0_5] : memref<1280x512xbf16, #tpu.memory_space<vmem>>, vector<256x512xbf16>
    %cst_6 = arith.constant dense<0.000000e+00> : vector<14x512xf32>
    %9 = tpu.matmul %7, %8, %cst_6 {dimension_numbers = #tpu.dot_dimension_numbers<[1], [0], [0], [1], [0, 0, 1, 1], [], []>} : vector<14x256xbf16>, vector<256x512xbf16>, vector<14x512xf32> -> vector<14x512xf32>
    %10 = arith.addf %6, %9 : vector<14x512xf32>
    %11 = vector.extract_strided_slice %1 {offsets = [2, 0], sizes = [14, 256], strides = [1, 1]} : vector<18x256xbf16> to vector<14x256xbf16>
    %c512 = arith.constant 512 : index
    %c0_7 = arith.constant 0 : index
    %12 = vector.load %arg2[%c512, %c0_7] : memref<1280x512xbf16, #tpu.memory_space<vmem>>, vector<256x512xbf16>
    %cst_8 = arith.constant dense<0.000000e+00> : vector<14x512xf32>
    %13 = tpu.matmul %11, %12, %cst_8 {dimension_numbers = #tpu.dot_dimension_numbers<[1], [0], [0], [1], [0, 0, 1, 1], [], []>} : vector<14x256xbf16>, vector<256x512xbf16>, vector<14x512xf32> -> vector<14x512xf32>
    %14 = arith.addf %10, %13 : vector<14x512xf32>
    %15 = vector.extract_strided_slice %1 {offsets = [3, 0], sizes = [14, 256], strides = [1, 1]} : vector<18x256xbf16> to vector<14x256xbf16>
    %c768 = arith.constant 768 : index
    %c0_9 = arith.constant 0 : index
    %16 = vector.load %arg2[%c768, %c0_9] : memref<1280x512xbf16, #tpu.memory_space<vmem>>, vector<256x512xbf16>
    %cst_10 = arith.constant dense<0.000000e+00> : vector<14x512xf32>
    %17 = tpu.matmul %15, %16, %cst_10 {dimension_numbers = #tpu.dot_dimension_numbers<[1], [0], [0], [1], [0, 0, 1, 1], [], []>} : vector<14x256xbf16>, vector<256x512xbf16>, vector<14x512xf32> -> vector<14x512xf32>
    %18 = arith.addf %14, %17 : vector<14x512xf32>
    %19 = vector.extract_strided_slice %1 {offsets = [4, 0], sizes = [14, 256], strides = [1, 1]} : vector<18x256xbf16> to vector<14x256xbf16>
    %c1024 = arith.constant 1024 : index
    %c0_11 = arith.constant 0 : index
    %20 = vector.load %arg2[%c1024, %c0_11] : memref<1280x512xbf16, #tpu.memory_space<vmem>>, vector<256x512xbf16>
    %cst_12 = arith.constant dense<0.000000e+00> : vector<14x512xf32>
    %21 = tpu.matmul %19, %20, %cst_12 {dimension_numbers = #tpu.dot_dimension_numbers<[1], [0], [0], [1], [0, 0, 1, 1], [], []>} : vector<14x256xbf16>, vector<256x512xbf16>, vector<14x512xf32> -> vector<14x512xf32>
    %22 = arith.addf %18, %21 : vector<14x512xf32>
    %c0_13 = arith.constant 0 : index
    %c0_14 = arith.constant 0 : index
    %23 = vector.load %arg3[%c0_13, %c0_14] : memref<1x512xf32, #tpu.memory_space<vmem>>, vector<1x512xf32>
    %24 = vector.broadcast %23 : vector<1x512xf32> to vector<14x512xf32>
    %25 = arith.addf %22, %24 : vector<14x512xf32>
    %cst_15 = arith.constant 0.000000e+00 : f32
    %26 = vector.broadcast %cst_15 : f32 to vector<14x512xf32>
    %27 = arith.maximumf %25, %26 : vector<14x512xf32>
    %28 = vector.extract_strided_slice %27 {offsets = [0, 0], sizes = [14, 256], strides = [1, 1]} : vector<14x512xf32> to vector<14x256xf32>
    %29 = vector.extract_strided_slice %27 {offsets = [0, 256], sizes = [14, 256], strides = [1, 1]} : vector<14x512xf32> to vector<14x256xf32>
    %30 = arith.maximumf %28, %29 : vector<14x256xf32>
    %cst_16 = arith.constant 0.000000e+00 : f32
    %31 = vector.broadcast %cst_16 : f32 to vector<1x128xf32>
    %32 = vector.extract_strided_slice %30 {offsets = [0, 0], sizes = [1, 256], strides = [1, 1]} : vector<14x256xf32> to vector<1x256xf32>
    %33 = vector.extract_strided_slice %30 {offsets = [1, 0], sizes = [1, 256], strides = [1, 1]} : vector<14x256xf32> to vector<1x256xf32>
    %34 = arith.maximumf %32, %33 : vector<1x256xf32>
    %35 = arith.truncf %34 : vector<1x256xf32> to vector<1x256xbf16>
    %c0_17 = arith.constant 0 : index
    %c0_18 = arith.constant 0 : index
    %36 = vector.load %arg4[%c0_17, %c0_18] : memref<1792x128xbf16, #tpu.memory_space<vmem>>, vector<256x128xbf16>
    %cst_19 = arith.constant dense<0.000000e+00> : vector<1x128xf32>
    %37 = tpu.matmul %35, %36, %cst_19 {dimension_numbers = #tpu.dot_dimension_numbers<[1], [0], [0], [1], [0, 0, 1, 1], [], []>} : vector<1x256xbf16>, vector<256x128xbf16>, vector<1x128xf32> -> vector<1x128xf32>
    %38 = arith.addf %31, %37 : vector<1x128xf32>
    %39 = vector.extract_strided_slice %30 {offsets = [2, 0], sizes = [1, 256], strides = [1, 1]} : vector<14x256xf32> to vector<1x256xf32>
    %40 = vector.extract_strided_slice %30 {offsets = [3, 0], sizes = [1, 256], strides = [1, 1]} : vector<14x256xf32> to vector<1x256xf32>
    %41 = arith.maximumf %39, %40 : vector<1x256xf32>
    %42 = arith.truncf %41 : vector<1x256xf32> to vector<1x256xbf16>
    %c256_20 = arith.constant 256 : index
    %c0_21 = arith.constant 0 : index
    %43 = vector.load %arg4[%c256_20, %c0_21] : memref<1792x128xbf16, #tpu.memory_space<vmem>>, vector<256x128xbf16>
    %cst_22 = arith.constant dense<0.000000e+00> : vector<1x128xf32>
    %44 = tpu.matmul %42, %43, %cst_22 {dimension_numbers = #tpu.dot_dimension_numbers<[1], [0], [0], [1], [0, 0, 1, 1], [], []>} : vector<1x256xbf16>, vector<256x128xbf16>, vector<1x128xf32> -> vector<1x128xf32>
    %45 = arith.addf %38, %44 : vector<1x128xf32>
    %46 = vector.extract_strided_slice %30 {offsets = [4, 0], sizes = [1, 256], strides = [1, 1]} : vector<14x256xf32> to vector<1x256xf32>
    %47 = vector.extract_strided_slice %30 {offsets = [5, 0], sizes = [1, 256], strides = [1, 1]} : vector<14x256xf32> to vector<1x256xf32>
    %48 = arith.maximumf %46, %47 : vector<1x256xf32>
    %49 = arith.truncf %48 : vector<1x256xf32> to vector<1x256xbf16>
    %c512_23 = arith.constant 512 : index
    %c0_24 = arith.constant 0 : index
    %50 = vector.load %arg4[%c512_23, %c0_24] : memref<1792x128xbf16, #tpu.memory_space<vmem>>, vector<256x128xbf16>
    %cst_25 = arith.constant dense<0.000000e+00> : vector<1x128xf32>
    %51 = tpu.matmul %49, %50, %cst_25 {dimension_numbers = #tpu.dot_dimension_numbers<[1], [0], [0], [1], [0, 0, 1, 1], [], []>} : vector<1x256xbf16>, vector<256x128xbf16>, vector<1x128xf32> -> vector<1x128xf32>
    %52 = arith.addf %45, %51 : vector<1x128xf32>
    %53 = vector.extract_strided_slice %30 {offsets = [6, 0], sizes = [1, 256], strides = [1, 1]} : vector<14x256xf32> to vector<1x256xf32>
    %54 = vector.extract_strided_slice %30 {offsets = [7, 0], sizes = [1, 256], strides = [1, 1]} : vector<14x256xf32> to vector<1x256xf32>
    %55 = arith.maximumf %53, %54 : vector<1x256xf32>
    %56 = arith.truncf %55 : vector<1x256xf32> to vector<1x256xbf16>
    %c768_26 = arith.constant 768 : index
    %c0_27 = arith.constant 0 : index
    %57 = vector.load %arg4[%c768_26, %c0_27] : memref<1792x128xbf16, #tpu.memory_space<vmem>>, vector<256x128xbf16>
    %cst_28 = arith.constant dense<0.000000e+00> : vector<1x128xf32>
    %58 = tpu.matmul %56, %57, %cst_28 {dimension_numbers = #tpu.dot_dimension_numbers<[1], [0], [0], [1], [0, 0, 1, 1], [], []>} : vector<1x256xbf16>, vector<256x128xbf16>, vector<1x128xf32> -> vector<1x128xf32>
    %59 = arith.addf %52, %58 : vector<1x128xf32>
    %60 = vector.extract_strided_slice %30 {offsets = [8, 0], sizes = [1, 256], strides = [1, 1]} : vector<14x256xf32> to vector<1x256xf32>
    %61 = vector.extract_strided_slice %30 {offsets = [9, 0], sizes = [1, 256], strides = [1, 1]} : vector<14x256xf32> to vector<1x256xf32>
    %62 = arith.maximumf %60, %61 : vector<1x256xf32>
    %63 = arith.truncf %62 : vector<1x256xf32> to vector<1x256xbf16>
    %c1024_29 = arith.constant 1024 : index
    %c0_30 = arith.constant 0 : index
    %64 = vector.load %arg4[%c1024_29, %c0_30] : memref<1792x128xbf16, #tpu.memory_space<vmem>>, vector<256x128xbf16>
    %cst_31 = arith.constant dense<0.000000e+00> : vector<1x128xf32>
    %65 = tpu.matmul %63, %64, %cst_31 {dimension_numbers = #tpu.dot_dimension_numbers<[1], [0], [0], [1], [0, 0, 1, 1], [], []>} : vector<1x256xbf16>, vector<256x128xbf16>, vector<1x128xf32> -> vector<1x128xf32>
    %66 = arith.addf %59, %65 : vector<1x128xf32>
    %67 = vector.extract_strided_slice %30 {offsets = [10, 0], sizes = [1, 256], strides = [1, 1]} : vector<14x256xf32> to vector<1x256xf32>
    %68 = vector.extract_strided_slice %30 {offsets = [11, 0], sizes = [1, 256], strides = [1, 1]} : vector<14x256xf32> to vector<1x256xf32>
    %69 = arith.maximumf %67, %68 : vector<1x256xf32>
    %70 = arith.truncf %69 : vector<1x256xf32> to vector<1x256xbf16>
    %c1280 = arith.constant 1280 : index
    %c0_32 = arith.constant 0 : index
    %71 = vector.load %arg4[%c1280, %c0_32] : memref<1792x128xbf16, #tpu.memory_space<vmem>>, vector<256x128xbf16>
    %cst_33 = arith.constant dense<0.000000e+00> : vector<1x128xf32>
    %72 = tpu.matmul %70, %71, %cst_33 {dimension_numbers = #tpu.dot_dimension_numbers<[1], [0], [0], [1], [0, 0, 1, 1], [], []>} : vector<1x256xbf16>, vector<256x128xbf16>, vector<1x128xf32> -> vector<1x128xf32>
    %73 = arith.addf %66, %72 : vector<1x128xf32>
    %74 = vector.extract_strided_slice %30 {offsets = [12, 0], sizes = [1, 256], strides = [1, 1]} : vector<14x256xf32> to vector<1x256xf32>
    %75 = vector.extract_strided_slice %30 {offsets = [13, 0], sizes = [1, 256], strides = [1, 1]} : vector<14x256xf32> to vector<1x256xf32>
    %76 = arith.maximumf %74, %75 : vector<1x256xf32>
    %77 = arith.truncf %76 : vector<1x256xf32> to vector<1x256xbf16>
    %c1536 = arith.constant 1536 : index
    %c0_34 = arith.constant 0 : index
    %78 = vector.load %arg4[%c1536, %c0_34] : memref<1792x128xbf16, #tpu.memory_space<vmem>>, vector<256x128xbf16>
    %cst_35 = arith.constant dense<0.000000e+00> : vector<1x128xf32>
    %79 = tpu.matmul %77, %78, %cst_35 {dimension_numbers = #tpu.dot_dimension_numbers<[1], [0], [0], [1], [0, 0, 1, 1], [], []>} : vector<1x256xbf16>, vector<256x128xbf16>, vector<1x128xf32> -> vector<1x128xf32>
    %80 = arith.addf %73, %79 : vector<1x128xf32>
    %c0_36 = arith.constant 0 : index
    %c0_37 = arith.constant 0 : index
    %81 = vector.load %arg5[%c0_36, %c0_37] : memref<1x128xf32, #tpu.memory_space<vmem>>, vector<1x128xf32>
    %82 = arith.addf %80, %81 : vector<1x128xf32>
    %c0_38 = arith.constant 0 : index
    %c0_39 = arith.constant 0 : index
    %c0_40 = arith.constant 0 : index
    %83 = vector.load %arg6[%c0_38, %c0_39, %c0_40] : memref<1x1x128xf32, #tpu.memory_space<vmem>>, vector<1x1x128xf32>
    %84 = vector.shape_cast %83 : vector<1x1x128xf32> to vector<1x128xf32>
    %85 = vector.shape_cast %82 : vector<1x128xf32> to vector<1x1x128xf32>
    tpu.vector_store %arg6[%c0_38, %c0_39, %c0_40], %85 {strides = array<i32>} : memref<1x1x128xf32, #tpu.memory_space<vmem>>, vector<1x1x128xf32>,
    return
  }
  func.func @transform_0(%arg0: i32) -> (i32, i32, i32) {
    %c0_i32 = arith.constant 0 : i32
    %c0_i32_0 = arith.constant 0 : i32
    %c0_i32_1 = arith.constant 0 : i32
    return %arg0, %c0_i32, %c0_i32_0 : i32, i32, i32
  }
  func.func @transform_1(%arg0: i32) -> (i32, i32) {
    %c0_i32 = arith.constant 0 : i32
    %c0_i32_0 = arith.constant 0 : i32
    %c0_i32_1 = arith.constant 0 : i32
    return %c0_i32, %c0_i32_0 : i32, i32
  }
  func.func @transform_2(%arg0: i32) -> (i32, i32) {
    %c0_i32 = arith.constant 0 : i32
    %c0_i32_0 = arith.constant 0 : i32
    %c0_i32_1 = arith.constant 0 : i32
    return %c0_i32, %c0_i32_0 : i32, i32
  }
  func.func @transform_3(%arg0: i32) -> (i32, i32) {
    %c0_i32 = arith.constant 0 : i32
    %c0_i32_0 = arith.constant 0 : i32
    %c0_i32_1 = arith.constant 0 : i32
    return %c0_i32, %c0_i32_0 : i32, i32
  }
  func.func @transform_4(%arg0: i32) -> (i32, i32) {
    %c0_i32 = arith.constant 0 : i32
    %c0_i32_0 = arith.constant 0 : i32
    %c0_i32_1 = arith.constant 0 : i32
    return %c0_i32, %c0_i32_0 : i32, i32
  }
  func.func @transform_5(%arg0: i32) -> (i32, i32, i32) {
    %c0_i32 = arith.constant 0 : i32
    %c0_i32_0 = arith.constant 0 : i32
    %c0_i32_1 = arith.constant 0 : i32
    return %arg0, %c0_i32, %c0_i32_0 : i32, i32, i32
  }
}

</mosaic_0001>

<llo_original>
// kernel: tile.13
$region0: #{tile.13}
  #allocation0 [shape = 's32[1]{0}', space=sflag, size = 0x4, scoped, tag = 'scoped memory for tile.13']
  %s0 = inlined_call_operand.vmem [shape: f32[16], index: 0, kind: input, shape index: {}]
  %s1 = inlined_call_operand.vmem [shape: f32[14,16], index: 1, kind: output, shape index: {}]
  // Predicated region
  $region2: #{tile.13} parent=0 // pred_check
    _
  $region3: #{tile.13} parent=0 // pred_check_branch
    %3 = sbr.rel (0) target = $region5
  $region4: #{tile.13} parent=0 // pred_region
    _
  $region5: #{tile.13} parent=0 // pred_fallthru
    _
  %v4 = vld [vmem:[%s0] ss:$0 sm:$0xff]
  %5 = vst [vmem:[%s1] sm:$0xff] %v4
  %s6 = scalar_lea.vmem %s1, 8
  %7 = vst [vmem:[%s6] sm:$0xff] %v4

// kernel: tile.14
$region0: #{tile.14}
  %s0 = inlined_call_operand.vmem [shape: f32[14,16], index: 0, kind: input, shape index: {}]
  %s1 = inlined_call_operand.vmem [shape: f32[224], index: 1, kind: output, shape index: {}]
  $region1: #{tile.14} parent=0
    #allocation0 [shape = 'u8[4096]{0}', space=vmem, size = 0x1000, scoped, tag = 'scoped mem for output reshape']
    %s2 = smov 3
    %v3 = vld [vmem:[%s0] ss:$8 sm:%s2]
    %vm4 = vcmask 130048
    %5 = vst.msk [vmem:[#allocation0] sm:$0x3] %vm4, %v3
    %s6 = scalar_lea.vmem %s0, 7
    %v7 = vld [vmem:[%s6] sm:$0x1]
    %8 = vrot.lane.b32.xlu0 %v7, 112
    %v9 = vpop.permute.xlu0 %8
    %vm10 = vcmask 1048448
    %11 = vst.msk [vmem:[#allocation0] sm:$0x1] %vm10, %v9
    %s12 = scalar_lea.vmem %s0, 6
    %v13 = vld [vmem:[%s12] sm:$0x1]
    %14 = vrot.lane.b32.xlu0 %v13, 96
    %v15 = vpop.permute.xlu0 %14
    %vm16 = vcmask 917248
    %17 = vst.msk [vmem:[#allocation0] sm:$0x1] %vm16, %v15
    %s18 = scalar_lea.vmem %s0, 5
    %s19 = smov 3
    %v20 = vld [vmem:[%s18] ss:$8 sm:%s19]
    %21 = vrot.lane.b32.xlu0 %v20, 80
    %v22 = vpop.permute.xlu0 %21
    %vm23 = vcmask 786048
    %24 = vst.msk [vmem:[#allocation0] sm:$0x3] %vm23, %v22
    %s25 = scalar_lea.vmem %s0, 4
    %s26 = smov 3
    %v27 = vld [vmem:[%s25] ss:$8 sm:%s26]
    %28 = vrot.lane.b32.xlu0 %v27, 64
    %v29 = vpop.permute.xlu0 %28
    %vm30 = vcmask 654848
    %31 = vst.msk [vmem:[#allocation0] sm:$0x3] %vm30, %v29
    %s32 = scalar_lea.vmem %s0, 3
    %s33 = smov 3
    %v34 = vld [vmem:[%s32] ss:$8 sm:%s33]
    %35 = vrot.lane.b32.xlu0 %v34, 48
    %v36 = vpop.permute.xlu0 %35
    %vm37 = vcmask 523648
    %38 = vst.msk [vmem:[#allocation0] sm:$0x3] %vm37, %v36
    %s39 = scalar_lea.vmem %s0, 2
    %s40 = smov 3
    %v41 = vld [vmem:[%s39] ss:$8 sm:%s40]
    %42 = vrot.lane.b32.xlu0 %v41, 32
    %v43 = vpop.permute.xlu0 %42
    %vm44 = vcmask 392448
    %45 = vst.msk [vmem:[#allocation0] sm:$0x3] %vm44, %v43
    %s46 = scalar_lea.vmem %s0, 1
    %s47 = smov 3
    %v48 = vld [vmem:[%s46] ss:$8 sm:%s47]
    %49 = vrot.lane.b32.xlu0 %v48, 16
    %v50 = vpop.permute.xlu0 %49
    %vm51 = vcmask 261248
    %52 = vst.msk [vmem:[#allocation0] sm:$0x3] %vm51, %v50
    %s54 = sshll.u32 1, 2
    %s55 = ssub.s32 %s54, 1
    %v57 = vld [vmem:[#allocation0] sm:%s55]
    %s58 = sshll.u32 1, 2
    %s59 = ssub.s32 %s58, 1
    %60 = vst [vmem:[%s1] sm:%s59] %v57

// kernel: cnn_forward.2
$region0: #{cnn_forward.2}
  #allocation0 [shape = 'u32[]', space=smem, size = 0x4, offset = 0x4, fixed_abs, tag = 'smem constant byte address 0x4 - core index']
  #allocation1 [shape = 'u32[144,128]{1,0:T(1,128)}', space=vmem, size = 0x12000, scoped, tag = 'internal scratch']
  %s0 = inlined_call_operand.vmem [shape: bf16[2,28,140], index: 0, kind: input, shape index: {}]
  %s1 = inlined_call_operand.vmem [shape: bf16[140,512], index: 1, kind: input, shape index: {}]
  %s2 = inlined_call_operand.vmem [shape: f32[1,512], index: 2, kind: input, shape index: {}]
  %s3 = inlined_call_operand.vmem [shape: bf16[2,18,256], index: 3, kind: output, shape index: {}]
  %s4 = sld [smem:[#allocation0]]
  $region45: #{cnn_forward.2} parent=0
    _
  %s6 = ssub.s32 1, %s4
  %s7 = scalar_select 0, %s6, %s4
  loop: start=0, step=1, limit=4
  $region2: #{cnn_forward.2} parent=0 // loop_pre_header
    _
  $region3: #{cnn_forward.2} parent=0 // loop_header
    %s9 = sphi 0, %s13
    %p10 = scmp.ge.s32.totalorder %s9, 4
    %s19 = sphi 0, %s21
    %s22 = sphi 0, %s19
    %s23 = sphi 0, %s22
    %s39 = sphi 0, %s23
    %s43 = sphi 0, %s43
    %s45 = sphi 0, %s43
    %s46 = sphi 0, %s45
    %s60 = sphi 0, %s46
    %s64 = sphi 0, %s64
    %s66 = sphi 0, %s64
    %s67 = sphi 0, %s66
    %s81 = sphi 0, %s67
    %s87 = sphi 0, %s89
    %s90 = sphi 0, %s87
    %s91 = sphi 0, %s90
    %s107 = sphi 0, %s91
  $region4: #{cnn_forward.2} parent=0 // loop_header_branch
    %12 = sbr.rel (%p10) target = $region8
  $region5: #{cnn_forward.2} parent=0 // loop_body
    %s14 = ssub.s32 %s9, 1
    %s15 = ssub.s32 %s9, 2
    %s16 = sadd.s32 %s9, 1
    %s17 = ssub.s32 %s9, %s16
    %p18 = scmp.eq.s32.totalorder %s17, 0
    %s20 = sadd.s32 %s19, 1
    %s21 = scalar_select %p18, %s19, %s20
    %p24 = pneg %p18
    %p25 = scmp.eq.s32.totalorder %s9, 1
    %p26 = por %p24, %p25
    %p27 = scmp.ne.s32.totalorder %s19, %s22
    %p28 = scmp.eq.s32.totalorder %s9, 0
    %p29 = por %p27, %p28
    %p30 = scmp.ne.s32.totalorder %s19, %s22
    %p31 = scmp.eq.s32.totalorder %s14, 1
    %p32 = por %p30, %p31
    %p33 = scmp.ne.s32.totalorder %s22, %s23
    %p34 = scmp.eq.s32.totalorder %s14, 0
    %p35 = por %p33, %p34
    %p36 = scmp.ne.s32.totalorder %s22, %s23
    %p37 = scmp.eq.s32.totalorder %s15, 1
    %p38 = por %p36, %p37
    %p40 = scmp.ne.s32.totalorder %s23, %s39
    %p41 = scmp.eq.s32.totalorder %s15, 0
    %p42 = por %p40, %p41
    %s44 = sadd.s32 %s43, 1
    %p47 = scmp.eq.s32.totalorder %s9, 1
    %p48 = scmp.ne.s32.totalorder %s43, %s45
    %p49 = scmp.eq.s32.totalorder %s9, 0
    %p50 = por %p48, %p49
    %p51 = scmp.ne.s32.totalorder %s43, %s45
    %p52 = scmp.eq.s32.totalorder %s14, 1
    %p53 = por %p51, %p52
    %p54 = scmp.ne.s32.totalorder %s45, %s46
    %p55 = scmp.eq.s32.totalorder %s14, 0
    %p56 = por %p54, %p55
    %p57 = scmp.ne.s32.totalorder %s45, %s46
    %p58 = scmp.eq.s32.totalorder %s15, 1
    %p59 = por %p57, %p58
    %p61 = scmp.ne.s32.totalorder %s46, %s60
    %p62 = scmp.eq.s32.totalorder %s15, 0
    %p63 = por %p61, %p62
    %s65 = sadd.s32 %s64, 1
    %p68 = scmp.eq.s32.totalorder %s9, 1
    %p69 = scmp.ne.s32.totalorder %s64, %s66
    %p70 = scmp.eq.s32.totalorder %s9, 0
    %p71 = por %p69, %p70
    %p72 = scmp.ne.s32.totalorder %s64, %s66
    %p73 = scmp.eq.s32.totalorder %s14, 1
    %p74 = por %p72, %p73
    %p75 = scmp.ne.s32.totalorder %s66, %s67
    %p76 = scmp.eq.s32.totalorder %s14, 0
    %p77 = por %p75, %p76
    %p78 = scmp.ne.s32.totalorder %s66, %s67
    %p79 = scmp.eq.s32.totalorder %s15, 1
    %p80 = por %p78, %p79
    %p82 = scmp.ne.s32.totalorder %s67, %s81
    %p83 = scmp.eq.s32.totalorder %s15, 0
    %p84 = por %p82, %p83
    %s85 = ssub.s32 %s9, %s16
    %p86 = scmp.eq.s32.totalorder %s85, 0
    %s88 = sadd.s32 %s87, 1
    %s89 = scalar_select %p86, %s87, %s88
    %p92 = pneg %p86
    %p93 = scmp.eq.s32.totalorder %s9, 1
    %p94 = por %p92, %p93
    %p95 = scmp.ne.s32.totalorder %s87, %s90
    %p96 = scmp.eq.s32.totalorder %s9, 0
    %p97 = por %p95, %p96
    %p98 = scmp.ne.s32.totalorder %s87, %s90
    %p99 = scmp.eq.s32.totalorder %s14, 1
    %p100 = por %p98, %p99
    %p101 = scmp.ne.s32.totalorder %s90, %s91
    %p102 = scmp.eq.s32.totalorder %s14, 0
    %p103 = por %p101, %p102
    %p104 = scmp.ne.s32.totalorder %s90, %s91
    %p105 = scmp.eq.s32.totalorder %s15, 1
    %p106 = por %p104, %p105
    %p108 = scmp.ne.s32.totalorder %s91, %s107
    %p109 = scmp.eq.s32.totalorder %s15, 0
    %p110 = por %p108, %p109
    %p111 = scmp.le.s32.totalorder 1, %s9
    %p112 = scmp.lt.s32.totalorder %s9, 3
    %p113 = pnand %p111, %p112
    %p114 = pneg %p113
    // Predicated region
    $region9: #{cnn_forward.2} parent=5 // pred_check
      _
    $region10: #{cnn_forward.2} parent=5 // pred_check_branch
      %116 = sbr.rel (%p113) target = $region12
    $region11: #{cnn_forward.2} parent=5 // pred_region
      %s117 = ssub.s32 %s9, 1
      // Predicated region
      $region13: #{cnn_forward.2} parent=11 // pred_check
        %p118 = pneg %p56
      $region14: #{cnn_forward.2} parent=11 // pred_check_branch
        %120 = sbr.rel (%p118) target = $region16
      $region15: #{cnn_forward.2} parent=11 // pred_region
        _
      $region16: #{cnn_forward.2} parent=11 // pred_fallthru
        _
      // Predicated region
      $region17: #{cnn_forward.2} parent=11 // pred_check
        %p121 = pneg %p77
      $region18: #{cnn_forward.2} parent=11 // pred_check_branch
        %123 = sbr.rel (%p121) target = $region20
      $region19: #{cnn_forward.2} parent=11 // pred_region
        _
      $region20: #{cnn_forward.2} parent=11 // pred_fallthru
        _
    $region12: #{cnn_forward.2} parent=5 // pred_fallthru
      _
    %p124 = scmp.lt.s32.totalorder %s9, 2
    // Predicated region
    $region21: #{cnn_forward.2} parent=5 // pred_check
      %p125 = pneg %p124
    $region22: #{cnn_forward.2} parent=5 // pred_check_branch
      %127 = sbr.rel (%p125) target = $region24
    $region23: #{cnn_forward.2} parent=5 // pred_region
      // Predicated region
      $region25: #{cnn_forward.2} parent=23 // pred_check
        %p128 = pneg %p29
      $region26: #{cnn_forward.2} parent=23 // pred_check_branch
        %130 = sbr.rel (%p128) target = $region28
      $region27: #{cnn_forward.2} parent=23 // pred_region
        %p131 = scmp.lt.s32.totalorder %s9, 1
        %s132 = scalar_select %p131, %s9, 1
        %s133 = smul.addr %s132, 8
        %s134 = smul.addr %s133, 4
        %s135 = scalar_lea.vmem %s0, %s134
      $region28: #{cnn_forward.2} parent=23 // pred_fallthru
        _
    $region24: #{cnn_forward.2} parent=5 // pred_fallthru
      _
    %p136 = scmp.le.s32.totalorder 1, %s9
    %p137 = scmp.lt.s32.totalorder %s9, 3
    %p138 = pnand %p136, %p137
    %p139 = pneg %p138
    // Predicated region
    $region29: #{cnn_forward.2} parent=5 // pred_check
      _
    $region30: #{cnn_forward.2} parent=5 // pred_check_branch
      %141 = sbr.rel (%p138) target = $region32
    $region31: #{cnn_forward.2} parent=5 // pred_region
      %s142 = ssub.s32 %s9, 1
      %p143 = scmp.lt.s32.totalorder %s14, 1
      %s144 = scalar_select %p143, %s14, 1
      %s145 = smul.addr %s144, 8
      %s146 = smul.addr %s145, 4
      %s147 = scalar_lea.vmem %s0, %s146
      %p148 = pneg %p35
      %p149 = pneg %p32
      %p150 = pneg %p56
      %p151 = pneg %p53
      %p152 = pneg %p77
      %p153 = pneg %p74
      %p154 = pneg %p103
      %p155 = pneg %p100
      %p156 = scmp.lt.s32.totalorder %s14, 1
      %s157 = scalar_select %p156, %s14, 1
      %s158 = smul.addr %s157, 6
      %s159 = smul.addr %s158, 4
      %s160 = scalar_lea.vmem %s3, %s159
      %p161 = scmp.lt.s32.totalorder %s14, 1
      %s162 = scalar_select %p161, %s14, 1
      %s163 = smul.addr %s162, 8
      %s164 = smul.addr %s163, 4
      %s165 = scalar_lea.vmem %s0, %s164
      %p166 = scmp.lt.s32.totalorder %s14, 1
      %s167 = scalar_select %p166, %s14, 1
      %s168 = smul.addr %s167, 6
      %s169 = smul.addr %s168, 4
      %s170 = scalar_lea.vmem %s3, %s169
      %v172 = vld [vmem:[%s165] sm:$0xff]
      %v173 = vld [vmem:[%s165 + $0x8] sm:$0xff]
      %v174 = vld [vmem:[%s165 + $0x10] sm:$0xff]
      %v175 = vld [vmem:[%s165 + $0x18] sm:$0x33]
      %v176 = vld [vmem:[%s1] sm:$0xff]
      %v177 = vld [vmem:[%s1 + $0x8] sm:$0xff]
      %v178 = vld [vmem:[%s1 + $0x10] sm:$0xff]
      %v179 = vld [vmem:[%s1 + $0x18] sm:$0xff]
      %v180 = vld [vmem:[%s1 + $0x20] sm:$0xff]
      %v181 = vld [vmem:[%s1 + $0x28] sm:$0xff]
      %v182 = vld [vmem:[%s1 + $0x30] sm:$0xff]
      %v183 = vld [vmem:[%s1 + $0x38] sm:$0xff]
      %v184 = vld [vmem:[%s1 + $0x40] sm:$0xff]
      %v185 = vld [vmem:[%s1 + $0x48] sm:$0xff]
      %v186 = vld [vmem:[%s1 + $0x50] sm:$0xff]
      %v187 = vld [vmem:[%s1 + $0x58] sm:$0xff]
      %v188 = vld [vmem:[%s1 + $0x60] sm:$0xff]
      %v189 = vld [vmem:[%s1 + $0x68] sm:$0xff]
      %v190 = vld [vmem:[%s1 + $0x70] sm:$0xff]
      %v191 = vld [vmem:[%s1 + $0x78] sm:$0xff]
      %v192 = vld [vmem:[%s1 + $0x80] sm:$0xff]
      %v193 = vld [vmem:[%s1 + $0x88] sm:$0xff]
      %v194 = vld [vmem:[%s1 + $0x90] sm:$0xff]
      %v195 = vld [vmem:[%s1 + $0x98] sm:$0xff]
      %v196 = vld [vmem:[%s1 + $0xa0] sm:$0xff]
      %v197 = vld [vmem:[%s1 + $0xa8] sm:$0xff]
      %v198 = vld [vmem:[%s1 + $0xb0] sm:$0xff]
      %v199 = vld [vmem:[%s1 + $0xb8] sm:$0xff]
      %v200 = vld [vmem:[%s1 + $0xc0] sm:$0xff]
      %v201 = vld [vmem:[%s1 + $0xc8] sm:$0xff]
      %v202 = vld [vmem:[%s1 + $0xd0] sm:$0xff]
      %v203 = vld [vmem:[%s1 + $0xd8] sm:$0xff]
      %v204 = vld [vmem:[%s1 + $0xe0] sm:$0xff]
      %v205 = vld [vmem:[%s1 + $0xe8] sm:$0xff]
      %v206 = vld [vmem:[%s1 + $0xf0] sm:$0xff]
      %v207 = vld [vmem:[%s1 + $0xf8] sm:$0xff]
      %v208 = vld [vmem:[%s1 + $0x100] sm:$0xff]
      %v209 = vld [vmem:[%s1 + $0x108] sm:$0xff]
      %v210 = vld [vmem:[%s1 + $0x110] sm:$0x33]
      %v211 = vld [vmem:[%s1 + $0x118] sm:$0x33]
      %v212 = vld [vmem:[%s2] sm:$0xf]
      %v214 = vlaneseq
      %v215 = vshrl.u32 %v214, 7
      %v216 = vsub.s32 0, %v215
      %v217 = vrot.slane %v212, %v216
      %v218 = vlaneseq
      %v219 = vshrl.u32 %v218, 7
      %v220 = vsub.s32 1, %v219
      %v221 = vrot.slane %v212, %v220
      %v222 = vlaneseq
      %v223 = vshrl.u32 %v222, 7
      %v224 = vsub.s32 2, %v223
      %v225 = vrot.slane %v212, %v224
      %v226 = vlaneseq
      %v227 = vshrl.u32 %v226, 7
      %v228 = vsub.s32 3, %v227
      %v229 = vrot.slane %v212, %v228
      %v238 = vunpack.c.l.b16 %v172
      %v239 = vunpack.c.h.b16 %v172
      %v240 = vunpack.c.l.b16 %v173
      %v241 = vunpack.c.h.b16 %v173
      %v242 = vunpack.c.l.b16 %v174
      %v243 = vunpack.c.h.b16 %v174
      %v244 = vunpack.c.l.b16 %v175
      %v245 = vunpack.c.h.b16 %v175
      %v246 = vpack.c.b16 %v240, %v238
      %v247 = vpack.c.b16 %v241, %v239
      %v248 = vpack.c.b16 %v244, %v242
      %v249 = vpack.c.b16 %v245, %v243
      %v288 = vunpack.c.l.b16 %v176
      %v289 = vunpack.c.h.b16 %v176
      %v290 = vunpack.c.l.b16 %v177
      %v291 = vunpack.c.h.b16 %v177
      %v292 = vunpack.c.l.b16 %v178
      %v293 = vunpack.c.h.b16 %v178
      %v294 = vunpack.c.l.b16 %v179
      %v295 = vunpack.c.h.b16 %v179
      %v296 = vunpack.c.l.b16 %v180
      %v297 = vunpack.c.h.b16 %v180
      %v298 = vunpack.c.l.b16 %v181
      %v299 = vunpack.c.h.b16 %v181
      %v300 = vunpack.c.l.b16 %v182
      %v301 = vunpack.c.h.b16 %v182
      %v302 = vunpack.c.l.b16 %v183
      %v303 = vunpack.c.h.b16 %v183
      %v304 = vunpack.c.l.b16 %v184
      %v305 = vunpack.c.h.b16 %v184
      %v306 = vunpack.c.l.b16 %v185
      %v307 = vunpack.c.h.b16 %v185
      %v308 = vunpack.c.l.b16 %v186
      %v309 = vunpack.c.h.b16 %v186
      %v310 = vunpack.c.l.b16 %v187
      %v311 = vunpack.c.h.b16 %v187
      %v312 = vunpack.c.l.b16 %v188
      %v313 = vunpack.c.h.b16 %v188
      %v314 = vunpack.c.l.b16 %v189
      %v315 = vunpack.c.h.b16 %v189
      %v316 = vunpack.c.l.b16 %v190
      %v317 = vunpack.c.h.b16 %v190
      %v318 = vunpack.c.l.b16 %v191
      %v319 = vunpack.c.h.b16 %v191
      %v320 = vunpack.c.l.b16 %v192
      %v321 = vunpack.c.h.b16 %v192
      %v322 = vunpack.c.l.b16 %v193
      %v323 = vunpack.c.h.b16 %v193
      %v324 = vunpack.c.l.b16 %v194
      %v325 = vunpack.c.h.b16 %v194
      %v326 = vunpack.c.l.b16 %v195
      %v327 = vunpack.c.h.b16 %v195
      %v328 = vunpack.c.l.b16 %v196
      %v329 = vunpack.c.h.b16 %v196
      %v330 = vunpack.c.l.b16 %v197
      %v331 = vunpack.c.h.b16 %v197
      %v332 = vunpack.c.l.b16 %v198
      %v333 = vunpack.c.h.b16 %v198
      %v334 = vunpack.c.l.b16 %v199
      %v335 = vunpack.c.h.b16 %v199
      %v336 = vunpack.c.l.b16 %v200
      %v337 = vunpack.c.h.b16 %v200
      %v338 = vunpack.c.l.b16 %v201
      %v339 = vunpack.c.h.b16 %v201
      %v340 = vunpack.c.l.b16 %v202
      %v341 = vunpack.c.h.b16 %v202
      %v342 = vunpack.c.l.b16 %v203
      %v343 = vunpack.c.h.b16 %v203
      %v344 = vunpack.c.l.b16 %v204
      %v345 = vunpack.c.h.b16 %v204
      %v346 = vunpack.c.l.b16 %v205
      %v347 = vunpack.c.h.b16 %v205
      %v348 = vunpack.c.l.b16 %v206
      %v349 = vunpack.c.h.b16 %v206
      %v350 = vunpack.c.l.b16 %v207
      %v351 = vunpack.c.h.b16 %v207
      %v352 = vunpack.c.l.b16 %v208
      %v353 = vunpack.c.h.b16 %v208
      %v354 = vunpack.c.l.b16 %v209
      %v355 = vunpack.c.h.b16 %v209
      %v356 = vunpack.c.l.b16 %v210
      %v357 = vunpack.c.h.b16 %v210
      %v358 = vunpack.c.l.b16 %v211
      %v359 = vunpack.c.h.b16 %v211
      %v360 = vpack.c.b16 %v292, %v288
      %v361 = vpack.c.b16 %v293, %v289
      %v362 = vpack.c.b16 %v294, %v290
      %v363 = vpack.c.b16 %v295, %v291
      %v364 = vpack.c.b16 %v300, %v296
      %v365 = vpack.c.b16 %v301, %v297
      %v366 = vpack.c.b16 %v302, %v298
      %v367 = vpack.c.b16 %v303, %v299
      %v368 = vpack.c.b16 %v308, %v304
      %v369 = vpack.c.b16 %v309, %v305
      %v370 = vpack.c.b16 %v310, %v306
      %v371 = vpack.c.b16 %v311, %v307
      %v372 = vpack.c.b16 %v316, %v312
      %v373 = vpack.c.b16 %v317, %v313
      %v374 = vpack.c.b16 %v318, %v314
      %v375 = vpack.c.b16 %v319, %v315
      %v376 = vpack.c.b16 %v324, %v320
      %v377 = vpack.c.b16 %v325, %v321
      %v378 = vpack.c.b16 %v326, %v322
      %v379 = vpack.c.b16 %v327, %v323
      %v380 = vpack.c.b16 %v332, %v328
      %v381 = vpack.c.b16 %v333, %v329
      %v382 = vpack.c.b16 %v334, %v330
      %v383 = vpack.c.b16 %v335, %v331
      %v384 = vpack.c.b16 %v340, %v336
      %v385 = vpack.c.b16 %v341, %v337
      %v386 = vpack.c.b16 %v342, %v338
      %v387 = vpack.c.b16 %v343, %v339
      %v388 = vpack.c.b16 %v348, %v344
      %v389 = vpack.c.b16 %v349, %v345
      %v390 = vpack.c.b16 %v350, %v346
      %v391 = vpack.c.b16 %v351, %v347
      %v392 = vpack.c.b16 %v356, %v352
      %v393 = vpack.c.b16 %v357, %v353
      %v394 = vpack.c.b16 %v358, %v354
      %v395 = vpack.c.b16 %v359, %v355
      %vm428 = vcmask 97280
      %v430 = vsel %vm428, %v247, 0
      %v433 = vsel %vm428, %v249, 0
      %vm435 = vcmask 1045504
      %v437 = vsel %vm435, %v392, 0
      %v440 = vsel %vm435, %v393, 0
      %v443 = vsel %vm435, %v394, 0
      %v446 = vsel %vm435, %v395, 0
      %448 = vmatprep.subr.bf16.mxu0 %v389
      %449 = vmatpush1.bf16.msra.mxu0 %v388
      %450 = vmatprep.subr.bf16.mxu0 %v385
      %451 = vmatpush1.bf16.msra.mxu0 %v384
      %452 = vmatprep.subr.bf16.mxu0 %v381
      %453 = vmatpush1.bf16.msra.mxu0 %v380
      %454 = vmatprep.subr.bf16.mxu0 %v377
      %455 = vmatpush1.bf16.msra.mxu0 %v376
      %456 = vmatprep.subr.bf16.mxu0 %v373
      %457 = vmatpush1.bf16.msra.mxu0 %v372
      %458 = vmatprep.subr.bf16.mxu0 %v369
      %459 = vmatpush1.bf16.msra.mxu0 %v368
      %460 = vmatprep.subr.bf16.mxu0 %v365
      %461 = vmatpush1.bf16.msra.mxu0 %v364
      %462 = vmatprep.subr.bf16.mxu0 %v361
      %463 = vmatpush1.bf16.msra.mxu0 %v360
      %464 = vmatprep.subr.bf16.mxu0 0
      %465 = vmatpush2.bf16.msra.mxu0 0
      %466 = vmatprep.subr.bf16.mxu0 0
      %467 = vmatpush2.bf16.msra.mxu0 0
      %468 = vmatprep.subr.bf16.mxu0 0
      %469 = vmatpush2.bf16.msra.mxu0 0
      %470 = vmatprep.subr.bf16.mxu0 0
      %471 = vmatpush2.bf16.msra.mxu0 0
      %472 = vmatprep.subr.bf16.mxu0 0
      %473 = vmatpush2.bf16.msra.mxu0 0
      %474 = vmatprep.subr.bf16.mxu0 0
      %475 = vmatpush2.bf16.msra.mxu0 0
      %476 = vmatprep.subr.bf16.mxu0 0
      %477 = vmatpush2.bf16.msra.mxu0 0
      %478 = vmatprep.subr.bf16.mxu0 %v440
      %479 = vmatpush2.bf16.msra.mxu0 %v437
      %480 = vmatprep.mubr.bf16.mxu0 %v430
      %481 = vmatmul.mubr.bf16.gmra.mxu0 %v246
      %v482 = vpop.f32.mrf.mxu0
      %v483 = vadd.f32 %v217, %v482
      %v484 = vpop.f32.mrf.mxu0
      %v485 = vadd.f32 %v221, %v484
      %v486 = vpop.f32.mrf.mxu0
      %v487 = vadd.f32 %v217, %v486
      %v488 = vpop.f32.mrf.mxu0
      %v489 = vadd.f32 %v221, %v488
      %490 = vmatprep.mubr.bf16.mxu0 %v433
      %491 = vmatmul.mubr.bf16.gmra.mxu0 %v248
      %v492 = vpop.f32.mrf.mxu0
      %v493 = vadd.f32 %v217, %v492
      %v494 = vpop.f32.mrf.mxu0
      %v495 = vadd.f32 %v221, %v494
      %v496 = vpop.f32.mrf.mxu0
      %v497 = vadd.f32 %v217, %v496
      %v498 = vpop.f32.mrf.mxu0
      %v499 = vadd.f32 %v221, %v498
      %500 = vdwg.mxu0
      %501 = vmatprep.subr.bf16.mxu0 %v391
      %502 = vmatpush1.bf16.msra.mxu0 %v390
      %503 = vmatprep.subr.bf16.mxu0 %v387
      %504 = vmatpush1.bf16.msra.mxu0 %v386
      %505 = vmatprep.subr.bf16.mxu0 %v383
      %506 = vmatpush1.bf16.msra.mxu0 %v382
      %507 = vmatprep.subr.bf16.mxu0 %v379
      %508 = vmatpush1.bf16.msra.mxu0 %v378
      %509 = vmatprep.subr.bf16.mxu0 %v375
      %510 = vmatpush1.bf16.msra.mxu0 %v374
      %511 = vmatprep.subr.bf16.mxu0 %v371
      %512 = vmatpush1.bf16.msra.mxu0 %v370
      %513 = vmatprep.subr.bf16.mxu0 %v367
      %514 = vmatpush1.bf16.msra.mxu0 %v366
      %515 = vmatprep.subr.bf16.mxu0 %v363
      %516 = vmatpush1.bf16.msra.mxu0 %v362
      %517 = vmatprep.subr.bf16.mxu0 0
      %518 = vmatpush2.bf16.msra.mxu0 0
      %519 = vmatprep.subr.bf16.mxu0 0
      %520 = vmatpush2.bf16.msra.mxu0 0
      %521 = vmatprep.subr.bf16.mxu0 0
      %522 = vmatpush2.bf16.msra.mxu0 0
      %523 = vmatprep.subr.bf16.mxu0 0
      %524 = vmatpush2.bf16.msra.mxu0 0
      %525 = vmatprep.subr.bf16.mxu0 0
      %526 = vmatpush2.bf16.msra.mxu0 0
      %527 = vmatprep.subr.bf16.mxu0 0
      %528 = vmatpush2.bf16.msra.mxu0 0
      %529 = vmatprep.subr.bf16.mxu0 0
      %530 = vmatpush2.bf16.msra.mxu0 0
      %531 = vmatprep.subr.bf16.mxu0 %v446
      %532 = vmatpush2.bf16.msra.mxu0 %v443
      %533 = vmatprep.mubr.bf16.mxu0 %v430
      %534 = vmatmul.mubr.bf16.gmra.mxu0 %v246
      %v535 = vpop.f32.mrf.mxu0
      %v536 = vadd.f32 %v225, %v535
      %v537 = vpop.f32.mrf.mxu0
      %v538 = vadd.f32 %v229, %v537
      %v539 = vpop.f32.mrf.mxu0
      %v540 = vadd.f32 %v225, %v539
      %v541 = vpop.f32.mrf.mxu0
      %v542 = vadd.f32 %v229, %v541
      %543 = vmatprep.mubr.bf16.mxu0 %v433
      %544 = vmatmul.mubr.bf16.gmra.mxu0 %v248
      %v545 = vpop.f32.mrf.mxu0
      %v546 = vadd.f32 %v225, %v545
      %v547 = vpop.f32.mrf.mxu0
      %v548 = vadd.f32 %v229, %v547
      %v549 = vpop.f32.mrf.mxu0
      %v550 = vadd.f32 %v225, %v549
      %v551 = vpop.f32.mrf.mxu0
      %v552 = vadd.f32 %v229, %v551
      %553 = vdwg.mxu0
      %v554 = vmax.f32 %v483, 0.0
      %v555 = vmax.f32 %v485, 0.0
      %v556 = vmax.f32 %v536, 0.0
      %v557 = vmax.f32 %v538, 0.0
      %v558 = vmax.f32 %v487, 0.0
      %v559 = vmax.f32 %v489, 0.0
      %v560 = vmax.f32 %v540, 0.0
      %v561 = vmax.f32 %v542, 0.0
      %v562 = vmax.f32 %v493, 0.0
      %v563 = vmax.f32 %v495, 0.0
      %v564 = vmax.f32 %v546, 0.0
      %v565 = vmax.f32 %v548, 0.0
      %v566 = vmax.f32 %v497, 0.0
      %v567 = vmax.f32 %v499, 0.0
      %v568 = vmax.f32 %v550, 0.0
      %v569 = vmax.f32 %v552, 0.0
      %v570 = vmax.f32 %v554, %v556
      %v571 = vmax.f32 %v555, %v557
      %v572 = vmax.f32 %v558, %v560
      %v573 = vmax.f32 %v559, %v561
      %v574 = vmax.f32 %v562, %v564
      %v575 = vmax.f32 %v563, %v565
      %v576 = vmax.f32 %v566, %v568
      %v577 = vmax.f32 %v567, %v569
      %578 = vst [vmem:[%s170] sm:$0x11] 0
      %579 = vst [vmem:[%s170 + $0x10] sm:$0x11] 0
      %v582 = vrot.slane %v570, 1
      %v583 = vrot.slane %v571, 1
      %v586 = vmax.f32 %v570, %v582
      %v587 = vmax.f32 %v571, %v583
      %v588 = vpack.c.bf16 %v586, %v586
      %v589 = vpack.c.bf16 %v587, %v587
      %v592 = vunpack.c.l.b16 %v588
      %v593 = vunpack.c.l.b16 %v589
      %v594 = vpack.c.b16 %v593, %v592
      %v595 = vrot.slane %v594, 7
      %vm597 = vcmask 1041409
      %vm598 = vsmask.f32 1280
      %vm599 = vmand %vm597, %vm598
      %vm600 = vcmask 1045509
      %vm601 = vsmask.f32 5376
      %vm602 = vmand %vm600, %vm601
      %vm603 = vmor %vm602, %vm599
      %v604 = vld [vmem:[%s170] sm:$0x22]
      %v605 = vsel %vm603, %v595, %v604
      %606 = vst [vmem:[%s170] sm:$0x22] %v605
      %v608 = vshll.u32 %v594, 16
      %vm611 = vsmask.f32 7942
      %vm612 = vmand %vm597, %vm611
      %vm613 = vsmask.f32 7958
      %vm614 = vmand %vm600, %vm613
      %vm615 = vmor %vm614, %vm612
      %v616 = vld [vmem:[%s170] sm:$0x22]
      %v617 = vsel %vm615, %v608, %v616
      %618 = vst [vmem:[%s170] sm:$0x22] %v617
      %vm620 = vcmask 1042434
      %vm621 = vsmask.f32 2304
      %vm622 = vmand %vm620, %vm621
      %vm623 = vcmask 1046534
      %vm624 = vsmask.f32 6400
      %vm625 = vmand %vm623, %vm624
      %vm626 = vmor %vm625, %vm622
      %v627 = vld [vmem:[%s170] sm:$0x44]
      %v628 = vsel %vm626, %v594, %v627
      %629 = vst [vmem:[%s170] sm:$0x44] %v628
      %v630 = vrot.slane %v608, 5
      %v631 = vrot.slane %v630, 4
      %vm633 = vsmask.f32 7946
      %vm634 = vmand %vm620, %vm633
      %vm635 = vsmask.f32 7962
      %vm636 = vmand %vm623, %vm635
      %vm637 = vmor %vm636, %vm634
      %v638 = vld [vmem:[%s170] sm:$0x44]
      %v639 = vsel %vm637, %v631, %v638
      %640 = vst [vmem:[%s170] sm:$0x44] %v639
      %v643 = vrot.slane %v572, 1
      %v644 = vrot.slane %v573, 1
      %v647 = vmax.f32 %v572, %v643
      %v648 = vmax.f32 %v573, %v644
      %v649 = vpack.c.bf16 %v647, %v647
      %v650 = vpack.c.bf16 %v648, %v648
      %v653 = vunpack.c.l.b16 %v649
      %v654 = vunpack.c.l.b16 %v650
      %v655 = vpack.c.b16 %v654, %v653
      %v656 = vrot.slane %v655, 5
      %vm658 = vcmask 1043459
      %vm659 = vsmask.f32 3328
      %vm660 = vmand %vm658, %vm659
      %vm661 = vcmask 1047559
      %vm662 = vsmask.f32 7424
      %vm663 = vmand %vm661, %vm662
      %vm664 = vmor %vm663, %vm660
      %v665 = vld [vmem:[%s170] sm:$0x88]
      %v666 = vsel %vm664, %v656, %v665
      %667 = vst [vmem:[%s170] sm:$0x88] %v666
      %v669 = vshll.u32 %v655, 16
      %v671 = vrot.slane %v669, 6
      %vm673 = vsmask.f32 7950
      %vm674 = vmand %vm658, %vm673
      %vm675 = vsmask.f32 7966
      %vm676 = vmand %vm661, %vm675
      %vm677 = vmor %vm676, %vm674
      %v678 = vld [vmem:[%s170] sm:$0x88]
      %v679 = vsel %vm677, %v671, %v678
      %680 = vst [vmem:[%s170] sm:$0x88] %v679
      %v681 = vrot.slane %v655, 6
      %v682 = vrot.slane %v681, 4
      %vm684 = vcmask 1040384
      %vm685 = vsmask.f32 256
      %vm686 = vmand %vm684, %vm685
      %vm687 = vcmask 1044484
      %vm688 = vsmask.f32 4352
      %vm689 = vmand %vm687, %vm688
      %vm690 = vmor %vm689, %vm686
      %v691 = vld [vmem:[%s170 + $0x8] sm:$0x11]
      %v692 = vsel %vm690, %v682, %v691
      %693 = vst [vmem:[%s170 + $0x8] sm:$0x11] %v692
      %v694 = vrot.slane %v669, 7
      %v695 = vrot.slane %v694, 4
      %vm697 = vsmask.f32 7938
      %vm698 = vmand %vm684, %vm697
      %vm699 = vsmask.f32 7954
      %vm700 = vmand %vm687, %vm699
      %vm701 = vmor %vm700, %vm698
      %v702 = vld [vmem:[%s170 + $0x8] sm:$0x11]
      %v703 = vsel %vm701, %v695, %v702
      %704 = vst [vmem:[%s170 + $0x8] sm:$0x11] %v703
      %v707 = vrot.slane %v574, 1
      %v708 = vrot.slane %v575, 1
      %v711 = vmax.f32 %v574, %v707
      %v712 = vmax.f32 %v575, %v708
      %v713 = vpack.c.bf16 %v711, %v711
      %v714 = vpack.c.bf16 %v712, %v712
      %v717 = vunpack.c.l.b16 %v713
      %v718 = vunpack.c.l.b16 %v714
      %v719 = vpack.c.b16 %v718, %v717
      %v720 = vrot.slane %v719, 7
      %v722 = vld [vmem:[%s170 + $0x8] sm:$0x22]
      %v723 = vsel %vm603, %v720, %v722
      %724 = vst [vmem:[%s170 + $0x8] sm:$0x22] %v723
      %v726 = vshll.u32 %v719, 16
      %v729 = vld [vmem:[%s170 + $0x8] sm:$0x22]
      %v730 = vsel %vm615, %v726, %v729
      %731 = vst [vmem:[%s170 + $0x8] sm:$0x22] %v730
      %v733 = vld [vmem:[%s170 + $0x8] sm:$0x44]
      %v734 = vsel %vm626, %v719, %v733
      %735 = vst [vmem:[%s170 + $0x8] sm:$0x44] %v734
      %v736 = vrot.slane %v726, 5
      %v737 = vrot.slane %v736, 4
      %v739 = vld [vmem:[%s170 + $0x8] sm:$0x44]
      %v740 = vsel %vm637, %v737, %v739
      %741 = vst [vmem:[%s170 + $0x8] sm:$0x44] %v740
      %v744 = vrot.slane %v576, 1
      %v745 = vrot.slane %v577, 1
      %v748 = vmax.f32 %v576, %v744
      %v749 = vmax.f32 %v577, %v745
      %v750 = vpack.c.bf16 %v748, %v748
      %v751 = vpack.c.bf16 %v749, %v749
      %v754 = vunpack.c.l.b16 %v750
      %v755 = vunpack.c.l.b16 %v751
      %v756 = vpack.c.b16 %v755, %v754
      %v757 = vrot.slane %v756, 5
      %v759 = vld [vmem:[%s170 + $0x8] sm:$0x88]
      %v760 = vsel %vm664, %v757, %v759
      %761 = vst [vmem:[%s170 + $0x8] sm:$0x88] %v760
      %v763 = vshll.u32 %v756, 16
      %v765 = vrot.slane %v763, 6
      %v767 = vld [vmem:[%s170 + $0x8] sm:$0x88]
      %v768 = vsel %vm677, %v765, %v767
      %769 = vst [vmem:[%s170 + $0x8] sm:$0x88] %v768
      %p770 = scmp.lt.s32.totalorder %s14, 1
      %s771 = scalar_select %p770, %s14, 1
      %s772 = smul.addr %s771, 6
      %s773 = smul.addr %s772, 4
      %s774 = scalar_lea.vmem %s3, %s773
      // Predicated region
      $region33: #{cnn_forward.2} parent=31 // pred_check
        %p775 = pneg %p100
      $region34: #{cnn_forward.2} parent=31 // pred_check_branch
        %777 = sbr.rel (%p775) target = $region36
      $region35: #{cnn_forward.2} parent=31 // pred_region
        _
      $region36: #{cnn_forward.2} parent=31 // pred_fallthru
        _
    $region32: #{cnn_forward.2} parent=5 // pred_fallthru
      _
    %p778 = scmp.le.s32.totalorder 2, %s9
    // Predicated region
    $region37: #{cnn_forward.2} parent=5 // pred_check
      %p779 = pneg %p778
    $region38: #{cnn_forward.2} parent=5 // pred_check_branch
      %781 = sbr.rel (%p779) target = $region40
    $region39: #{cnn_forward.2} parent=5 // pred_region
      %s782 = ssub.s32 %s9, 2
      // Predicated region
      $region41: #{cnn_forward.2} parent=39 // pred_check
        %p783 = pneg %p106
      $region42: #{cnn_forward.2} parent=39 // pred_check_branch
        %785 = sbr.rel (%p783) target = $region44
      $region43: #{cnn_forward.2} parent=39 // pred_region
        %p786 = scmp.lt.s32.totalorder %s15, 1
        %s787 = scalar_select %p786, %s15, 1
        %s788 = smul.addr %s787, 6
        %s789 = smul.addr %s788, 4
        %s790 = scalar_lea.vmem %s3, %s789
      $region44: #{cnn_forward.2} parent=39 // pred_fallthru
        _
    $region40: #{cnn_forward.2} parent=5 // pred_fallthru
      _
  $region6: #{cnn_forward.2} parent=0 // loop_footer
    %s13 = sadd.s32 1, %s9
  $region7: #{cnn_forward.2} parent=0 // loop_footer_branch
    %8 = sbr.rel target = $region3
  $region8: #{cnn_forward.2} parent=0 // loop_exit
    _

// kernel: tile.18
$region0: #{tile.18}
  #allocation0 [shape = 's32[1]{0}', space=sflag, size = 0x4, scoped, tag = 'scoped memory for tile.18']
  %s0 = inlined_call_operand.vmem [shape: f32[32], index: 0, kind: input, shape index: {}]
  %s1 = inlined_call_operand.vmem [shape: f32[7,32], index: 1, kind: output, shape index: {}]
  // Predicated region
  $region2: #{tile.18} parent=0 // pred_check
    _
  $region3: #{tile.18} parent=0 // pred_check_branch
    %3 = sbr.rel (0) target = $region5
  $region4: #{tile.18} parent=0 // pred_region
    _
  $region5: #{tile.18} parent=0 // pred_fallthru
    _
  %v4 = vld [vmem:[%s0] ss:$0 sm:$0xff]
  %5 = vst [vmem:[%s1] sm:$0xff] %v4

// kernel: tile.19
$region0: #{tile.19}
  %s0 = inlined_call_operand.vmem [shape: f32[7,32], index: 0, kind: input, shape index: {}]
  %s1 = inlined_call_operand.vmem [shape: f32[224], index: 1, kind: output, shape index: {}]
  $region1: #{tile.19} parent=0
    #allocation0 [shape = 'u8[4096]{0}', space=vmem, size = 0x1000, scoped, tag = 'scoped mem for output reshape']
    %s2 = smov 3
    %v3 = vld [vmem:[%s0] ss:$4 sm:%s2]
    %vm4 = vcmask 261120
    %5 = vst.msk [vmem:[#allocation0] sm:$0x3] %vm4, %v3
    %s6 = scalar_lea.vmem %s0, 3
    %v7 = vld [vmem:[%s6] sm:$0x1]
    %8 = vrot.lane.b32.xlu0 %v7, 96
    %v9 = vpop.permute.xlu0 %8
    %vm10 = vcmask 1048320
    %11 = vst.msk [vmem:[#allocation0] sm:$0x1] %vm10, %v9
    %s12 = scalar_lea.vmem %s0, 2
    %s13 = smov 3
    %v14 = vld [vmem:[%s12] ss:$4 sm:%s13]
    %15 = vrot.lane.b32.xlu0 %v14, 64
    %v16 = vpop.permute.xlu0 %15
    %vm17 = vcmask 785920
    %18 = vst.msk [vmem:[#allocation0] sm:$0x3] %vm17, %v16
    %s19 = scalar_lea.vmem %s0, 1
    %s20 = smov 3
    %v21 = vld [vmem:[%s19] ss:$4 sm:%s20]
    %22 = vrot.lane.b32.xlu0 %v21, 32
    %v23 = vpop.permute.xlu0 %22
    %vm24 = vcmask 523520
    %25 = vst.msk [vmem:[#allocation0] sm:$0x3] %vm24, %v23
    %s27 = sshll.u32 1, 2
    %s28 = ssub.s32 %s27, 1
    %v30 = vld [vmem:[#allocation0] sm:%s28]
    %s31 = sshll.u32 1, 2
    %s32 = ssub.s32 %s31, 1
    %33 = vst [vmem:[%s1] sm:%s32] %v30

// kernel: cnn_forward.3
$region0: #{cnn_forward.3}
  #allocation0 [shape = 'u32[]', space=smem, size = 0x4, offset = 0x4, fixed_abs, tag = 'smem constant byte address 0x4 - core index']
  #allocation1 [shape = 'u32[144,128]{1,0:T(1,128)}', space=vmem, size = 0x12000, scoped, tag = 'internal scratch']
  %s0 = inlined_call_operand.vmem [shape: bf16[2,18,256], index: 0, kind: input, shape index: {}]
  %s1 = inlined_call_operand.vmem [shape: bf16[1280,512], index: 1, kind: input, shape index: {}]
  %s2 = inlined_call_operand.vmem [shape: f32[1,512], index: 2, kind: input, shape index: {}]
  %s3 = inlined_call_operand.vmem [shape: bf16[1792,128], index: 3, kind: input, shape index: {}]
  %s4 = inlined_call_operand.vmem [shape: f32[1,128], index: 4, kind: input, shape index: {}]
  %s5 = inlined_call_operand.hbm [shape: f32[2,1,128], index: 5, kind: output, shape index: {}]
  %s6 = sld [smem:[#allocation0]]
  $region53: #{cnn_forward.3} parent=0
    _
  %s8 = ssub.s32 1, %s6
  %s9 = scalar_select 0, %s8, %s6
  $region1: #{cnn_forward.3} parent=0
    #allocation2 [shape = 'u8[1024]{0}', space=vmem, size = 0x400, scoped, tag = 'output window, operand 0']
    #allocation3 [shape = 's32[2]{0}', space=sflag, size = 0x8, scoped, tag = 'scoped memory for cnn_forward.3']
    %10 = vsyncpa [#allocation3], 0
    %s11 = scalar_lea.sflag [#allocation3], 1
    %12 = vsyncpa %s11, 0
    loop: start=0, step=1, limit=4
    $region2: #{cnn_forward.3} parent=1 // loop_pre_header
      _
    $region3: #{cnn_forward.3} parent=1 // loop_header
      %s14 = sphi 0, %s18
      %p15 = scmp.ge.s32.totalorder %s14, 4
      %s24 = sphi 0, %s26
      %s27 = sphi 0, %s24
      %s28 = sphi 0, %s27
      %s44 = sphi 0, %s28
      %s48 = sphi 0, %s48
      %s50 = sphi 0, %s48
      %s51 = sphi 0, %s50
      %s65 = sphi 0, %s51
      %s69 = sphi 0, %s69
      %s71 = sphi 0, %s69
      %s72 = sphi 0, %s71
      %s86 = sphi 0, %s72
      %s90 = sphi 0, %s90
      %s92 = sphi 0, %s90
      %s93 = sphi 0, %s92
      %s107 = sphi 0, %s93
      %s111 = sphi 0, %s111
      %s113 = sphi 0, %s111
      %s114 = sphi 0, %s113
      %s128 = sphi 0, %s114
      %s134 = sphi 0, %s136
      %s137 = sphi 0, %s134
      %s138 = sphi 0, %s137
      %s154 = sphi 0, %s138
    $region4: #{cnn_forward.3} parent=1 // loop_header_branch
      %17 = sbr.rel (%p15) target = $region8
    $region5: #{cnn_forward.3} parent=1 // loop_body
      %s19 = ssub.s32 %s14, 1
      %s20 = ssub.s32 %s14, 2
      %s21 = sadd.s32 %s14, 1
      %s22 = ssub.s32 %s14, %s21
      %p23 = scmp.eq.s32.totalorder %s22, 0
      %s25 = sadd.s32 %s24, 1
      %s26 = scalar_select %p23, %s24, %s25
      %p29 = pneg %p23
      %p30 = scmp.eq.s32.totalorder %s14, 1
      %p31 = por %p29, %p30
      %p32 = scmp.ne.s32.totalorder %s24, %s27
      %p33 = scmp.eq.s32.totalorder %s14, 0
      %p34 = por %p32, %p33
      %p35 = scmp.ne.s32.totalorder %s24, %s27
      %p36 = scmp.eq.s32.totalorder %s19, 1
      %p37 = por %p35, %p36
      %p38 = scmp.ne.s32.totalorder %s27, %s28
      %p39 = scmp.eq.s32.totalorder %s19, 0
      %p40 = por %p38, %p39
      %p41 = scmp.ne.s32.totalorder %s27, %s28
      %p42 = scmp.eq.s32.totalorder %s20, 1
      %p43 = por %p41, %p42
      %p45 = scmp.ne.s32.totalorder %s28, %s44
      %p46 = scmp.eq.s32.totalorder %s20, 0
      %p47 = por %p45, %p46
      %s49 = sadd.s32 %s48, 1
      %p52 = scmp.eq.s32.totalorder %s14, 1
      %p53 = scmp.ne.s32.totalorder %s48, %s50
      %p54 = scmp.eq.s32.totalorder %s14, 0
      %p55 = por %p53, %p54
      %p56 = scmp.ne.s32.totalorder %s48, %s50
      %p57 = scmp.eq.s32.totalorder %s19, 1
      %p58 = por %p56, %p57
      %p59 = scmp.ne.s32.totalorder %s50, %s51
      %p60 = scmp.eq.s32.totalorder %s19, 0
      %p61 = por %p59, %p60
      %p62 = scmp.ne.s32.totalorder %s50, %s51
      %p63 = scmp.eq.s32.totalorder %s20, 1
      %p64 = por %p62, %p63
      %p66 = scmp.ne.s32.totalorder %s51, %s65
      %p67 = scmp.eq.s32.totalorder %s20, 0
      %p68 = por %p66, %p67
      %s70 = sadd.s32 %s69, 1
      %p73 = scmp.eq.s32.totalorder %s14, 1
      %p74 = scmp.ne.s32.totalorder %s69, %s71
      %p75 = scmp.eq.s32.totalorder %s14, 0
      %p76 = por %p74, %p75
      %p77 = scmp.ne.s32.totalorder %s69, %s71
      %p78 = scmp.eq.s32.totalorder %s19, 1
      %p79 = por %p77, %p78
      %p80 = scmp.ne.s32.totalorder %s71, %s72
      %p81 = scmp.eq.s32.totalorder %s19, 0
      %p82 = por %p80, %p81
      %p83 = scmp.ne.s32.totalorder %s71, %s72
      %p84 = scmp.eq.s32.totalorder %s20, 1
      %p85 = por %p83, %p84
      %p87 = scmp.ne.s32.totalorder %s72, %s86
      %p88 = scmp.eq.s32.totalorder %s20, 0
      %p89 = por %p87, %p88
      %s91 = sadd.s32 %s90, 1
      %p94 = scmp.eq.s32.totalorder %s14, 1
      %p95 = scmp.ne.s32.totalorder %s90, %s92
      %p96 = scmp.eq.s32.totalorder %s14, 0
      %p97 = por %p95, %p96
      %p98 = scmp.ne.s32.totalorder %s90, %s92
      %p99 = scmp.eq.s32.totalorder %s19, 1
      %p100 = por %p98, %p99
      %p101 = scmp.ne.s32.totalorder %s92, %s93
      %p102 = scmp.eq.s32.totalorder %s19, 0
      %p103 = por %p101, %p102
      %p104 = scmp.ne.s32.totalorder %s92, %s93
      %p105 = scmp.eq.s32.totalorder %s20, 1
      %p106 = por %p104, %p105
      %p108 = scmp.ne.s32.totalorder %s93, %s107
      %p109 = scmp.eq.s32.totalorder %s20, 0
      %p110 = por %p108, %p109
      %s112 = sadd.s32 %s111, 1
      %p115 = scmp.eq.s32.totalorder %s14, 1
      %p116 = scmp.ne.s32.totalorder %s111, %s113
      %p117 = scmp.eq.s32.totalorder %s14, 0
      %p118 = por %p116, %p117
      %p119 = scmp.ne.s32.totalorder %s111, %s113
      %p120 = scmp.eq.s32.totalorder %s19, 1
      %p121 = por %p119, %p120
      %p122 = scmp.ne.s32.totalorder %s113, %s114
      %p123 = scmp.eq.s32.totalorder %s19, 0
      %p124 = por %p122, %p123
      %p125 = scmp.ne.s32.totalorder %s113, %s114
      %p126 = scmp.eq.s32.totalorder %s20, 1
      %p127 = por %p125, %p126
      %p129 = scmp.ne.s32.totalorder %s114, %s128
      %p130 = scmp.eq.s32.totalorder %s20, 0
      %p131 = por %p129, %p130
      %s132 = ssub.s32 %s14, %s21
      %p133 = scmp.eq.s32.totalorder %s132, 0
      %s135 = sadd.s32 %s134, 1
      %s136 = scalar_select %p133, %s134, %s135
      %p139 = pneg %p133
      %p140 = scmp.eq.s32.totalorder %s14, 1
      %p141 = por %p139, %p140
      %p142 = scmp.ne.s32.totalorder %s134, %s137
      %p143 = scmp.eq.s32.totalorder %s14, 0
      %p144 = por %p142, %p143
      %p145 = scmp.ne.s32.totalorder %s134, %s137
      %p146 = scmp.eq.s32.totalorder %s19, 1
      %p147 = por %p145, %p146
      %p148 = scmp.ne.s32.totalorder %s137, %s138
      %p149 = scmp.eq.s32.totalorder %s19, 0
      %p150 = por %p148, %p149
      %p151 = scmp.ne.s32.totalorder %s137, %s138
      %p152 = scmp.eq.s32.totalorder %s20, 1
      %p153 = por %p151, %p152
      %p155 = scmp.ne.s32.totalorder %s138, %s154
      %p156 = scmp.eq.s32.totalorder %s20, 0
      %p157 = por %p155, %p156
      %p158 = scmp.le.s32.totalorder 1, %s14
      %p159 = scmp.lt.s32.totalorder %s14, 3
      %p160 = pnand %p158, %p159
      %p161 = pneg %p160
      // Predicated region
      $region9: #{cnn_forward.3} parent=5 // pred_check
        _
      $region10: #{cnn_forward.3} parent=5 // pred_check_branch
        %163 = sbr.rel (%p160) target = $region12
      $region11: #{cnn_forward.3} parent=5 // pred_region
        %s164 = ssub.s32 %s14, 1
        // Predicated region
        $region13: #{cnn_forward.3} parent=11 // pred_check
          %p165 = pneg %p61
        $region14: #{cnn_forward.3} parent=11 // pred_check_branch
          %167 = sbr.rel (%p165) target = $region16
        $region15: #{cnn_forward.3} parent=11 // pred_region
          _
        $region16: #{cnn_forward.3} parent=11 // pred_fallthru
          _
        // Predicated region
        $region17: #{cnn_forward.3} parent=11 // pred_check
          %p168 = pneg %p82
        $region18: #{cnn_forward.3} parent=11 // pred_check_branch
          %170 = sbr.rel (%p168) target = $region20
        $region19: #{cnn_forward.3} parent=11 // pred_region
          _
        $region20: #{cnn_forward.3} parent=11 // pred_fallthru
          _
        // Predicated region
        $region21: #{cnn_forward.3} parent=11 // pred_check
          %p171 = pneg %p103
        $region22: #{cnn_forward.3} parent=11 // pred_check_branch
          %173 = sbr.rel (%p171) target = $region24
        $region23: #{cnn_forward.3} parent=11 // pred_region
          _
        $region24: #{cnn_forward.3} parent=11 // pred_fallthru
          _
        // Predicated region
        $region25: #{cnn_forward.3} parent=11 // pred_check
          %p174 = pneg %p124
        $region26: #{cnn_forward.3} parent=11 // pred_check_branch
          %176 = sbr.rel (%p174) target = $region28
        $region27: #{cnn_forward.3} parent=11 // pred_region
          _
        $region28: #{cnn_forward.3} parent=11 // pred_fallthru
          _
      $region12: #{cnn_forward.3} parent=5 // pred_fallthru
        _
      %p177 = scmp.lt.s32.totalorder %s14, 2
      // Predicated region
      $region29: #{cnn_forward.3} parent=5 // pred_check
        %p178 = pneg %p177
      $region30: #{cnn_forward.3} parent=5 // pred_check_branch
        %180 = sbr.rel (%p178) target = $region32
      $region31: #{cnn_forward.3} parent=5 // pred_region
        // Predicated region
        $region33: #{cnn_forward.3} parent=31 // pred_check
          %p181 = pneg %p34
        $region34: #{cnn_forward.3} parent=31 // pred_check_branch
          %183 = sbr.rel (%p181) target = $region36
        $region35: #{cnn_forward.3} parent=31 // pred_region
          %p184 = scmp.lt.s32.totalorder %s14, 1
          %s185 = scalar_select %p184, %s14, 1
          %s186 = smul.addr %s185, 6
          %s187 = smul.addr %s186, 4
          %s188 = scalar_lea.vmem %s0, %s187
        $region36: #{cnn_forward.3} parent=31 // pred_fallthru
          _
      $region32: #{cnn_forward.3} parent=5 // pred_fallthru
        _
      %p189 = scmp.le.s32.totalorder 1, %s14
      %p190 = scmp.lt.s32.totalorder %s14, 3
      %p191 = pnand %p189, %p190
      %p192 = pneg %p191
      // Predicated region
      $region37: #{cnn_forward.3} parent=5 // pred_check
        _
      $region38: #{cnn_forward.3} parent=5 // pred_check_branch
        %194 = sbr.rel (%p191) target = $region40
      $region39: #{cnn_forward.3} parent=5 // pred_region
        %s195 = ssub.s32 %s14, 1
        %p196 = scmp.lt.s32.totalorder %s19, 1
        %s197 = scalar_select %p196, %s19, 1
        %s198 = smul.addr %s197, 6
        %s199 = smul.addr %s198, 4
        %s200 = scalar_lea.vmem %s0, %s199
        %p201 = pneg %p40
        %p202 = pneg %p37
        %p203 = pneg %p61
        %p204 = pneg %p58
        %p205 = pneg %p82
        %p206 = pneg %p79
        %p207 = pneg %p103
        %p208 = pneg %p100
        %p209 = pneg %p124
        %p210 = pneg %p121
        %p211 = pneg %p150
        %p212 = pneg %p147
        %s213 = sand.u32 %s137, 1
        %s214 = scalar_lea.sflag [#allocation3], %s213
        %s215 = sand.u32 %s137, 1
        %s216 = scalar_lea.vmem [#allocation2], %s215
        %p217 = scmp.lt.s32.totalorder %s19, 1
        %s218 = scalar_select %p217, %s19, 1
        %s219 = smul.addr %s218, 6
        %s220 = smul.addr %s219, 4
        %s221 = scalar_lea.vmem %s0, %s220
        %v223 = vld [vmem:[%s221] sm:$0xff]
        %v224 = vld [vmem:[%s221 + $0x8] sm:$0xff]
        %v225 = vld [vmem:[%s221 + $0x10] sm:$0x11]
        %v226 = vld [vmem:[%s1] sm:$0xff]
        %v227 = vld [vmem:[%s1 + $0x8] sm:$0xff]
        %v228 = vld [vmem:[%s1 + $0x10] sm:$0xff]
        %v229 = vld [vmem:[%s1 + $0x18] sm:$0xff]
        %v230 = vld [vmem:[%s1 + $0x20] sm:$0xff]
        %v231 = vld [vmem:[%s1 + $0x28] sm:$0xff]
        %v232 = vld [vmem:[%s1 + $0x30] sm:$0xff]
        %v233 = vld [vmem:[%s1 + $0x38] sm:$0xff]
        %v234 = vld [vmem:[%s1 + $0x40] sm:$0xff]
        %v235 = vld [vmem:[%s1 + $0x48] sm:$0xff]
        %v236 = vld [vmem:[%s1 + $0x50] sm:$0xff]
        %v237 = vld [vmem:[%s1 + $0x58] sm:$0xff]
        %v238 = vld [vmem:[%s1 + $0x60] sm:$0xff]
        %v239 = vld [vmem:[%s1 + $0x68] sm:$0xff]
        %v240 = vld [vmem:[%s1 + $0x70] sm:$0xff]
        %v241 = vld [vmem:[%s1 + $0x78] sm:$0xff]
        %v242 = vld [vmem:[%s1 + $0x80] sm:$0xff]
        %v243 = vld [vmem:[%s1 + $0x88] sm:$0xff]
        %v244 = vld [vmem:[%s1 + $0x90] sm:$0xff]
        %v245 = vld [vmem:[%s1 + $0x98] sm:$0xff]
        %v246 = vld [vmem:[%s1 + $0xa0] sm:$0xff]
        %v247 = vld [vmem:[%s1 + $0xa8] sm:$0xff]
        %v248 = vld [vmem:[%s1 + $0xb0] sm:$0xff]
        %v249 = vld [vmem:[%s1 + $0xb8] sm:$0xff]
        %v250 = vld [vmem:[%s1 + $0xc0] sm:$0xff]
        %v251 = vld [vmem:[%s1 + $0xc8] sm:$0xff]
        %v252 = vld [vmem:[%s1 + $0xd0] sm:$0xff]
        %v253 = vld [vmem:[%s1 + $0xd8] sm:$0xff]
        %v254 = vld [vmem:[%s1 + $0xe0] sm:$0xff]
        %v255 = vld [vmem:[%s1 + $0xe8] sm:$0xff]
        %v256 = vld [vmem:[%s1 + $0xf0] sm:$0xff]
        %v257 = vld [vmem:[%s1 + $0xf8] sm:$0xff]
        %v258 = vld [vmem:[%s1 + $0x100] sm:$0xff]
        %v259 = vld [vmem:[%s1 + $0x108] sm:$0xff]
        %v260 = vld [vmem:[%s1 + $0x110] sm:$0xff]
        %v261 = vld [vmem:[%s1 + $0x118] sm:$0xff]
        %v262 = vld [vmem:[%s1 + $0x120] sm:$0xff]
        %v263 = vld [vmem:[%s1 + $0x128] sm:$0xff]
        %v264 = vld [vmem:[%s1 + $0x130] sm:$0xff]
        %v265 = vld [vmem:[%s1 + $0x138] sm:$0xff]
        %v266 = vld [vmem:[%s1 + $0x140] sm:$0xff]
        %v267 = vld [vmem:[%s1 + $0x148] sm:$0xff]
        %v268 = vld [vmem:[%s1 + $0x150] sm:$0xff]
        %v269 = vld [vmem:[%s1 + $0x158] sm:$0xff]
        %v270 = vld [vmem:[%s1 + $0x160] sm:$0xff]
        %v271 = vld [vmem:[%s1 + $0x168] sm:$0xff]
        %v272 = vld [vmem:[%s1 + $0x170] sm:$0xff]
        %v273 = vld [vmem:[%s1 + $0x178] sm:$0xff]
        %v274 = vld [vmem:[%s1 + $0x180] sm:$0xff]
        %v275 = vld [vmem:[%s1 + $0x188] sm:$0xff]
        %v276 = vld [vmem:[%s1 + $0x190] sm:$0xff]
        %v277 = vld [vmem:[%s1 + $0x198] sm:$0xff]
        %v278 = vld [vmem:[%s1 + $0x1a0] sm:$0xff]
        %v279 = vld [vmem:[%s1 + $0x1a8] sm:$0xff]
        %v280 = vld [vmem:[%s1 + $0x1b0] sm:$0xff]
        %v281 = vld [vmem:[%s1 + $0x1b8] sm:$0xff]
        %v282 = vld [vmem:[%s1 + $0x1c0] sm:$0xff]
        %v283 = vld [vmem:[%s1 + $0x1c8] sm:$0xff]
        %v284 = vld [vmem:[%s1 + $0x1d0] sm:$0xff]
        %v285 = vld [vmem:[%s1 + $0x1d8] sm:$0xff]
        %v286 = vld [vmem:[%s1 + $0x1e0] sm:$0xff]
        %v287 = vld [vmem:[%s1 + $0x1e8] sm:$0xff]
        %v288 = vld [vmem:[%s1 + $0x1f0] sm:$0xff]
        %v289 = vld [vmem:[%s1 + $0x1f8] sm:$0xff]
        %v290 = vld [vmem:[%s1 + $0x200] sm:$0xff]
        %v291 = vld [vmem:[%s1 + $0x208] sm:$0xff]
        %v292 = vld [vmem:[%s1 + $0x210] sm:$0xff]
        %v293 = vld [vmem:[%s1 + $0x218] sm:$0xff]
        %v294 = vld [vmem:[%s1 + $0x220] sm:$0xff]
        %v295 = vld [vmem:[%s1 + $0x228] sm:$0xff]
        %v296 = vld [vmem:[%s1 + $0x230] sm:$0xff]
        %v297 = vld [vmem:[%s1 + $0x238] sm:$0xff]
        %v298 = vld [vmem:[%s1 + $0x240] sm:$0xff]
        %v299 = vld [vmem:[%s1 + $0x248] sm:$0xff]
        %v300 = vld [vmem:[%s1 + $0x250] sm:$0xff]
        %v301 = vld [vmem:[%s1 + $0x258] sm:$0xff]
        %v302 = vld [vmem:[%s1 + $0x260] sm:$0xff]
        %v303 = vld [vmem:[%s1 + $0x268] sm:$0xff]
        %v304 = vld [vmem:[%s1 + $0x270] sm:$0xff]
        %v305 = vld [vmem:[%s1 + $0x278] sm:$0xff]
        %v306 = vld [vmem:[%s1 + $0x280] sm:$0xff]
        %v307 = vld [vmem:[%s1 + $0x288] sm:$0xff]
        %v308 = vld [vmem:[%s1 + $0x290] sm:$0xff]
        %v309 = vld [vmem:[%s1 + $0x298] sm:$0xff]
        %v310 = vld [vmem:[%s1 + $0x2a0] sm:$0xff]
        %v311 = vld [vmem:[%s1 + $0x2a8] sm:$0xff]
        %v312 = vld [vmem:[%s1 + $0x2b0] sm:$0xff]
        %v313 = vld [vmem:[%s1 + $0x2b8] sm:$0xff]
        %v314 = vld [vmem:[%s1 + $0x2c0] sm:$0xff]
        %v315 = vld [vmem:[%s1 + $0x2c8] sm:$0xff]
        %v316 = vld [vmem:[%s1 + $0x2d0] sm:$0xff]
        %v317 = vld [vmem:[%s1 + $0x2d8] sm:$0xff]
        %v318 = vld [vmem:[%s1 + $0x2e0] sm:$0xff]
        %v319 = vld [vmem:[%s1 + $0x2e8] sm:$0xff]
        %v320 = vld [vmem:[%s1 + $0x2f0] sm:$0xff]
        %v321 = vld [vmem:[%s1 + $0x2f8] sm:$0xff]
        %v322 = vld [vmem:[%s1 + $0x300] sm:$0xff]
        %v323 = vld [vmem:[%s1 + $0x308] sm:$0xff]
        %v324 = vld [vmem:[%s1 + $0x310] sm:$0xff]
        %v325 = vld [vmem:[%s1 + $0x318] sm:$0xff]
        %v326 = vld [vmem:[%s1 + $0x320] sm:$0xff]
        %v327 = vld [vmem:[%s1 + $0x328] sm:$0xff]
        %v328 = vld [vmem:[%s1 + $0x330] sm:$0xff]
        %v329 = vld [vmem:[%s1 + $0x338] sm:$0xff]
        %v330 = vld [vmem:[%s1 + $0x340] sm:$0xff]
        %v331 = vld [vmem:[%s1 + $0x348] sm:$0xff]
        %v332 = vld [vmem:[%s1 + $0x350] sm:$0xff]
        %v333 = vld [vmem:[%s1 + $0x358] sm:$0xff]
        %v334 = vld [vmem:[%s1 + $0x360] sm:$0xff]
        %v335 = vld [vmem:[%s1 + $0x368] sm:$0xff]
        %v336 = vld [vmem:[%s1 + $0x370] sm:$0xff]
        %v337 = vld [vmem:[%s1 + $0x378] sm:$0xff]
        %v338 = vld [vmem:[%s1 + $0x380] sm:$0xff]
        %v339 = vld [vmem:[%s1 + $0x388] sm:$0xff]
        %v340 = vld [vmem:[%s1 + $0x390] sm:$0xff]
        %v341 = vld [vmem:[%s1 + $0x398] sm:$0xff]
        %v342 = vld [vmem:[%s1 + $0x3a0] sm:$0xff]
        %v343 = vld [vmem:[%s1 + $0x3a8] sm:$0xff]
        %v344 = vld [vmem:[%s1 + $0x3b0] sm:$0xff]
        %v345 = vld [vmem:[%s1 + $0x3b8] sm:$0xff]
        %v346 = vld [vmem:[%s1 + $0x3c0] sm:$0xff]
        %v347 = vld [vmem:[%s1 + $0x3c8] sm:$0xff]
        %v348 = vld [vmem:[%s1 + $0x3d0] sm:$0xff]
        %v349 = vld [vmem:[%s1 + $0x3d8] sm:$0xff]
        %v350 = vld [vmem:[%s1 + $0x3e0] sm:$0xff]
        %v351 = vld [vmem:[%s1 + $0x3e8] sm:$0xff]
        %v352 = vld [vmem:[%s1 + $0x3f0] sm:$0xff]
        %v353 = vld [vmem:[%s1 + $0x3f8] sm:$0xff]
        %v356 = vunpack.c.l.b16 %v223
        %v357 = vunpack.c.h.b16 %v223
        %v358 = vunpack.c.l.b16 %v224
        %v359 = vunpack.c.h.b16 %v224
        %v360 = vpack.c.b16 %v358, %v356
        %v361 = vpack.c.b16 %v359, %v357
        %v363 = vshrl.u32 %v360, 16
        %v365 = vshll.u32 %v360, 16
        %v367 = vrot.slane %v365, 1
        %v368 = vor.u32 %v363, %v367
        %v370 = vshrl.u32 %v361, 16
        %v372 = vshll.u32 %v361, 16
        %v374 = vrot.slane %v372, 1
        %v375 = vor.u32 %v370, %v374
        %v442 = vunpack.c.l.b16 %v290
        %v443 = vunpack.c.h.b16 %v290
        %v444 = vunpack.c.l.b16 %v291
        %v445 = vunpack.c.h.b16 %v291
        %v446 = vunpack.c.l.b16 %v292
        %v447 = vunpack.c.h.b16 %v292
        %v448 = vunpack.c.l.b16 %v293
        %v449 = vunpack.c.h.b16 %v293
        %v450 = vunpack.c.l.b16 %v294
        %v451 = vunpack.c.h.b16 %v294
        %v452 = vunpack.c.l.b16 %v295
        %v453 = vunpack.c.h.b16 %v295
        %v454 = vunpack.c.l.b16 %v296
        %v455 = vunpack.c.h.b16 %v296
        %v456 = vunpack.c.l.b16 %v297
        %v457 = vunpack.c.h.b16 %v297
        %v458 = vunpack.c.l.b16 %v298
        %v459 = vunpack.c.h.b16 %v298
        %v460 = vunpack.c.l.b16 %v299
        %v461 = vunpack.c.h.b16 %v299
        %v462 = vunpack.c.l.b16 %v300
        %v463 = vunpack.c.h.b16 %v300
        %v464 = vunpack.c.l.b16 %v301
        %v465 = vunpack.c.h.b16 %v301
        %v466 = vunpack.c.l.b16 %v302
        %v467 = vunpack.c.h.b16 %v302
        %v468 = vunpack.c.l.b16 %v303
        %v469 = vunpack.c.h.b16 %v303
        %v470 = vunpack.c.l.b16 %v304
        %v471 = vunpack.c.h.b16 %v304
        %v472 = vunpack.c.l.b16 %v305
        %v473 = vunpack.c.h.b16 %v305
        %v474 = vunpack.c.l.b16 %v306
        %v475 = vunpack.c.h.b16 %v306
        %v476 = vunpack.c.l.b16 %v307
        %v477 = vunpack.c.h.b16 %v307
        %v478 = vunpack.c.l.b16 %v308
        %v479 = vunpack.c.h.b16 %v308
        %v480 = vunpack.c.l.b16 %v309
        %v481 = vunpack.c.h.b16 %v309
        %v482 = vunpack.c.l.b16 %v310
        %v483 = vunpack.c.h.b16 %v310
        %v484 = vunpack.c.l.b16 %v311
        %v485 = vunpack.c.h.b16 %v311
        %v486 = vunpack.c.l.b16 %v312
        %v487 = vunpack.c.h.b16 %v312
        %v488 = vunpack.c.l.b16 %v313
        %v489 = vunpack.c.h.b16 %v313
        %v490 = vunpack.c.l.b16 %v314
        %v491 = vunpack.c.h.b16 %v314
        %v492 = vunpack.c.l.b16 %v315
        %v493 = vunpack.c.h.b16 %v315
        %v494 = vunpack.c.l.b16 %v316
        %v495 = vunpack.c.h.b16 %v316
        %v496 = vunpack.c.l.b16 %v317
        %v497 = vunpack.c.h.b16 %v317
        %v498 = vunpack.c.l.b16 %v318
        %v499 = vunpack.c.h.b16 %v318
        %v500 = vunpack.c.l.b16 %v319
        %v501 = vunpack.c.h.b16 %v319
        %v502 = vunpack.c.l.b16 %v320
        %v503 = vunpack.c.h.b16 %v320
        %v504 = vunpack.c.l.b16 %v321
        %v505 = vunpack.c.h.b16 %v321
        %v506 = vunpack.c.l.b16 %v322
        %v507 = vunpack.c.h.b16 %v322
        %v508 = vunpack.c.l.b16 %v323
        %v509 = vunpack.c.h.b16 %v323
        %v510 = vunpack.c.l.b16 %v324
        %v511 = vunpack.c.h.b16 %v324
        %v512 = vunpack.c.l.b16 %v325
        %v513 = vunpack.c.h.b16 %v325
        %v514 = vunpack.c.l.b16 %v326
        %v515 = vunpack.c.h.b16 %v326
        %v516 = vunpack.c.l.b16 %v327
        %v517 = vunpack.c.h.b16 %v327
        %v518 = vunpack.c.l.b16 %v328
        %v519 = vunpack.c.h.b16 %v328
        %v520 = vunpack.c.l.b16 %v329
        %v521 = vunpack.c.h.b16 %v329
        %v522 = vunpack.c.l.b16 %v330
        %v523 = vunpack.c.h.b16 %v330
        %v524 = vunpack.c.l.b16 %v331
        %v525 = vunpack.c.h.b16 %v331
        %v526 = vunpack.c.l.b16 %v332
        %v527 = vunpack.c.h.b16 %v332
        %v528 = vunpack.c.l.b16 %v333
        %v529 = vunpack.c.h.b16 %v333
        %v530 = vunpack.c.l.b16 %v334
        %v531 = vunpack.c.h.b16 %v334
        %v532 = vunpack.c.l.b16 %v335
        %v533 = vunpack.c.h.b16 %v335
        %v534 = vunpack.c.l.b16 %v336
        %v535 = vunpack.c.h.b16 %v336
        %v536 = vunpack.c.l.b16 %v337
        %v537 = vunpack.c.h.b16 %v337
        %v538 = vunpack.c.l.b16 %v338
        %v539 = vunpack.c.h.b16 %v338
        %v540 = vunpack.c.l.b16 %v339
        %v541 = vunpack.c.h.b16 %v339
        %v542 = vunpack.c.l.b16 %v340
        %v543 = vunpack.c.h.b16 %v340
        %v544 = vunpack.c.l.b16 %v341
        %v545 = vunpack.c.h.b16 %v341
        %v546 = vunpack.c.l.b16 %v342
        %v547 = vunpack.c.h.b16 %v342
        %v548 = vunpack.c.l.b16 %v343
        %v549 = vunpack.c.h.b16 %v343
        %v550 = vunpack.c.l.b16 %v344
        %v551 = vunpack.c.h.b16 %v344
        %v552 = vunpack.c.l.b16 %v345
        %v553 = vunpack.c.h.b16 %v345
        %v554 = vunpack.c.l.b16 %v346
        %v555 = vunpack.c.h.b16 %v346
        %v556 = vunpack.c.l.b16 %v347
        %v557 = vunpack.c.h.b16 %v347
        %v558 = vunpack.c.l.b16 %v348
        %v559 = vunpack.c.h.b16 %v348
        %v560 = vunpack.c.l.b16 %v349
        %v561 = vunpack.c.h.b16 %v349
        %v562 = vunpack.c.l.b16 %v350
        %v563 = vunpack.c.h.b16 %v350
        %v564 = vunpack.c.l.b16 %v351
        %v565 = vunpack.c.h.b16 %v351
        %v566 = vunpack.c.l.b16 %v352
        %v567 = vunpack.c.h.b16 %v352
        %v568 = vunpack.c.l.b16 %v353
        %v569 = vunpack.c.h.b16 %v353
        %v570 = vpack.c.b16 %v446, %v442
        %v571 = vpack.c.b16 %v447, %v443
        %v572 = vpack.c.b16 %v448, %v444
        %v573 = vpack.c.b16 %v449, %v445
        %v574 = vpack.c.b16 %v454, %v450
        %v575 = vpack.c.b16 %v455, %v451
        %v576 = vpack.c.b16 %v456, %v452
        %v577 = vpack.c.b16 %v457, %v453
        %v578 = vpack.c.b16 %v462, %v458
        %v579 = vpack.c.b16 %v463, %v459
        %v580 = vpack.c.b16 %v464, %v460
        %v581 = vpack.c.b16 %v465, %v461
        %v582 = vpack.c.b16 %v470, %v466
        %v583 = vpack.c.b16 %v471, %v467
        %v584 = vpack.c.b16 %v472, %v468
        %v585 = vpack.c.b16 %v473, %v469
        %v586 = vpack.c.b16 %v478, %v474
        %v587 = vpack.c.b16 %v479, %v475
        %v588 = vpack.c.b16 %v480, %v476
        %v589 = vpack.c.b16 %v481, %v477
        %v590 = vpack.c.b16 %v486, %v482
        %v591 = vpack.c.b16 %v487, %v483
        %v592 = vpack.c.b16 %v488, %v484
        %v593 = vpack.c.b16 %v489, %v485
        %v594 = vpack.c.b16 %v494, %v490
        %v595 = vpack.c.b16 %v495, %v491
        %v596 = vpack.c.b16 %v496, %v492
        %v597 = vpack.c.b16 %v497, %v493
        %v598 = vpack.c.b16 %v502, %v498
        %v599 = vpack.c.b16 %v503, %v499
        %v600 = vpack.c.b16 %v504, %v500
        %v601 = vpack.c.b16 %v505, %v501
        %v602 = vpack.c.b16 %v510, %v506
        %v603 = vpack.c.b16 %v511, %v507
        %v604 = vpack.c.b16 %v512, %v508
        %v605 = vpack.c.b16 %v513, %v509
        %v606 = vpack.c.b16 %v518, %v514
        %v607 = vpack.c.b16 %v519, %v515
        %v608 = vpack.c.b16 %v520, %v516
        %v609 = vpack.c.b16 %v521, %v517
        %v610 = vpack.c.b16 %v526, %v522
        %v611 = vpack.c.b16 %v527, %v523
        %v612 = vpack.c.b16 %v528, %v524
        %v613 = vpack.c.b16 %v529, %v525
        %v614 = vpack.c.b16 %v534, %v530
        %v615 = vpack.c.b16 %v535, %v531
        %v616 = vpack.c.b16 %v536, %v532
        %v617 = vpack.c.b16 %v537, %v533
        %v618 = vpack.c.b16 %v542, %v538
        %v619 = vpack.c.b16 %v543, %v539
        %v620 = vpack.c.b16 %v544, %v540
        %v621 = vpack.c.b16 %v545, %v541
        %v622 = vpack.c.b16 %v550, %v546
        %v623 = vpack.c.b16 %v551, %v547
        %v624 = vpack.c.b16 %v552, %v548
        %v625 = vpack.c.b16 %v553, %v549
        %v626 = vpack.c.b16 %v558, %v554
        %v627 = vpack.c.b16 %v559, %v555
        %v628 = vpack.c.b16 %v560, %v556
        %v629 = vpack.c.b16 %v561, %v557
        %v630 = vpack.c.b16 %v566, %v562
        %v631 = vpack.c.b16 %v567, %v563
        %v632 = vpack.c.b16 %v568, %v564
        %v633 = vpack.c.b16 %v569, %v565
        %698 = vmatprep.subr.bf16.mxu0 %v599
        %699 = vmatpush1.bf16.msra.mxu0 %v598
        %700 = vmatprep.subr.bf16.mxu0 %v595
        %701 = vmatpush1.bf16.msra.mxu0 %v594
        %702 = vmatprep.subr.bf16.mxu0 %v591
        %703 = vmatpush1.bf16.msra.mxu0 %v590
        %704 = vmatprep.subr.bf16.mxu0 %v587
        %705 = vmatpush1.bf16.msra.mxu0 %v586
        %706 = vmatprep.subr.bf16.mxu0 %v583
        %707 = vmatpush1.bf16.msra.mxu0 %v582
        %708 = vmatprep.subr.bf16.mxu0 %v579
        %709 = vmatpush1.bf16.msra.mxu0 %v578
        %710 = vmatprep.subr.bf16.mxu0 %v575
        %711 = vmatpush1.bf16.msra.mxu0 %v574
        %712 = vmatprep.subr.bf16.mxu0 %v571
        %713 = vmatpush1.bf16.msra.mxu0 %v570
        %714 = vmatprep.subr.bf16.mxu0 %v631
        %715 = vmatpush2.bf16.msra.mxu0 %v630
        %716 = vmatprep.subr.bf16.mxu0 %v627
        %717 = vmatpush2.bf16.msra.mxu0 %v626
        %718 = vmatprep.subr.bf16.mxu0 %v623
        %719 = vmatpush2.bf16.msra.mxu0 %v622
        %720 = vmatprep.subr.bf16.mxu0 %v619
        %721 = vmatpush2.bf16.msra.mxu0 %v618
        %722 = vmatprep.subr.bf16.mxu0 %v615
        %723 = vmatpush2.bf16.msra.mxu0 %v614
        %724 = vmatprep.subr.bf16.mxu0 %v611
        %725 = vmatpush2.bf16.msra.mxu0 %v610
        %726 = vmatprep.subr.bf16.mxu0 %v607
        %727 = vmatpush2.bf16.msra.mxu0 %v606
        %728 = vmatprep.subr.bf16.mxu0 %v603
        %729 = vmatpush2.bf16.msra.mxu0 %v602
        %730 = vmatprep.mubr.bf16.mxu0 %v375
        %731 = vmatmul.mubr.bf16.gmra.mxu0 %v368
        %v732 = vpop.f32.mrf.mxu0
        %v733 = vadd.f32 0.0, %v732
        %v734 = vpop.f32.mrf.mxu0
        %v735 = vadd.f32 0.0, %v734
        %v736 = vpop.f32.mrf.mxu0
        %v737 = vadd.f32 0.0, %v736
        %v738 = vpop.f32.mrf.mxu0
        %v739 = vadd.f32 0.0, %v738
        %740 = vdwg.mxu0
        %741 = vmatprep.subr.bf16.mxu0 %v601
        %742 = vmatpush1.bf16.msra.mxu0 %v600
        %743 = vmatprep.subr.bf16.mxu0 %v597
        %744 = vmatpush1.bf16.msra.mxu0 %v596
        %745 = vmatprep.subr.bf16.mxu0 %v593
        %746 = vmatpush1.bf16.msra.mxu0 %v592
        %747 = vmatprep.subr.bf16.mxu0 %v589
        %748 = vmatpush1.bf16.msra.mxu0 %v588
        %749 = vmatprep.subr.bf16.mxu0 %v585
        %750 = vmatpush1.bf16.msra.mxu0 %v584
        %751 = vmatprep.subr.bf16.mxu0 %v581
        %752 = vmatpush1.bf16.msra.mxu0 %v580
        %753 = vmatprep.subr.bf16.mxu0 %v577
        %754 = vmatpush1.bf16.msra.mxu0 %v576
        %755 = vmatprep.subr.bf16.mxu0 %v573
        %756 = vmatpush1.bf16.msra.mxu0 %v572
        %757 = vmatprep.subr.bf16.mxu0 %v633
        %758 = vmatpush2.bf16.msra.mxu0 %v632
        %759 = vmatprep.subr.bf16.mxu0 %v629
        %760 = vmatpush2.bf16.msra.mxu0 %v628
        %761 = vmatprep.subr.bf16.mxu0 %v625
        %762 = vmatpush2.bf16.msra.mxu0 %v624
        %763 = vmatprep.subr.bf16.mxu0 %v621
        %764 = vmatpush2.bf16.msra.mxu0 %v620
        %765 = vmatprep.subr.bf16.mxu0 %v617
        %766 = vmatpush2.bf16.msra.mxu0 %v616
        %767 = vmatprep.subr.bf16.mxu0 %v613
        %768 = vmatpush2.bf16.msra.mxu0 %v612
        %769 = vmatprep.subr.bf16.mxu0 %v609
        %770 = vmatpush2.bf16.msra.mxu0 %v608
        %771 = vmatprep.subr.bf16.mxu0 %v605
        %772 = vmatpush2.bf16.msra.mxu0 %v604
        %773 = vmatprep.mubr.bf16.mxu0 %v375
        %774 = vmatmul.mubr.bf16.gmra.mxu0 %v368
        %v775 = vpop.f32.mrf.mxu0
        %v776 = vadd.f32 0.0, %v775
        %v777 = vpop.f32.mrf.mxu0
        %v778 = vadd.f32 0.0, %v777
        %v779 = vpop.f32.mrf.mxu0
        %v780 = vadd.f32 0.0, %v779
        %v781 = vpop.f32.mrf.mxu0
        %v782 = vadd.f32 0.0, %v781
        %783 = vdwg.mxu0
        %v850 = vunpack.c.l.b16 %v226
        %v851 = vunpack.c.h.b16 %v226
        %v852 = vunpack.c.l.b16 %v227
        %v853 = vunpack.c.h.b16 %v227
        %v854 = vunpack.c.l.b16 %v228
        %v855 = vunpack.c.h.b16 %v228
        %v856 = vunpack.c.l.b16 %v229
        %v857 = vunpack.c.h.b16 %v229
        %v858 = vunpack.c.l.b16 %v230
        %v859 = vunpack.c.h.b16 %v230
        %v860 = vunpack.c.l.b16 %v231
        %v861 = vunpack.c.h.b16 %v231
        %v862 = vunpack.c.l.b16 %v232
        %v863 = vunpack.c.h.b16 %v232
        %v864 = vunpack.c.l.b16 %v233
        %v865 = vunpack.c.h.b16 %v233
        %v866 = vunpack.c.l.b16 %v234
        %v867 = vunpack.c.h.b16 %v234
        %v868 = vunpack.c.l.b16 %v235
        %v869 = vunpack.c.h.b16 %v235
        %v870 = vunpack.c.l.b16 %v236
        %v871 = vunpack.c.h.b16 %v236
        %v872 = vunpack.c.l.b16 %v237
        %v873 = vunpack.c.h.b16 %v237
        %v874 = vunpack.c.l.b16 %v238
        %v875 = vunpack.c.h.b16 %v238
        %v876 = vunpack.c.l.b16 %v239
        %v877 = vunpack.c.h.b16 %v239
        %v878 = vunpack.c.l.b16 %v240
        %v879 = vunpack.c.h.b16 %v240
        %v880 = vunpack.c.l.b16 %v241
        %v881 = vunpack.c.h.b16 %v241
        %v882 = vunpack.c.l.b16 %v242
        %v883 = vunpack.c.h.b16 %v242
        %v884 = vunpack.c.l.b16 %v243
        %v885 = vunpack.c.h.b16 %v243
        %v886 = vunpack.c.l.b16 %v244
        %v887 = vunpack.c.h.b16 %v244
        %v888 = vunpack.c.l.b16 %v245
        %v889 = vunpack.c.h.b16 %v245
        %v890 = vunpack.c.l.b16 %v246
        %v891 = vunpack.c.h.b16 %v246
        %v892 = vunpack.c.l.b16 %v247
        %v893 = vunpack.c.h.b16 %v247
        %v894 = vunpack.c.l.b16 %v248
        %v895 = vunpack.c.h.b16 %v248
        %v896 = vunpack.c.l.b16 %v249
        %v897 = vunpack.c.h.b16 %v249
        %v898 = vunpack.c.l.b16 %v250
        %v899 = vunpack.c.h.b16 %v250
        %v900 = vunpack.c.l.b16 %v251
        %v901 = vunpack.c.h.b16 %v251
        %v902 = vunpack.c.l.b16 %v252
        %v903 = vunpack.c.h.b16 %v252
        %v904 = vunpack.c.l.b16 %v253
        %v905 = vunpack.c.h.b16 %v253
        %v906 = vunpack.c.l.b16 %v254
        %v907 = vunpack.c.h.b16 %v254
        %v908 = vunpack.c.l.b16 %v255
        %v909 = vunpack.c.h.b16 %v255
        %v910 = vunpack.c.l.b16 %v256
        %v911 = vunpack.c.h.b16 %v256
        %v912 = vunpack.c.l.b16 %v257
        %v913 = vunpack.c.h.b16 %v257
        %v914 = vunpack.c.l.b16 %v258
        %v915 = vunpack.c.h.b16 %v258
        %v916 = vunpack.c.l.b16 %v259
        %v917 = vunpack.c.h.b16 %v259
        %v918 = vunpack.c.l.b16 %v260
        %v919 = vunpack.c.h.b16 %v260
        %v920 = vunpack.c.l.b16 %v261
        %v921 = vunpack.c.h.b16 %v261
        %v922 = vunpack.c.l.b16 %v262
        %v923 = vunpack.c.h.b16 %v262
        %v924 = vunpack.c.l.b16 %v263
        %v925 = vunpack.c.h.b16 %v263
        %v926 = vunpack.c.l.b16 %v264
        %v927 = vunpack.c.h.b16 %v264
        %v928 = vunpack.c.l.b16 %v265
        %v929 = vunpack.c.h.b16 %v265
        %v930 = vunpack.c.l.b16 %v266
        %v931 = vunpack.c.h.b16 %v266
        %v932 = vunpack.c.l.b16 %v267
        %v933 = vunpack.c.h.b16 %v267
        %v934 = vunpack.c.l.b16 %v268
        %v935 = vunpack.c.h.b16 %v268
        %v936 = vunpack.c.l.b16 %v269
        %v937 = vunpack.c.h.b16 %v269
        %v938 = vunpack.c.l.b16 %v270
        %v939 = vunpack.c.h.b16 %v270
        %v940 = vunpack.c.l.b16 %v271
        %v941 = vunpack.c.h.b16 %v271
        %v942 = vunpack.c.l.b16 %v272
        %v943 = vunpack.c.h.b16 %v272
        %v944 = vunpack.c.l.b16 %v273
        %v945 = vunpack.c.h.b16 %v273
        %v946 = vunpack.c.l.b16 %v274
        %v947 = vunpack.c.h.b16 %v274
        %v948 = vunpack.c.l.b16 %v275
        %v949 = vunpack.c.h.b16 %v275
        %v950 = vunpack.c.l.b16 %v276
        %v951 = vunpack.c.h.b16 %v276
        %v952 = vunpack.c.l.b16 %v277
        %v953 = vunpack.c.h.b16 %v277
        %v954 = vunpack.c.l.b16 %v278
        %v955 = vunpack.c.h.b16 %v278
        %v956 = vunpack.c.l.b16 %v279
        %v957 = vunpack.c.h.b16 %v279
        %v958 = vunpack.c.l.b16 %v280
        %v959 = vunpack.c.h.b16 %v280
        %v960 = vunpack.c.l.b16 %v281
        %v961 = vunpack.c.h.b16 %v281
        %v962 = vunpack.c.l.b16 %v282
        %v963 = vunpack.c.h.b16 %v282
        %v964 = vunpack.c.l.b16 %v283
        %v965 = vunpack.c.h.b16 %v283
        %v966 = vunpack.c.l.b16 %v284
        %v967 = vunpack.c.h.b16 %v284
        %v968 = vunpack.c.l.b16 %v285
        %v969 = vunpack.c.h.b16 %v285
        %v970 = vunpack.c.l.b16 %v286
        %v971 = vunpack.c.h.b16 %v286
        %v972 = vunpack.c.l.b16 %v287
        %v973 = vunpack.c.h.b16 %v287
        %v974 = vunpack.c.l.b16 %v288
        %v975 = vunpack.c.h.b16 %v288
        %v976 = vunpack.c.l.b16 %v289
        %v977 = vunpack.c.h.b16 %v289
        %v978 = vpack.c.b16 %v854, %v850
        %v979 = vpack.c.b16 %v855, %v851
        %v980 = vpack.c.b16 %v856, %v852
        %v981 = vpack.c.b16 %v857, %v853
        %v982 = vpack.c.b16 %v862, %v858
        %v983 = vpack.c.b16 %v863, %v859
        %v984 = vpack.c.b16 %v864, %v860
        %v985 = vpack.c.b16 %v865, %v861
        %v986 = vpack.c.b16 %v870, %v866
        %v987 = vpack.c.b16 %v871, %v867
        %v988 = vpack.c.b16 %v872, %v868
        %v989 = vpack.c.b16 %v873, %v869
        %v990 = vpack.c.b16 %v878, %v874
        %v991 = vpack.c.b16 %v879, %v875
        %v992 = vpack.c.b16 %v880, %v876
        %v993 = vpack.c.b16 %v881, %v877
        %v994 = vpack.c.b16 %v886, %v882
        %v995 = vpack.c.b16 %v887, %v883
        %v996 = vpack.c.b16 %v888, %v884
        %v997 = vpack.c.b16 %v889, %v885
        %v998 = vpack.c.b16 %v894, %v890
        %v999 = vpack.c.b16 %v895, %v891
        %v1000 = vpack.c.b16 %v896, %v892
        %v1001 = vpack.c.b16 %v897, %v893
        %v1002 = vpack.c.b16 %v902, %v898
        %v1003 = vpack.c.b16 %v903, %v899
        %v1004 = vpack.c.b16 %v904, %v900
        %v1005 = vpack.c.b16 %v905, %v901
        %v1006 = vpack.c.b16 %v910, %v906
        %v1007 = vpack.c.b16 %v911, %v907
        %v1008 = vpack.c.b16 %v912, %v908
        %v1009 = vpack.c.b16 %v913, %v909
        %v1010 = vpack.c.b16 %v918, %v914
        %v1011 = vpack.c.b16 %v919, %v915
        %v1012 = vpack.c.b16 %v920, %v916
        %v1013 = vpack.c.b16 %v921, %v917
        %v1014 = vpack.c.b16 %v926, %v922
        %v1015 = vpack.c.b16 %v927, %v923
        %v1016 = vpack.c.b16 %v928, %v924
        %v1017 = vpack.c.b16 %v929, %v925
        %v1018 = vpack.c.b16 %v934, %v930
        %v1019 = vpack.c.b16 %v935, %v931
        %v1020 = vpack.c.b16 %v936, %v932
        %v1021 = vpack.c.b16 %v937, %v933
        %v1022 = vpack.c.b16 %v942, %v938
        %v1023 = vpack.c.b16 %v943, %v939
        %v1024 = vpack.c.b16 %v944, %v940
        %v1025 = vpack.c.b16 %v945, %v941
        %v1026 = vpack.c.b16 %v950, %v946
        %v1027 = vpack.c.b16 %v951, %v947
        %v1028 = vpack.c.b16 %v952, %v948
        %v1029 = vpack.c.b16 %v953, %v949
        %v1030 = vpack.c.b16 %v958, %v954
        %v1031 = vpack.c.b16 %v959, %v955
        %v1032 = vpack.c.b16 %v960, %v956
        %v1033 = vpack.c.b16 %v961, %v957
        %v1034 = vpack.c.b16 %v966, %v962
        %v1035 = vpack.c.b16 %v967, %v963
        %v1036 = vpack.c.b16 %v968, %v964
        %v1037 = vpack.c.b16 %v969, %v965
        %v1038 = vpack.c.b16 %v974, %v970
        %v1039 = vpack.c.b16 %v975, %v971
        %v1040 = vpack.c.b16 %v976, %v972
        %v1041 = vpack.c.b16 %v977, %v973
        %1106 = vmatprep.subr.bf16.mxu0 %v1007
        %1107 = vmatpush1.bf16.msra.mxu0 %v1006
        %1108 = vmatprep.subr.bf16.mxu0 %v1003
        %1109 = vmatpush1.bf16.msra.mxu0 %v1002
        %1110 = vmatprep.subr.bf16.mxu0 %v999
        %1111 = vmatpush1.bf16.msra.mxu0 %v998
        %1112 = vmatprep.subr.bf16.mxu0 %v995
        %1113 = vmatpush1.bf16.msra.mxu0 %v994
        %1114 = vmatprep.subr.bf16.mxu0 %v991
        %1115 = vmatpush1.bf16.msra.mxu0 %v990
        %1116 = vmatprep.subr.bf16.mxu0 %v987
        %1117 = vmatpush1.bf16.msra.mxu0 %v986
        %1118 = vmatprep.subr.bf16.mxu0 %v983
        %1119 = vmatpush1.bf16.msra.mxu0 %v982
        %1120 = vmatprep.subr.bf16.mxu0 %v979
        %1121 = vmatpush1.bf16.msra.mxu0 %v978
        %1122 = vmatprep.subr.bf16.mxu0 %v1039
        %1123 = vmatpush2.bf16.msra.mxu0 %v1038
        %1124 = vmatprep.subr.bf16.mxu0 %v1035
        %1125 = vmatpush2.bf16.msra.mxu0 %v1034
        %1126 = vmatprep.subr.bf16.mxu0 %v1031
        %1127 = vmatpush2.bf16.msra.mxu0 %v1030
        %1128 = vmatprep.subr.bf16.mxu0 %v1027
        %1129 = vmatpush2.bf16.msra.mxu0 %v1026
        %1130 = vmatprep.subr.bf16.mxu0 %v1023
        %1131 = vmatpush2.bf16.msra.mxu0 %v1022
        %1132 = vmatprep.subr.bf16.mxu0 %v1019
        %1133 = vmatpush2.bf16.msra.mxu0 %v1018
        %1134 = vmatprep.subr.bf16.mxu0 %v1015
        %1135 = vmatpush2.bf16.msra.mxu0 %v1014
        %1136 = vmatprep.subr.bf16.mxu0 %v1011
        %1137 = vmatpush2.bf16.msra.mxu0 %v1010
        %1138 = vmatprep.mubr.bf16.mxu0 %v361
        %1139 = vmatmul.mubr.bf16.gmra.mxu0 %v360
        %v1140 = vpop.f32.mrf.mxu0
        %v1141 = vadd.f32 %v733, %v1140
        %v1142 = vpop.f32.mrf.mxu0
        %v1143 = vadd.f32 %v735, %v1142
        %v1144 = vpop.f32.mrf.mxu0
        %v1145 = vadd.f32 %v737, %v1144
        %v1146 = vpop.f32.mrf.mxu0
        %v1147 = vadd.f32 %v739, %v1146
        %1148 = vdwg.mxu0
        %1149 = vmatprep.subr.bf16.mxu0 %v1009
        %1150 = vmatpush1.bf16.msra.mxu0 %v1008
        %1151 = vmatprep.subr.bf16.mxu0 %v1005
        %1152 = vmatpush1.bf16.msra.mxu0 %v1004
        %1153 = vmatprep.subr.bf16.mxu0 %v1001
        %1154 = vmatpush1.bf16.msra.mxu0 %v1000
        %1155 = vmatprep.subr.bf16.mxu0 %v997
        %1156 = vmatpush1.bf16.msra.mxu0 %v996
        %1157 = vmatprep.subr.bf16.mxu0 %v993
        %1158 = vmatpush1.bf16.msra.mxu0 %v992
        %1159 = vmatprep.subr.bf16.mxu0 %v989
        %1160 = vmatpush1.bf16.msra.mxu0 %v988
        %1161 = vmatprep.subr.bf16.mxu0 %v985
        %1162 = vmatpush1.bf16.msra.mxu0 %v984
        %1163 = vmatprep.subr.bf16.mxu0 %v981
        %1164 = vmatpush1.bf16.msra.mxu0 %v980
        %1165 = vmatprep.subr.bf16.mxu0 %v1041
        %1166 = vmatpush2.bf16.msra.mxu0 %v1040
        %1167 = vmatprep.subr.bf16.mxu0 %v1037
        %1168 = vmatpush2.bf16.msra.mxu0 %v1036
        %1169 = vmatprep.subr.bf16.mxu0 %v1033
        %1170 = vmatpush2.bf16.msra.mxu0 %v1032
        %1171 = vmatprep.subr.bf16.mxu0 %v1029
        %1172 = vmatpush2.bf16.msra.mxu0 %v1028
        %1173 = vmatprep.subr.bf16.mxu0 %v1025
        %1174 = vmatpush2.bf16.msra.mxu0 %v1024
        %1175 = vmatprep.subr.bf16.mxu0 %v1021
        %1176 = vmatpush2.bf16.msra.mxu0 %v1020
        %1177 = vmatprep.subr.bf16.mxu0 %v1017
        %1178 = vmatpush2.bf16.msra.mxu0 %v1016
        %1179 = vmatprep.subr.bf16.mxu0 %v1013
        %1180 = vmatpush2.bf16.msra.mxu0 %v1012
        %1181 = vmatprep.mubr.bf16.mxu0 %v361
        %1182 = vmatmul.mubr.bf16.gmra.mxu0 %v360
        %v1183 = vpop.f32.mrf.mxu0
        %v1184 = vadd.f32 %v776, %v1183
        %v1185 = vpop.f32.mrf.mxu0
        %v1186 = vadd.f32 %v778, %v1185
        %v1187 = vpop.f32.mrf.mxu0
        %v1188 = vadd.f32 %v780, %v1187
        %v1189 = vpop.f32.mrf.mxu0
        %v1190 = vadd.f32 %v782, %v1189
        %1191 = vdwg.mxu0
        %v1192 = vld [vmem:[%s1 + $0x400] sm:$0xff]
        %v1193 = vld [vmem:[%s1 + $0x408] sm:$0xff]
        %v1194 = vld [vmem:[%s1 + $0x410] sm:$0xff]
        %v1195 = vld [vmem:[%s1 + $0x418] sm:$0xff]
        %v1196 = vld [vmem:[%s1 + $0x420] sm:$0xff]
        %v1197 = vld [vmem:[%s1 + $0x428] sm:$0xff]
        %v1198 = vld [vmem:[%s1 + $0x430] sm:$0xff]
        %v1199 = vld [vmem:[%s1 + $0x438] sm:$0xff]
        %v1200 = vld [vmem:[%s1 + $0x440] sm:$0xff]
        %v1201 = vld [vmem:[%s1 + $0x448] sm:$0xff]
        %v1202 = vld [vmem:[%s1 + $0x450] sm:$0xff]
        %v1203 = vld [vmem:[%s1 + $0x458] sm:$0xff]
        %v1204 = vld [vmem:[%s1 + $0x460] sm:$0xff]
        %v1205 = vld [vmem:[%s1 + $0x468] sm:$0xff]
        %v1206 = vld [vmem:[%s1 + $0x470] sm:$0xff]
        %v1207 = vld [vmem:[%s1 + $0x478] sm:$0xff]
        %v1208 = vld [vmem:[%s1 + $0x480] sm:$0xff]
        %v1209 = vld [vmem:[%s1 + $0x488] sm:$0xff]
        %v1210 = vld [vmem:[%s1 + $0x490] sm:$0xff]
        %v1211 = vld [vmem:[%s1 + $0x498] sm:$0xff]
        %v1212 = vld [vmem:[%s1 + $0x4a0] sm:$0xff]
        %v1213 = vld [vmem:[%s1 + $0x4a8] sm:$0xff]
        %v1214 = vld [vmem:[%s1 + $0x4b0] sm:$0xff]
        %v1215 = vld [vmem:[%s1 + $0x4b8] sm:$0xff]
        %v1216 = vld [vmem:[%s1 + $0x4c0] sm:$0xff]
        %v1217 = vld [vmem:[%s1 + $0x4c8] sm:$0xff]
        %v1218 = vld [vmem:[%s1 + $0x4d0] sm:$0xff]
        %v1219 = vld [vmem:[%s1 + $0x4d8] sm:$0xff]
        %v1220 = vld [vmem:[%s1 + $0x4e0] sm:$0xff]
        %v1221 = vld [vmem:[%s1 + $0x4e8] sm:$0xff]
        %v1222 = vld [vmem:[%s1 + $0x4f0] sm:$0xff]
        %v1223 = vld [vmem:[%s1 + $0x4f8] sm:$0xff]
        %v1224 = vld [vmem:[%s1 + $0x500] sm:$0xff]
        %v1225 = vld [vmem:[%s1 + $0x508] sm:$0xff]
        %v1226 = vld [vmem:[%s1 + $0x510] sm:$0xff]
        %v1227 = vld [vmem:[%s1 + $0x518] sm:$0xff]
        %v1228 = vld [vmem:[%s1 + $0x520] sm:$0xff]
        %v1229 = vld [vmem:[%s1 + $0x528] sm:$0xff]
        %v1230 = vld [vmem:[%s1 + $0x530] sm:$0xff]
        %v1231 = vld [vmem:[%s1 + $0x538] sm:$0xff]
        %v1232 = vld [vmem:[%s1 + $0x540] sm:$0xff]
        %v1233 = vld [vmem:[%s1 + $0x548] sm:$0xff]
        %v1234 = vld [vmem:[%s1 + $0x550] sm:$0xff]
        %v1235 = vld [vmem:[%s1 + $0x558] sm:$0xff]
        %v1236 = vld [vmem:[%s1 + $0x560] sm:$0xff]
        %v1237 = vld [vmem:[%s1 + $0x568] sm:$0xff]
        %v1238 = vld [vmem:[%s1 + $0x570] sm:$0xff]
        %v1239 = vld [vmem:[%s1 + $0x578] sm:$0xff]
        %v1240 = vld [vmem:[%s1 + $0x580] sm:$0xff]
        %v1241 = vld [vmem:[%s1 + $0x588] sm:$0xff]
        %v1242 = vld [vmem:[%s1 + $0x590] sm:$0xff]
        %v1243 = vld [vmem:[%s1 + $0x598] sm:$0xff]
        %v1244 = vld [vmem:[%s1 + $0x5a0] sm:$0xff]
        %v1245 = vld [vmem:[%s1 + $0x5a8] sm:$0xff]
        %v1246 = vld [vmem:[%s1 + $0x5b0] sm:$0xff]
        %v1247 = vld [vmem:[%s1 + $0x5b8] sm:$0xff]
        %v1248 = vld [vmem:[%s1 + $0x5c0] sm:$0xff]
        %v1249 = vld [vmem:[%s1 + $0x5c8] sm:$0xff]
        %v1250 = vld [vmem:[%s1 + $0x5d0] sm:$0xff]
        %v1251 = vld [vmem:[%s1 + $0x5d8] sm:$0xff]
        %v1252 = vld [vmem:[%s1 + $0x5e0] sm:$0xff]
        %v1253 = vld [vmem:[%s1 + $0x5e8] sm:$0xff]
        %v1254 = vld [vmem:[%s1 + $0x5f0] sm:$0xff]
        %v1255 = vld [vmem:[%s1 + $0x5f8] sm:$0xff]
        %v1256 = vrot.slane %v360, 1
        %v1257 = vrot.slane %v361, 1
        %v1324 = vunpack.c.l.b16 %v1192
        %v1325 = vunpack.c.h.b16 %v1192
        %v1326 = vunpack.c.l.b16 %v1193
        %v1327 = vunpack.c.h.b16 %v1193
        %v1328 = vunpack.c.l.b16 %v1194
        %v1329 = vunpack.c.h.b16 %v1194
        %v1330 = vunpack.c.l.b16 %v1195
        %v1331 = vunpack.c.h.b16 %v1195
        %v1332 = vunpack.c.l.b16 %v1196
        %v1333 = vunpack.c.h.b16 %v1196
        %v1334 = vunpack.c.l.b16 %v1197
        %v1335 = vunpack.c.h.b16 %v1197
        %v1336 = vunpack.c.l.b16 %v1198
        %v1337 = vunpack.c.h.b16 %v1198
        %v1338 = vunpack.c.l.b16 %v1199
        %v1339 = vunpack.c.h.b16 %v1199
        %v1340 = vunpack.c.l.b16 %v1200
        %v1341 = vunpack.c.h.b16 %v1200
        %v1342 = vunpack.c.l.b16 %v1201
        %v1343 = vunpack.c.h.b16 %v1201
        %v1344 = vunpack.c.l.b16 %v1202
        %v1345 = vunpack.c.h.b16 %v1202
        %v1346 = vunpack.c.l.b16 %v1203
        %v1347 = vunpack.c.h.b16 %v1203
        %v1348 = vunpack.c.l.b16 %v1204
        %v1349 = vunpack.c.h.b16 %v1204
        %v1350 = vunpack.c.l.b16 %v1205
        %v1351 = vunpack.c.h.b16 %v1205
        %v1352 = vunpack.c.l.b16 %v1206
        %v1353 = vunpack.c.h.b16 %v1206
        %v1354 = vunpack.c.l.b16 %v1207
        %v1355 = vunpack.c.h.b16 %v1207
        %v1356 = vunpack.c.l.b16 %v1208
        %v1357 = vunpack.c.h.b16 %v1208
        %v1358 = vunpack.c.l.b16 %v1209
        %v1359 = vunpack.c.h.b16 %v1209
        %v1360 = vunpack.c.l.b16 %v1210
        %v1361 = vunpack.c.h.b16 %v1210
        %v1362 = vunpack.c.l.b16 %v1211
        %v1363 = vunpack.c.h.b16 %v1211
        %v1364 = vunpack.c.l.b16 %v1212
        %v1365 = vunpack.c.h.b16 %v1212
        %v1366 = vunpack.c.l.b16 %v1213
        %v1367 = vunpack.c.h.b16 %v1213
        %v1368 = vunpack.c.l.b16 %v1214
        %v1369 = vunpack.c.h.b16 %v1214
        %v1370 = vunpack.c.l.b16 %v1215
        %v1371 = vunpack.c.h.b16 %v1215
        %v1372 = vunpack.c.l.b16 %v1216
        %v1373 = vunpack.c.h.b16 %v1216
        %v1374 = vunpack.c.l.b16 %v1217
        %v1375 = vunpack.c.h.b16 %v1217
        %v1376 = vunpack.c.l.b16 %v1218
        %v1377 = vunpack.c.h.b16 %v1218
        %v1378 = vunpack.c.l.b16 %v1219
        %v1379 = vunpack.c.h.b16 %v1219
        %v1380 = vunpack.c.l.b16 %v1220
        %v1381 = vunpack.c.h.b16 %v1220
        %v1382 = vunpack.c.l.b16 %v1221
        %v1383 = vunpack.c.h.b16 %v1221
        %v1384 = vunpack.c.l.b16 %v1222
        %v1385 = vunpack.c.h.b16 %v1222
        %v1386 = vunpack.c.l.b16 %v1223
        %v1387 = vunpack.c.h.b16 %v1223
        %v1388 = vunpack.c.l.b16 %v1224
        %v1389 = vunpack.c.h.b16 %v1224
        %v1390 = vunpack.c.l.b16 %v1225
        %v1391 = vunpack.c.h.b16 %v1225
        %v1392 = vunpack.c.l.b16 %v1226
        %v1393 = vunpack.c.h.b16 %v1226
        %v1394 = vunpack.c.l.b16 %v1227
        %v1395 = vunpack.c.h.b16 %v1227
        %v1396 = vunpack.c.l.b16 %v1228
        %v1397 = vunpack.c.h.b16 %v1228
        %v1398 = vunpack.c.l.b16 %v1229
        %v1399 = vunpack.c.h.b16 %v1229
        %v1400 = vunpack.c.l.b16 %v1230
        %v1401 = vunpack.c.h.b16 %v1230
        %v1402 = vunpack.c.l.b16 %v1231
        %v1403 = vunpack.c.h.b16 %v1231
        %v1404 = vunpack.c.l.b16 %v1232
        %v1405 = vunpack.c.h.b16 %v1232
        %v1406 = vunpack.c.l.b16 %v1233
        %v1407 = vunpack.c.h.b16 %v1233
        %v1408 = vunpack.c.l.b16 %v1234
        %v1409 = vunpack.c.h.b16 %v1234
        %v1410 = vunpack.c.l.b16 %v1235
        %v1411 = vunpack.c.h.b16 %v1235
        %v1412 = vunpack.c.l.b16 %v1236
        %v1413 = vunpack.c.h.b16 %v1236
        %v1414 = vunpack.c.l.b16 %v1237
        %v1415 = vunpack.c.h.b16 %v1237
        %v1416 = vunpack.c.l.b16 %v1238
        %v1417 = vunpack.c.h.b16 %v1238
        %v1418 = vunpack.c.l.b16 %v1239
        %v1419 = vunpack.c.h.b16 %v1239
        %v1420 = vunpack.c.l.b16 %v1240
        %v1421 = vunpack.c.h.b16 %v1240
        %v1422 = vunpack.c.l.b16 %v1241
        %v1423 = vunpack.c.h.b16 %v1241
        %v1424 = vunpack.c.l.b16 %v1242
        %v1425 = vunpack.c.h.b16 %v1242
        %v1426 = vunpack.c.l.b16 %v1243
        %v1427 = vunpack.c.h.b16 %v1243
        %v1428 = vunpack.c.l.b16 %v1244
        %v1429 = vunpack.c.h.b16 %v1244
        %v1430 = vunpack.c.l.b16 %v1245
        %v1431 = vunpack.c.h.b16 %v1245
        %v1432 = vunpack.c.l.b16 %v1246
        %v1433 = vunpack.c.h.b16 %v1246
        %v1434 = vunpack.c.l.b16 %v1247
        %v1435 = vunpack.c.h.b16 %v1247
        %v1436 = vunpack.c.l.b16 %v1248
        %v1437 = vunpack.c.h.b16 %v1248
        %v1438 = vunpack.c.l.b16 %v1249
        %v1439 = vunpack.c.h.b16 %v1249
        %v1440 = vunpack.c.l.b16 %v1250
        %v1441 = vunpack.c.h.b16 %v1250
        %v1442 = vunpack.c.l.b16 %v1251
        %v1443 = vunpack.c.h.b16 %v1251
        %v1444 = vunpack.c.l.b16 %v1252
        %v1445 = vunpack.c.h.b16 %v1252
        %v1446 = vunpack.c.l.b16 %v1253
        %v1447 = vunpack.c.h.b16 %v1253
        %v1448 = vunpack.c.l.b16 %v1254
        %v1449 = vunpack.c.h.b16 %v1254
        %v1450 = vunpack.c.l.b16 %v1255
        %v1451 = vunpack.c.h.b16 %v1255
        %v1452 = vpack.c.b16 %v1328, %v1324
        %v1453 = vpack.c.b16 %v1329, %v1325
        %v1454 = vpack.c.b16 %v1330, %v1326
        %v1455 = vpack.c.b16 %v1331, %v1327
        %v1456 = vpack.c.b16 %v1336, %v1332
        %v1457 = vpack.c.b16 %v1337, %v1333
        %v1458 = vpack.c.b16 %v1338, %v1334
        %v1459 = vpack.c.b16 %v1339, %v1335
        %v1460 = vpack.c.b16 %v1344, %v1340
        %v1461 = vpack.c.b16 %v1345, %v1341
        %v1462 = vpack.c.b16 %v1346, %v1342
        %v1463 = vpack.c.b16 %v1347, %v1343
        %v1464 = vpack.c.b16 %v1352, %v1348
        %v1465 = vpack.c.b16 %v1353, %v1349
        %v1466 = vpack.c.b16 %v1354, %v1350
        %v1467 = vpack.c.b16 %v1355, %v1351
        %v1468 = vpack.c.b16 %v1360, %v1356
        %v1469 = vpack.c.b16 %v1361, %v1357
        %v1470 = vpack.c.b16 %v1362, %v1358
        %v1471 = vpack.c.b16 %v1363, %v1359
        %v1472 = vpack.c.b16 %v1368, %v1364
        %v1473 = vpack.c.b16 %v1369, %v1365
        %v1474 = vpack.c.b16 %v1370, %v1366
        %v1475 = vpack.c.b16 %v1371, %v1367
        %v1476 = vpack.c.b16 %v1376, %v1372
        %v1477 = vpack.c.b16 %v1377, %v1373
        %v1478 = vpack.c.b16 %v1378, %v1374
        %v1479 = vpack.c.b16 %v1379, %v1375
        %v1480 = vpack.c.b16 %v1384, %v1380
        %v1481 = vpack.c.b16 %v1385, %v1381
        %v1482 = vpack.c.b16 %v1386, %v1382
        %v1483 = vpack.c.b16 %v1387, %v1383
        %v1484 = vpack.c.b16 %v1392, %v1388
        %v1485 = vpack.c.b16 %v1393, %v1389
        %v1486 = vpack.c.b16 %v1394, %v1390
        %v1487 = vpack.c.b16 %v1395, %v1391
        %v1488 = vpack.c.b16 %v1400, %v1396
        %v1489 = vpack.c.b16 %v1401, %v1397
        %v1490 = vpack.c.b16 %v1402, %v1398
        %v1491 = vpack.c.b16 %v1403, %v1399
        %v1492 = vpack.c.b16 %v1408, %v1404
        %v1493 = vpack.c.b16 %v1409, %v1405
        %v1494 = vpack.c.b16 %v1410, %v1406
        %v1495 = vpack.c.b16 %v1411, %v1407
        %v1496 = vpack.c.b16 %v1416, %v1412
        %v1497 = vpack.c.b16 %v1417, %v1413
        %v1498 = vpack.c.b16 %v1418, %v1414
        %v1499 = vpack.c.b16 %v1419, %v1415
        %v1500 = vpack.c.b16 %v1424, %v1420
        %v1501 = vpack.c.b16 %v1425, %v1421
        %v1502 = vpack.c.b16 %v1426, %v1422
        %v1503 = vpack.c.b16 %v1427, %v1423
        %v1504 = vpack.c.b16 %v1432, %v1428
        %v1505 = vpack.c.b16 %v1433, %v1429
        %v1506 = vpack.c.b16 %v1434, %v1430
        %v1507 = vpack.c.b16 %v1435, %v1431
        %v1508 = vpack.c.b16 %v1440, %v1436
        %v1509 = vpack.c.b16 %v1441, %v1437
        %v1510 = vpack.c.b16 %v1442, %v1438
        %v1511 = vpack.c.b16 %v1443, %v1439
        %v1512 = vpack.c.b16 %v1448, %v1444
        %v1513 = vpack.c.b16 %v1449, %v1445
        %v1514 = vpack.c.b16 %v1450, %v1446
        %v1515 = vpack.c.b16 %v1451, %v1447
        %1580 = vmatprep.subr.bf16.mxu0 %v1481
        %1581 = vmatpush1.bf16.msra.mxu0 %v1480
        %1582 = vmatprep.subr.bf16.mxu0 %v1477
        %1583 = vmatpush1.bf16.msra.mxu0 %v1476
        %1584 = vmatprep.subr.bf16.mxu0 %v1473
        %1585 = vmatpush1.bf16.msra.mxu0 %v1472
        %1586 = vmatprep.subr.bf16.mxu0 %v1469
        %1587 = vmatpush1.bf16.msra.mxu0 %v1468
        %1588 = vmatprep.subr.bf16.mxu0 %v1465
        %1589 = vmatpush1.bf16.msra.mxu0 %v1464
        %1590 = vmatprep.subr.bf16.mxu0 %v1461
        %1591 = vmatpush1.bf16.msra.mxu0 %v1460
        %1592 = vmatprep.subr.bf16.mxu0 %v1457
        %1593 = vmatpush1.bf16.msra.mxu0 %v1456
        %1594 = vmatprep.subr.bf16.mxu0 %v1453
        %1595 = vmatpush1.bf16.msra.mxu0 %v1452
        %1596 = vmatprep.subr.bf16.mxu0 %v1513
        %1597 = vmatpush2.bf16.msra.mxu0 %v1512
        %1598 = vmatprep.subr.bf16.mxu0 %v1509
        %1599 = vmatpush2.bf16.msra.mxu0 %v1508
        %1600 = vmatprep.subr.bf16.mxu0 %v1505
        %1601 = vmatpush2.bf16.msra.mxu0 %v1504
        %1602 = vmatprep.subr.bf16.mxu0 %v1501
        %1603 = vmatpush2.bf16.msra.mxu0 %v1500
        %1604 = vmatprep.subr.bf16.mxu0 %v1497
        %1605 = vmatpush2.bf16.msra.mxu0 %v1496
        %1606 = vmatprep.subr.bf16.mxu0 %v1493
        %1607 = vmatpush2.bf16.msra.mxu0 %v1492
        %1608 = vmatprep.subr.bf16.mxu0 %v1489
        %1609 = vmatpush2.bf16.msra.mxu0 %v1488
        %1610 = vmatprep.subr.bf16.mxu0 %v1485
        %1611 = vmatpush2.bf16.msra.mxu0 %v1484
        %1612 = vmatprep.mubr.bf16.mxu0 %v1257
        %1613 = vmatmul.mubr.bf16.gmra.mxu0 %v1256
        %v1614 = vpop.f32.mrf.mxu0
        %v1615 = vadd.f32 0.0, %v1614
        %v1616 = vpop.f32.mrf.mxu0
        %v1617 = vadd.f32 0.0, %v1616
        %v1618 = vpop.f32.mrf.mxu0
        %v1619 = vadd.f32 0.0, %v1618
        %v1620 = vpop.f32.mrf.mxu0
        %v1621 = vadd.f32 0.0, %v1620
        %1622 = vdwg.mxu0
        %1623 = vmatprep.subr.bf16.mxu0 %v1483
        %1624 = vmatpush1.bf16.msra.mxu0 %v1482
        %1625 = vmatprep.subr.bf16.mxu0 %v1479
        %1626 = vmatpush1.bf16.msra.mxu0 %v1478
        %1627 = vmatprep.subr.bf16.mxu0 %v1475
        %1628 = vmatpush1.bf16.msra.mxu0 %v1474
        %1629 = vmatprep.subr.bf16.mxu0 %v1471
        %1630 = vmatpush1.bf16.msra.mxu0 %v1470
        %1631 = vmatprep.subr.bf16.mxu0 %v1467
        %1632 = vmatpush1.bf16.msra.mxu0 %v1466
        %1633 = vmatprep.subr.bf16.mxu0 %v1463
        %1634 = vmatpush1.bf16.msra.mxu0 %v1462
        %1635 = vmatprep.subr.bf16.mxu0 %v1459
        %1636 = vmatpush1.bf16.msra.mxu0 %v1458
        %1637 = vmatprep.subr.bf16.mxu0 %v1455
        %1638 = vmatpush1.bf16.msra.mxu0 %v1454
        %1639 = vmatprep.subr.bf16.mxu0 %v1515
        %1640 = vmatpush2.bf16.msra.mxu0 %v1514
        %1641 = vmatprep.subr.bf16.mxu0 %v1511
        %1642 = vmatpush2.bf16.msra.mxu0 %v1510
        %1643 = vmatprep.subr.bf16.mxu0 %v1507
        %1644 = vmatpush2.bf16.msra.mxu0 %v1506
        %1645 = vmatprep.subr.bf16.mxu0 %v1503
        %1646 = vmatpush2.bf16.msra.mxu0 %v1502
        %1647 = vmatprep.subr.bf16.mxu0 %v1499
        %1648 = vmatpush2.bf16.msra.mxu0 %v1498
        %1649 = vmatprep.subr.bf16.mxu0 %v1495
        %1650 = vmatpush2.bf16.msra.mxu0 %v1494
        %1651 = vmatprep.subr.bf16.mxu0 %v1491
        %1652 = vmatpush2.bf16.msra.mxu0 %v1490
        %1653 = vmatprep.subr.bf16.mxu0 %v1487
        %1654 = vmatpush2.bf16.msra.mxu0 %v1486
        %1655 = vmatprep.mubr.bf16.mxu0 %v1257
        %1656 = vmatmul.mubr.bf16.gmra.mxu0 %v1256
        %v1657 = vpop.f32.mrf.mxu0
        %v1658 = vadd.f32 0.0, %v1657
        %v1659 = vpop.f32.mrf.mxu0
        %v1660 = vadd.f32 0.0, %v1659
        %v1661 = vpop.f32.mrf.mxu0
        %v1662 = vadd.f32 0.0, %v1661
        %v1663 = vpop.f32.mrf.mxu0
        %v1664 = vadd.f32 0.0, %v1663
        %1665 = vdwg.mxu0
        %v1666 = vadd.f32 %v1141, %v1615
        %v1667 = vadd.f32 %v1143, %v1617
        %v1668 = vadd.f32 %v1184, %v1658
        %v1669 = vadd.f32 %v1186, %v1660
        %v1670 = vadd.f32 %v1145, %v1619
        %v1671 = vadd.f32 %v1147, %v1621
        %v1672 = vadd.f32 %v1188, %v1662
        %v1673 = vadd.f32 %v1190, %v1664
        %v1674 = vld [vmem:[%s1 + $0x600] sm:$0xff]
        %v1675 = vld [vmem:[%s1 + $0x608] sm:$0xff]
        %v1676 = vld [vmem:[%s1 + $0x610] sm:$0xff]
        %v1677 = vld [vmem:[%s1 + $0x618] sm:$0xff]
        %v1678 = vld [vmem:[%s1 + $0x620] sm:$0xff]
        %v1679 = vld [vmem:[%s1 + $0x628] sm:$0xff]
        %v1680 = vld [vmem:[%s1 + $0x630] sm:$0xff]
        %v1681 = vld [vmem:[%s1 + $0x638] sm:$0xff]
        %v1682 = vld [vmem:[%s1 + $0x640] sm:$0xff]
        %v1683 = vld [vmem:[%s1 + $0x648] sm:$0xff]
        %v1684 = vld [vmem:[%s1 + $0x650] sm:$0xff]
        %v1685 = vld [vmem:[%s1 + $0x658] sm:$0xff]
        %v1686 = vld [vmem:[%s1 + $0x660] sm:$0xff]
        %v1687 = vld [vmem:[%s1 + $0x668] sm:$0xff]
        %v1688 = vld [vmem:[%s1 + $0x670] sm:$0xff]
        %v1689 = vld [vmem:[%s1 + $0x678] sm:$0xff]
        %v1690 = vld [vmem:[%s1 + $0x680] sm:$0xff]
        %v1691 = vld [vmem:[%s1 + $0x688] sm:$0xff]
        %v1692 = vld [vmem:[%s1 + $0x690] sm:$0xff]
        %v1693 = vld [vmem:[%s1 + $0x698] sm:$0xff]
        %v1694 = vld [vmem:[%s1 + $0x6a0] sm:$0xff]
        %v1695 = vld [vmem:[%s1 + $0x6a8] sm:$0xff]
        %v1696 = vld [vmem:[%s1 + $0x6b0] sm:$0xff]
        %v1697 = vld [vmem:[%s1 + $0x6b8] sm:$0xff]
        %v1698 = vld [vmem:[%s1 + $0x6c0] sm:$0xff]
        %v1699 = vld [vmem:[%s1 + $0x6c8] sm:$0xff]
        %v1700 = vld [vmem:[%s1 + $0x6d0] sm:$0xff]
        %v1701 = vld [vmem:[%s1 + $0x6d8] sm:$0xff]
        %v1702 = vld [vmem:[%s1 + $0x6e0] sm:$0xff]
        %v1703 = vld [vmem:[%s1 + $0x6e8] sm:$0xff]
        %v1704 = vld [vmem:[%s1 + $0x6f0] sm:$0xff]
        %v1705 = vld [vmem:[%s1 + $0x6f8] sm:$0xff]
        %v1706 = vld [vmem:[%s1 + $0x700] sm:$0xff]
        %v1707 = vld [vmem:[%s1 + $0x708] sm:$0xff]
        %v1708 = vld [vmem:[%s1 + $0x710] sm:$0xff]
        %v1709 = vld [vmem:[%s1 + $0x718] sm:$0xff]
        %v1710 = vld [vmem:[%s1 + $0x720] sm:$0xff]
        %v1711 = vld [vmem:[%s1 + $0x728] sm:$0xff]
        %v1712 = vld [vmem:[%s1 + $0x730] sm:$0xff]
        %v1713 = vld [vmem:[%s1 + $0x738] sm:$0xff]
        %v1714 = vld [vmem:[%s1 + $0x740] sm:$0xff]
        %v1715 = vld [vmem:[%s1 + $0x748] sm:$0xff]
        %v1716 = vld [vmem:[%s1 + $0x750] sm:$0xff]
        %v1717 = vld [vmem:[%s1 + $0x758] sm:$0xff]
        %v1718 = vld [vmem:[%s1 + $0x760] sm:$0xff]
        %v1719 = vld [vmem:[%s1 + $0x768] sm:$0xff]
        %v1720 = vld [vmem:[%s1 + $0x770] sm:$0xff]
        %v1721 = vld [vmem:[%s1 + $0x778] sm:$0xff]
        %v1722 = vld [vmem:[%s1 + $0x780] sm:$0xff]
        %v1723 = vld [vmem:[%s1 + $0x788] sm:$0xff]
        %v1724 = vld [vmem:[%s1 + $0x790] sm:$0xff]
        %v1725 = vld [vmem:[%s1 + $0x798] sm:$0xff]
        %v1726 = vld [vmem:[%s1 + $0x7a0] sm:$0xff]
        %v1727 = vld [vmem:[%s1 + $0x7a8] sm:$0xff]
        %v1728 = vld [vmem:[%s1 + $0x7b0] sm:$0xff]
        %v1729 = vld [vmem:[%s1 + $0x7b8] sm:$0xff]
        %v1730 = vld [vmem:[%s1 + $0x7c0] sm:$0xff]
        %v1731 = vld [vmem:[%s1 + $0x7c8] sm:$0xff]
        %v1732 = vld [vmem:[%s1 + $0x7d0] sm:$0xff]
        %v1733 = vld [vmem:[%s1 + $0x7d8] sm:$0xff]
        %v1734 = vld [vmem:[%s1 + $0x7e0] sm:$0xff]
        %v1735 = vld [vmem:[%s1 + $0x7e8] sm:$0xff]
        %v1736 = vld [vmem:[%s1 + $0x7f0] sm:$0xff]
        %v1737 = vld [vmem:[%s1 + $0x7f8] sm:$0xff]
        %v1739 = vunpack.c.l.b16 %v225
        %v1740 = vunpack.c.h.b16 %v225
        %v1741 = vpack.c.b16 %v1739, %v1739
        %v1742 = vpack.c.b16 %v1740, %v1740
        %vm1743 = vsmask.f32 6400
        %v1744 = vrot.slane %v363, 1
        %v1745 = vrot.slane %v365, 2
        %v1746 = vor.u32 %v1744, %v1745
        %v1748 = vshll.u32 %v1741, 16
        %v1750 = vrot.slane %v1748, 2
        %v1751 = vsel %vm1743, %v1746, %v1750
        %v1752 = vrot.slane %v370, 1
        %v1753 = vrot.slane %v372, 2
        %v1754 = vor.u32 %v1752, %v1753
        %v1756 = vshll.u32 %v1742, 16
        %v1758 = vrot.slane %v1756, 2
        %v1759 = vsel %vm1743, %v1754, %v1758
        %v1826 = vunpack.c.l.b16 %v1674
        %v1827 = vunpack.c.h.b16 %v1674
        %v1828 = vunpack.c.l.b16 %v1675
        %v1829 = vunpack.c.h.b16 %v1675
        %v1830 = vunpack.c.l.b16 %v1676
        %v1831 = vunpack.c.h.b16 %v1676
        %v1832 = vunpack.c.l.b16 %v1677
        %v1833 = vunpack.c.h.b16 %v1677
        %v1834 = vunpack.c.l.b16 %v1678
        %v1835 = vunpack.c.h.b16 %v1678
        %v1836 = vunpack.c.l.b16 %v1679
        %v1837 = vunpack.c.h.b16 %v1679
        %v1838 = vunpack.c.l.b16 %v1680
        %v1839 = vunpack.c.h.b16 %v1680
        %v1840 = vunpack.c.l.b16 %v1681
        %v1841 = vunpack.c.h.b16 %v1681
        %v1842 = vunpack.c.l.b16 %v1682
        %v1843 = vunpack.c.h.b16 %v1682
        %v1844 = vunpack.c.l.b16 %v1683
        %v1845 = vunpack.c.h.b16 %v1683
        %v1846 = vunpack.c.l.b16 %v1684
        %v1847 = vunpack.c.h.b16 %v1684
        %v1848 = vunpack.c.l.b16 %v1685
        %v1849 = vunpack.c.h.b16 %v1685
        %v1850 = vunpack.c.l.b16 %v1686
        %v1851 = vunpack.c.h.b16 %v1686
        %v1852 = vunpack.c.l.b16 %v1687
        %v1853 = vunpack.c.h.b16 %v1687
        %v1854 = vunpack.c.l.b16 %v1688
        %v1855 = vunpack.c.h.b16 %v1688
        %v1856 = vunpack.c.l.b16 %v1689
        %v1857 = vunpack.c.h.b16 %v1689
        %v1858 = vunpack.c.l.b16 %v1690
        %v1859 = vunpack.c.h.b16 %v1690
        %v1860 = vunpack.c.l.b16 %v1691
        %v1861 = vunpack.c.h.b16 %v1691
        %v1862 = vunpack.c.l.b16 %v1692
        %v1863 = vunpack.c.h.b16 %v1692
        %v1864 = vunpack.c.l.b16 %v1693
        %v1865 = vunpack.c.h.b16 %v1693
        %v1866 = vunpack.c.l.b16 %v1694
        %v1867 = vunpack.c.h.b16 %v1694
        %v1868 = vunpack.c.l.b16 %v1695
        %v1869 = vunpack.c.h.b16 %v1695
        %v1870 = vunpack.c.l.b16 %v1696
        %v1871 = vunpack.c.h.b16 %v1696
        %v1872 = vunpack.c.l.b16 %v1697
        %v1873 = vunpack.c.h.b16 %v1697
        %v1874 = vunpack.c.l.b16 %v1698
        %v1875 = vunpack.c.h.b16 %v1698
        %v1876 = vunpack.c.l.b16 %v1699
        %v1877 = vunpack.c.h.b16 %v1699
        %v1878 = vunpack.c.l.b16 %v1700
        %v1879 = vunpack.c.h.b16 %v1700
        %v1880 = vunpack.c.l.b16 %v1701
        %v1881 = vunpack.c.h.b16 %v1701
        %v1882 = vunpack.c.l.b16 %v1702
        %v1883 = vunpack.c.h.b16 %v1702
        %v1884 = vunpack.c.l.b16 %v1703
        %v1885 = vunpack.c.h.b16 %v1703
        %v1886 = vunpack.c.l.b16 %v1704
        %v1887 = vunpack.c.h.b16 %v1704
        %v1888 = vunpack.c.l.b16 %v1705
        %v1889 = vunpack.c.h.b16 %v1705
        %v1890 = vunpack.c.l.b16 %v1706
        %v1891 = vunpack.c.h.b16 %v1706
        %v1892 = vunpack.c.l.b16 %v1707
        %v1893 = vunpack.c.h.b16 %v1707
        %v1894 = vunpack.c.l.b16 %v1708
        %v1895 = vunpack.c.h.b16 %v1708
        %v1896 = vunpack.c.l.b16 %v1709
        %v1897 = vunpack.c.h.b16 %v1709
        %v1898 = vunpack.c.l.b16 %v1710
        %v1899 = vunpack.c.h.b16 %v1710
        %v1900 = vunpack.c.l.b16 %v1711
        %v1901 = vunpack.c.h.b16 %v1711
        %v1902 = vunpack.c.l.b16 %v1712
        %v1903 = vunpack.c.h.b16 %v1712
        %v1904 = vunpack.c.l.b16 %v1713
        %v1905 = vunpack.c.h.b16 %v1713
        %v1906 = vunpack.c.l.b16 %v1714
        %v1907 = vunpack.c.h.b16 %v1714
        %v1908 = vunpack.c.l.b16 %v1715
        %v1909 = vunpack.c.h.b16 %v1715
        %v1910 = vunpack.c.l.b16 %v1716
        %v1911 = vunpack.c.h.b16 %v1716
        %v1912 = vunpack.c.l.b16 %v1717
        %v1913 = vunpack.c.h.b16 %v1717
        %v1914 = vunpack.c.l.b16 %v1718
        %v1915 = vunpack.c.h.b16 %v1718
        %v1916 = vunpack.c.l.b16 %v1719
        %v1917 = vunpack.c.h.b16 %v1719
        %v1918 = vunpack.c.l.b16 %v1720
        %v1919 = vunpack.c.h.b16 %v1720
        %v1920 = vunpack.c.l.b16 %v1721
        %v1921 = vunpack.c.h.b16 %v1721
        %v1922 = vunpack.c.l.b16 %v1722
        %v1923 = vunpack.c.h.b16 %v1722
        %v1924 = vunpack.c.l.b16 %v1723
        %v1925 = vunpack.c.h.b16 %v1723
        %v1926 = vunpack.c.l.b16 %v1724
        %v1927 = vunpack.c.h.b16 %v1724
        %v1928 = vunpack.c.l.b16 %v1725
        %v1929 = vunpack.c.h.b16 %v1725
        %v1930 = vunpack.c.l.b16 %v1726
        %v1931 = vunpack.c.h.b16 %v1726
        %v1932 = vunpack.c.l.b16 %v1727
        %v1933 = vunpack.c.h.b16 %v1727
        %v1934 = vunpack.c.l.b16 %v1728
        %v1935 = vunpack.c.h.b16 %v1728
        %v1936 = vunpack.c.l.b16 %v1729
        %v1937 = vunpack.c.h.b16 %v1729
        %v1938 = vunpack.c.l.b16 %v1730
        %v1939 = vunpack.c.h.b16 %v1730
        %v1940 = vunpack.c.l.b16 %v1731
        %v1941 = vunpack.c.h.b16 %v1731
        %v1942 = vunpack.c.l.b16 %v1732
        %v1943 = vunpack.c.h.b16 %v1732
        %v1944 = vunpack.c.l.b16 %v1733
        %v1945 = vunpack.c.h.b16 %v1733
        %v1946 = vunpack.c.l.b16 %v1734
        %v1947 = vunpack.c.h.b16 %v1734
        %v1948 = vunpack.c.l.b16 %v1735
        %v1949 = vunpack.c.h.b16 %v1735
        %v1950 = vunpack.c.l.b16 %v1736
        %v1951 = vunpack.c.h.b16 %v1736
        %v1952 = vunpack.c.l.b16 %v1737
        %v1953 = vunpack.c.h.b16 %v1737
        %v1954 = vpack.c.b16 %v1830, %v1826
        %v1955 = vpack.c.b16 %v1831, %v1827
        %v1956 = vpack.c.b16 %v1832, %v1828
        %v1957 = vpack.c.b16 %v1833, %v1829
        %v1958 = vpack.c.b16 %v1838, %v1834
        %v1959 = vpack.c.b16 %v1839, %v1835
        %v1960 = vpack.c.b16 %v1840, %v1836
        %v1961 = vpack.c.b16 %v1841, %v1837
        %v1962 = vpack.c.b16 %v1846, %v1842
        %v1963 = vpack.c.b16 %v1847, %v1843
        %v1964 = vpack.c.b16 %v1848, %v1844
        %v1965 = vpack.c.b16 %v1849, %v1845
        %v1966 = vpack.c.b16 %v1854, %v1850
        %v1967 = vpack.c.b16 %v1855, %v1851
        %v1968 = vpack.c.b16 %v1856, %v1852
        %v1969 = vpack.c.b16 %v1857, %v1853
        %v1970 = vpack.c.b16 %v1862, %v1858
        %v1971 = vpack.c.b16 %v1863, %v1859
        %v1972 = vpack.c.b16 %v1864, %v1860
        %v1973 = vpack.c.b16 %v1865, %v1861
        %v1974 = vpack.c.b16 %v1870, %v1866
        %v1975 = vpack.c.b16 %v1871, %v1867
        %v1976 = vpack.c.b16 %v1872, %v1868
        %v1977 = vpack.c.b16 %v1873, %v1869
        %v1978 = vpack.c.b16 %v1878, %v1874
        %v1979 = vpack.c.b16 %v1879, %v1875
        %v1980 = vpack.c.b16 %v1880, %v1876
        %v1981 = vpack.c.b16 %v1881, %v1877
        %v1982 = vpack.c.b16 %v1886, %v1882
        %v1983 = vpack.c.b16 %v1887, %v1883
        %v1984 = vpack.c.b16 %v1888, %v1884
        %v1985 = vpack.c.b16 %v1889, %v1885
        %v1986 = vpack.c.b16 %v1894, %v1890
        %v1987 = vpack.c.b16 %v1895, %v1891
        %v1988 = vpack.c.b16 %v1896, %v1892
        %v1989 = vpack.c.b16 %v1897, %v1893
        %v1990 = vpack.c.b16 %v1902, %v1898
        %v1991 = vpack.c.b16 %v1903, %v1899
        %v1992 = vpack.c.b16 %v1904, %v1900
        %v1993 = vpack.c.b16 %v1905, %v1901
        %v1994 = vpack.c.b16 %v1910, %v1906
        %v1995 = vpack.c.b16 %v1911, %v1907
        %v1996 = vpack.c.b16 %v1912, %v1908
        %v1997 = vpack.c.b16 %v1913, %v1909
        %v1998 = vpack.c.b16 %v1918, %v1914
        %v1999 = vpack.c.b16 %v1919, %v1915
        %v2000 = vpack.c.b16 %v1920, %v1916
        %v2001 = vpack.c.b16 %v1921, %v1917
        %v2002 = vpack.c.b16 %v1926, %v1922
        %v2003 = vpack.c.b16 %v1927, %v1923
        %v2004 = vpack.c.b16 %v1928, %v1924
        %v2005 = vpack.c.b16 %v1929, %v1925
        %v2006 = vpack.c.b16 %v1934, %v1930
        %v2007 = vpack.c.b16 %v1935, %v1931
        %v2008 = vpack.c.b16 %v1936, %v1932
        %v2009 = vpack.c.b16 %v1937, %v1933
        %v2010 = vpack.c.b16 %v1942, %v1938
        %v2011 = vpack.c.b16 %v1943, %v1939
        %v2012 = vpack.c.b16 %v1944, %v1940
        %v2013 = vpack.c.b16 %v1945, %v1941
        %v2014 = vpack.c.b16 %v1950, %v1946
        %v2015 = vpack.c.b16 %v1951, %v1947
        %v2016 = vpack.c.b16 %v1952, %v1948
        %v2017 = vpack.c.b16 %v1953, %v1949
        %2082 = vmatprep.subr.bf16.mxu0 %v1983
        %2083 = vmatpush1.bf16.msra.mxu0 %v1982
        %2084 = vmatprep.subr.bf16.mxu0 %v1979
        %2085 = vmatpush1.bf16.msra.mxu0 %v1978
        %2086 = vmatprep.subr.bf16.mxu0 %v1975
        %2087 = vmatpush1.bf16.msra.mxu0 %v1974
        %2088 = vmatprep.subr.bf16.mxu0 %v1971
        %2089 = vmatpush1.bf16.msra.mxu0 %v1970
        %2090 = vmatprep.subr.bf16.mxu0 %v1967
        %2091 = vmatpush1.bf16.msra.mxu0 %v1966
        %2092 = vmatprep.subr.bf16.mxu0 %v1963
        %2093 = vmatpush1.bf16.msra.mxu0 %v1962
        %2094 = vmatprep.subr.bf16.mxu0 %v1959
        %2095 = vmatpush1.bf16.msra.mxu0 %v1958
        %2096 = vmatprep.subr.bf16.mxu0 %v1955
        %2097 = vmatpush1.bf16.msra.mxu0 %v1954
        %2098 = vmatprep.subr.bf16.mxu0 %v2015
        %2099 = vmatpush2.bf16.msra.mxu0 %v2014
        %2100 = vmatprep.subr.bf16.mxu0 %v2011
        %2101 = vmatpush2.bf16.msra.mxu0 %v2010
        %2102 = vmatprep.subr.bf16.mxu0 %v2007
        %2103 = vmatpush2.bf16.msra.mxu0 %v2006
        %2104 = vmatprep.subr.bf16.mxu0 %v2003
        %2105 = vmatpush2.bf16.msra.mxu0 %v2002
        %2106 = vmatprep.subr.bf16.mxu0 %v1999
        %2107 = vmatpush2.bf16.msra.mxu0 %v1998
        %2108 = vmatprep.subr.bf16.mxu0 %v1995
        %2109 = vmatpush2.bf16.msra.mxu0 %v1994
        %2110 = vmatprep.subr.bf16.mxu0 %v1991
        %2111 = vmatpush2.bf16.msra.mxu0 %v1990
        %2112 = vmatprep.subr.bf16.mxu0 %v1987
        %2113 = vmatpush2.bf16.msra.mxu0 %v1986
        %2114 = vmatprep.mubr.bf16.mxu0 %v1759
        %2115 = vmatmul.mubr.bf16.gmra.mxu0 %v1751
        %v2116 = vpop.f32.mrf.mxu0
        %v2117 = vadd.f32 0.0, %v2116
        %v2118 = vpop.f32.mrf.mxu0
        %v2119 = vadd.f32 0.0, %v2118
        %v2120 = vpop.f32.mrf.mxu0
        %v2121 = vadd.f32 0.0, %v2120
        %v2122 = vpop.f32.mrf.mxu0
        %v2123 = vadd.f32 0.0, %v2122
        %2124 = vdwg.mxu0
        %2125 = vmatprep.subr.bf16.mxu0 %v1985
        %2126 = vmatpush1.bf16.msra.mxu0 %v1984
        %2127 = vmatprep.subr.bf16.mxu0 %v1981
        %2128 = vmatpush1.bf16.msra.mxu0 %v1980
        %2129 = vmatprep.subr.bf16.mxu0 %v1977
        %2130 = vmatpush1.bf16.msra.mxu0 %v1976
        %2131 = vmatprep.subr.bf16.mxu0 %v1973
        %2132 = vmatpush1.bf16.msra.mxu0 %v1972
        %2133 = vmatprep.subr.bf16.mxu0 %v1969
        %2134 = vmatpush1.bf16.msra.mxu0 %v1968
        %2135 = vmatprep.subr.bf16.mxu0 %v1965
        %2136 = vmatpush1.bf16.msra.mxu0 %v1964
        %2137 = vmatprep.subr.bf16.mxu0 %v1961
        %2138 = vmatpush1.bf16.msra.mxu0 %v1960
        %2139 = vmatprep.subr.bf16.mxu0 %v1957
        %2140 = vmatpush1.bf16.msra.mxu0 %v1956
        %2141 = vmatprep.subr.bf16.mxu0 %v2017
        %2142 = vmatpush2.bf16.msra.mxu0 %v2016
        %2143 = vmatprep.subr.bf16.mxu0 %v2013
        %2144 = vmatpush2.bf16.msra.mxu0 %v2012
        %2145 = vmatprep.subr.bf16.mxu0 %v2009
        %2146 = vmatpush2.bf16.msra.mxu0 %v2008
        %2147 = vmatprep.subr.bf16.mxu0 %v2005
        %2148 = vmatpush2.bf16.msra.mxu0 %v2004
        %2149 = vmatprep.subr.bf16.mxu0 %v2001
        %2150 = vmatpush2.bf16.msra.mxu0 %v2000
        %2151 = vmatprep.subr.bf16.mxu0 %v1997
        %2152 = vmatpush2.bf16.msra.mxu0 %v1996
        %2153 = vmatprep.subr.bf16.mxu0 %v1993
        %2154 = vmatpush2.bf16.msra.mxu0 %v1992
        %2155 = vmatprep.subr.bf16.mxu0 %v1989
        %2156 = vmatpush2.bf16.msra.mxu0 %v1988
        %2157 = vmatprep.mubr.bf16.mxu0 %v1759
        %2158 = vmatmul.mubr.bf16.gmra.mxu0 %v1751
        %v2159 = vpop.f32.mrf.mxu0
        %v2160 = vadd.f32 0.0, %v2159
        %v2161 = vpop.f32.mrf.mxu0
        %v2162 = vadd.f32 0.0, %v2161
        %v2163 = vpop.f32.mrf.mxu0
        %v2164 = vadd.f32 0.0, %v2163
        %v2165 = vpop.f32.mrf.mxu0
        %v2166 = vadd.f32 0.0, %v2165
        %2167 = vdwg.mxu0
        %v2168 = vadd.f32 %v1666, %v2117
        %v2169 = vadd.f32 %v1667, %v2119
        %v2170 = vadd.f32 %v1668, %v2160
        %v2171 = vadd.f32 %v1669, %v2162
        %v2172 = vadd.f32 %v1670, %v2121
        %v2173 = vadd.f32 %v1671, %v2123
        %v2174 = vadd.f32 %v1672, %v2164
        %v2175 = vadd.f32 %v1673, %v2166
        %v2176 = vld [vmem:[%s1 + $0x800] sm:$0xff]
        %v2177 = vld [vmem:[%s1 + $0x808] sm:$0xff]
        %v2178 = vld [vmem:[%s1 + $0x810] sm:$0xff]
        %v2179 = vld [vmem:[%s1 + $0x818] sm:$0xff]
        %v2180 = vld [vmem:[%s1 + $0x820] sm:$0xff]
        %v2181 = vld [vmem:[%s1 + $0x828] sm:$0xff]
        %v2182 = vld [vmem:[%s1 + $0x830] sm:$0xff]
        %v2183 = vld [vmem:[%s1 + $0x838] sm:$0xff]
        %v2184 = vld [vmem:[%s1 + $0x840] sm:$0xff]
        %v2185 = vld [vmem:[%s1 + $0x848] sm:$0xff]
        %v2186 = vld [vmem:[%s1 + $0x850] sm:$0xff]
        %v2187 = vld [vmem:[%s1 + $0x858] sm:$0xff]
        %v2188 = vld [vmem:[%s1 + $0x860] sm:$0xff]
        %v2189 = vld [vmem:[%s1 + $0x868] sm:$0xff]
        %v2190 = vld [vmem:[%s1 + $0x870] sm:$0xff]
        %v2191 = vld [vmem:[%s1 + $0x878] sm:$0xff]
        %v2192 = vld [vmem:[%s1 + $0x880] sm:$0xff]
        %v2193 = vld [vmem:[%s1 + $0x888] sm:$0xff]
        %v2194 = vld [vmem:[%s1 + $0x890] sm:$0xff]
        %v2195 = vld [vmem:[%s1 + $0x898] sm:$0xff]
        %v2196 = vld [vmem:[%s1 + $0x8a0] sm:$0xff]
        %v2197 = vld [vmem:[%s1 + $0x8a8] sm:$0xff]
        %v2198 = vld [vmem:[%s1 + $0x8b0] sm:$0xff]
        %v2199 = vld [vmem:[%s1 + $0x8b8] sm:$0xff]
        %v2200 = vld [vmem:[%s1 + $0x8c0] sm:$0xff]
        %v2201 = vld [vmem:[%s1 + $0x8c8] sm:$0xff]
        %v2202 = vld [vmem:[%s1 + $0x8d0] sm:$0xff]
        %v2203 = vld [vmem:[%s1 + $0x8d8] sm:$0xff]
        %v2204 = vld [vmem:[%s1 + $0x8e0] sm:$0xff]
        %v2205 = vld [vmem:[%s1 + $0x8e8] sm:$0xff]
        %v2206 = vld [vmem:[%s1 + $0x8f0] sm:$0xff]
        %v2207 = vld [vmem:[%s1 + $0x8f8] sm:$0xff]
        %v2208 = vld [vmem:[%s1 + $0x900] sm:$0xff]
        %v2209 = vld [vmem:[%s1 + $0x908] sm:$0xff]
        %v2210 = vld [vmem:[%s1 + $0x910] sm:$0xff]
        %v2211 = vld [vmem:[%s1 + $0x918] sm:$0xff]
        %v2212 = vld [vmem:[%s1 + $0x920] sm:$0xff]
        %v2213 = vld [vmem:[%s1 + $0x928] sm:$0xff]
        %v2214 = vld [vmem:[%s1 + $0x930] sm:$0xff]
        %v2215 = vld [vmem:[%s1 + $0x938] sm:$0xff]
        %v2216 = vld [vmem:[%s1 + $0x940] sm:$0xff]
        %v2217 = vld [vmem:[%s1 + $0x948] sm:$0xff]
        %v2218 = vld [vmem:[%s1 + $0x950] sm:$0xff]
        %v2219 = vld [vmem:[%s1 + $0x958] sm:$0xff]
        %v2220 = vld [vmem:[%s1 + $0x960] sm:$0xff]
        %v2221 = vld [vmem:[%s1 + $0x968] sm:$0xff]
        %v2222 = vld [vmem:[%s1 + $0x970] sm:$0xff]
        %v2223 = vld [vmem:[%s1 + $0x978] sm:$0xff]
        %v2224 = vld [vmem:[%s1 + $0x980] sm:$0xff]
        %v2225 = vld [vmem:[%s1 + $0x988] sm:$0xff]
        %v2226 = vld [vmem:[%s1 + $0x990] sm:$0xff]
        %v2227 = vld [vmem:[%s1 + $0x998] sm:$0xff]
        %v2228 = vld [vmem:[%s1 + $0x9a0] sm:$0xff]
        %v2229 = vld [vmem:[%s1 + $0x9a8] sm:$0xff]
        %v2230 = vld [vmem:[%s1 + $0x9b0] sm:$0xff]
        %v2231 = vld [vmem:[%s1 + $0x9b8] sm:$0xff]
        %v2232 = vld [vmem:[%s1 + $0x9c0] sm:$0xff]
        %v2233 = vld [vmem:[%s1 + $0x9c8] sm:$0xff]
        %v2234 = vld [vmem:[%s1 + $0x9d0] sm:$0xff]
        %v2235 = vld [vmem:[%s1 + $0x9d8] sm:$0xff]
        %v2236 = vld [vmem:[%s1 + $0x9e0] sm:$0xff]
        %v2237 = vld [vmem:[%s1 + $0x9e8] sm:$0xff]
        %v2238 = vld [vmem:[%s1 + $0x9f0] sm:$0xff]
        %v2239 = vld [vmem:[%s1 + $0x9f8] sm:$0xff]
        %vm2240 = vcmask 1045504
        %v2241 = vrot.slane %v360, 2
        %v2242 = vrot.slane %v1741, 2
        %v2243 = vsel %vm2240, %v2241, %v2242
        %v2244 = vrot.slane %v361, 2
        %v2245 = vrot.slane %v1742, 2
        %v2246 = vsel %vm2240, %v2244, %v2245
        %v2313 = vunpack.c.l.b16 %v2176
        %v2314 = vunpack.c.h.b16 %v2176
        %v2315 = vunpack.c.l.b16 %v2177
        %v2316 = vunpack.c.h.b16 %v2177
        %v2317 = vunpack.c.l.b16 %v2178
        %v2318 = vunpack.c.h.b16 %v2178
        %v2319 = vunpack.c.l.b16 %v2179
        %v2320 = vunpack.c.h.b16 %v2179
        %v2321 = vunpack.c.l.b16 %v2180
        %v2322 = vunpack.c.h.b16 %v2180
        %v2323 = vunpack.c.l.b16 %v2181
        %v2324 = vunpack.c.h.b16 %v2181
        %v2325 = vunpack.c.l.b16 %v2182
        %v2326 = vunpack.c.h.b16 %v2182
        %v2327 = vunpack.c.l.b16 %v2183
        %v2328 = vunpack.c.h.b16 %v2183
        %v2329 = vunpack.c.l.b16 %v2184
        %v2330 = vunpack.c.h.b16 %v2184
        %v2331 = vunpack.c.l.b16 %v2185
        %v2332 = vunpack.c.h.b16 %v2185
        %v2333 = vunpack.c.l.b16 %v2186
        %v2334 = vunpack.c.h.b16 %v2186
        %v2335 = vunpack.c.l.b16 %v2187
        %v2336 = vunpack.c.h.b16 %v2187
        %v2337 = vunpack.c.l.b16 %v2188
        %v2338 = vunpack.c.h.b16 %v2188
        %v2339 = vunpack.c.l.b16 %v2189
        %v2340 = vunpack.c.h.b16 %v2189
        %v2341 = vunpack.c.l.b16 %v2190
        %v2342 = vunpack.c.h.b16 %v2190
        %v2343 = vunpack.c.l.b16 %v2191
        %v2344 = vunpack.c.h.b16 %v2191
        %v2345 = vunpack.c.l.b16 %v2192
        %v2346 = vunpack.c.h.b16 %v2192
        %v2347 = vunpack.c.l.b16 %v2193
        %v2348 = vunpack.c.h.b16 %v2193
        %v2349 = vunpack.c.l.b16 %v2194
        %v2350 = vunpack.c.h.b16 %v2194
        %v2351 = vunpack.c.l.b16 %v2195
        %v2352 = vunpack.c.h.b16 %v2195
        %v2353 = vunpack.c.l.b16 %v2196
        %v2354 = vunpack.c.h.b16 %v2196
        %v2355 = vunpack.c.l.b16 %v2197
        %v2356 = vunpack.c.h.b16 %v2197
        %v2357 = vunpack.c.l.b16 %v2198
        %v2358 = vunpack.c.h.b16 %v2198
        %v2359 = vunpack.c.l.b16 %v2199
        %v2360 = vunpack.c.h.b16 %v2199
        %v2361 = vunpack.c.l.b16 %v2200
        %v2362 = vunpack.c.h.b16 %v2200
        %v2363 = vunpack.c.l.b16 %v2201
        %v2364 = vunpack.c.h.b16 %v2201
        %v2365 = vunpack.c.l.b16 %v2202
        %v2366 = vunpack.c.h.b16 %v2202
        %v2367 = vunpack.c.l.b16 %v2203
        %v2368 = vunpack.c.h.b16 %v2203
        %v2369 = vunpack.c.l.b16 %v2204
        %v2370 = vunpack.c.h.b16 %v2204
        %v2371 = vunpack.c.l.b16 %v2205
        %v2372 = vunpack.c.h.b16 %v2205
        %v2373 = vunpack.c.l.b16 %v2206
        %v2374 = vunpack.c.h.b16 %v2206
        %v2375 = vunpack.c.l.b16 %v2207
        %v2376 = vunpack.c.h.b16 %v2207
        %v2377 = vunpack.c.l.b16 %v2208
        %v2378 = vunpack.c.h.b16 %v2208
        %v2379 = vunpack.c.l.b16 %v2209
        %v2380 = vunpack.c.h.b16 %v2209
        %v2381 = vunpack.c.l.b16 %v2210
        %v2382 = vunpack.c.h.b16 %v2210
        %v2383 = vunpack.c.l.b16 %v2211
        %v2384 = vunpack.c.h.b16 %v2211
        %v2385 = vunpack.c.l.b16 %v2212
        %v2386 = vunpack.c.h.b16 %v2212
        %v2387 = vunpack.c.l.b16 %v2213
        %v2388 = vunpack.c.h.b16 %v2213
        %v2389 = vunpack.c.l.b16 %v2214
        %v2390 = vunpack.c.h.b16 %v2214
        %v2391 = vunpack.c.l.b16 %v2215
        %v2392 = vunpack.c.h.b16 %v2215
        %v2393 = vunpack.c.l.b16 %v2216
        %v2394 = vunpack.c.h.b16 %v2216
        %v2395 = vunpack.c.l.b16 %v2217
        %v2396 = vunpack.c.h.b16 %v2217
        %v2397 = vunpack.c.l.b16 %v2218
        %v2398 = vunpack.c.h.b16 %v2218
        %v2399 = vunpack.c.l.b16 %v2219
        %v2400 = vunpack.c.h.b16 %v2219
        %v2401 = vunpack.c.l.b16 %v2220
        %v2402 = vunpack.c.h.b16 %v2220
        %v2403 = vunpack.c.l.b16 %v2221
        %v2404 = vunpack.c.h.b16 %v2221
        %v2405 = vunpack.c.l.b16 %v2222
        %v2406 = vunpack.c.h.b16 %v2222
        %v2407 = vunpack.c.l.b16 %v2223
        %v2408 = vunpack.c.h.b16 %v2223
        %v2409 = vunpack.c.l.b16 %v2224
        %v2410 = vunpack.c.h.b16 %v2224
        %v2411 = vunpack.c.l.b16 %v2225
        %v2412 = vunpack.c.h.b16 %v2225
        %v2413 = vunpack.c.l.b16 %v2226
        %v2414 = vunpack.c.h.b16 %v2226
        %v2415 = vunpack.c.l.b16 %v2227
        %v2416 = vunpack.c.h.b16 %v2227
        %v2417 = vunpack.c.l.b16 %v2228
        %v2418 = vunpack.c.h.b16 %v2228
        %v2419 = vunpack.c.l.b16 %v2229
        %v2420 = vunpack.c.h.b16 %v2229
        %v2421 = vunpack.c.l.b16 %v2230
        %v2422 = vunpack.c.h.b16 %v2230
        %v2423 = vunpack.c.l.b16 %v2231
        %v2424 = vunpack.c.h.b16 %v2231
        %v2425 = vunpack.c.l.b16 %v2232
        %v2426 = vunpack.c.h.b16 %v2232
        %v2427 = vunpack.c.l.b16 %v2233
        %v2428 = vunpack.c.h.b16 %v2233
        %v2429 = vunpack.c.l.b16 %v2234
        %v2430 = vunpack.c.h.b16 %v2234
        %v2431 = vunpack.c.l.b16 %v2235
        %v2432 = vunpack.c.h.b16 %v2235
        %v2433 = vunpack.c.l.b16 %v2236
        %v2434 = vunpack.c.h.b16 %v2236
        %v2435 = vunpack.c.l.b16 %v2237
        %v2436 = vunpack.c.h.b16 %v2237
        %v2437 = vunpack.c.l.b16 %v2238
        %v2438 = vunpack.c.h.b16 %v2238
        %v2439 = vunpack.c.l.b16 %v2239
        %v2440 = vunpack.c.h.b16 %v2239
        %v2441 = vpack.c.b16 %v2317, %v2313
        %v2442 = vpack.c.b16 %v2318, %v2314
        %v2443 = vpack.c.b16 %v2319, %v2315
        %v2444 = vpack.c.b16 %v2320, %v2316
        %v2445 = vpack.c.b16 %v2325, %v2321
        %v2446 = vpack.c.b16 %v2326, %v2322
        %v2447 = vpack.c.b16 %v2327, %v2323
        %v2448 = vpack.c.b16 %v2328, %v2324
        %v2449 = vpack.c.b16 %v2333, %v2329
        %v2450 = vpack.c.b16 %v2334, %v2330
        %v2451 = vpack.c.b16 %v2335, %v2331
        %v2452 = vpack.c.b16 %v2336, %v2332
        %v2453 = vpack.c.b16 %v2341, %v2337
        %v2454 = vpack.c.b16 %v2342, %v2338
        %v2455 = vpack.c.b16 %v2343, %v2339
        %v2456 = vpack.c.b16 %v2344, %v2340
        %v2457 = vpack.c.b16 %v2349, %v2345
        %v2458 = vpack.c.b16 %v2350, %v2346
        %v2459 = vpack.c.b16 %v2351, %v2347
        %v2460 = vpack.c.b16 %v2352, %v2348
        %v2461 = vpack.c.b16 %v2357, %v2353
        %v2462 = vpack.c.b16 %v2358, %v2354
        %v2463 = vpack.c.b16 %v2359, %v2355
        %v2464 = vpack.c.b16 %v2360, %v2356
        %v2465 = vpack.c.b16 %v2365, %v2361
        %v2466 = vpack.c.b16 %v2366, %v2362
        %v2467 = vpack.c.b16 %v2367, %v2363
        %v2468 = vpack.c.b16 %v2368, %v2364
        %v2469 = vpack.c.b16 %v2373, %v2369
        %v2470 = vpack.c.b16 %v2374, %v2370
        %v2471 = vpack.c.b16 %v2375, %v2371
        %v2472 = vpack.c.b16 %v2376, %v2372
        %v2473 = vpack.c.b16 %v2381, %v2377
        %v2474 = vpack.c.b16 %v2382, %v2378
        %v2475 = vpack.c.b16 %v2383, %v2379
        %v2476 = vpack.c.b16 %v2384, %v2380
        %v2477 = vpack.c.b16 %v2389, %v2385
        %v2478 = vpack.c.b16 %v2390, %v2386
        %v2479 = vpack.c.b16 %v2391, %v2387
        %v2480 = vpack.c.b16 %v2392, %v2388
        %v2481 = vpack.c.b16 %v2397, %v2393
        %v2482 = vpack.c.b16 %v2398, %v2394
        %v2483 = vpack.c.b16 %v2399, %v2395
        %v2484 = vpack.c.b16 %v2400, %v2396
        %v2485 = vpack.c.b16 %v2405, %v2401
        %v2486 = vpack.c.b16 %v2406, %v2402
        %v2487 = vpack.c.b16 %v2407, %v2403
        %v2488 = vpack.c.b16 %v2408, %v2404
        %v2489 = vpack.c.b16 %v2413, %v2409
        %v2490 = vpack.c.b16 %v2414, %v2410
        %v2491 = vpack.c.b16 %v2415, %v2411
        %v2492 = vpack.c.b16 %v2416, %v2412
        %v2493 = vpack.c.b16 %v2421, %v2417
        %v2494 = vpack.c.b16 %v2422, %v2418
        %v2495 = vpack.c.b16 %v2423, %v2419
        %v2496 = vpack.c.b16 %v2424, %v2420
        %v2497 = vpack.c.b16 %v2429, %v2425
        %v2498 = vpack.c.b16 %v2430, %v2426
        %v2499 = vpack.c.b16 %v2431, %v2427
        %v2500 = vpack.c.b16 %v2432, %v2428
        %v2501 = vpack.c.b16 %v2437, %v2433
        %v2502 = vpack.c.b16 %v2438, %v2434
        %v2503 = vpack.c.b16 %v2439, %v2435
        %v2504 = vpack.c.b16 %v2440, %v2436
        %2569 = vmatprep.subr.bf16.mxu0 %v2470
        %2570 = vmatpush1.bf16.msra.mxu0 %v2469
        %2571 = vmatprep.subr.bf16.mxu0 %v2466
        %2572 = vmatpush1.bf16.msra.mxu0 %v2465
        %2573 = vmatprep.subr.bf16.mxu0 %v2462
        %2574 = vmatpush1.bf16.msra.mxu0 %v2461
        %2575 = vmatprep.subr.bf16.mxu0 %v2458
        %2576 = vmatpush1.bf16.msra.mxu0 %v2457
        %2577 = vmatprep.subr.bf16.mxu0 %v2454
        %2578 = vmatpush1.bf16.msra.mxu0 %v2453
        %2579 = vmatprep.subr.bf16.mxu0 %v2450
        %2580 = vmatpush1.bf16.msra.mxu0 %v2449
        %2581 = vmatprep.subr.bf16.mxu0 %v2446
        %2582 = vmatpush1.bf16.msra.mxu0 %v2445
        %2583 = vmatprep.subr.bf16.mxu0 %v2442
        %2584 = vmatpush1.bf16.msra.mxu0 %v2441
        %2585 = vmatprep.subr.bf16.mxu0 %v2502
        %2586 = vmatpush2.bf16.msra.mxu0 %v2501
        %2587 = vmatprep.subr.bf16.mxu0 %v2498
        %2588 = vmatpush2.bf16.msra.mxu0 %v2497
        %2589 = vmatprep.subr.bf16.mxu0 %v2494
        %2590 = vmatpush2.bf16.msra.mxu0 %v2493
        %2591 = vmatprep.subr.bf16.mxu0 %v2490
        %2592 = vmatpush2.bf16.msra.mxu0 %v2489
        %2593 = vmatprep.subr.bf16.mxu0 %v2486
        %2594 = vmatpush2.bf16.msra.mxu0 %v2485
        %2595 = vmatprep.subr.bf16.mxu0 %v2482
        %2596 = vmatpush2.bf16.msra.mxu0 %v2481
        %2597 = vmatprep.subr.bf16.mxu0 %v2478
        %2598 = vmatpush2.bf16.msra.mxu0 %v2477
        %2599 = vmatprep.subr.bf16.mxu0 %v2474
        %2600 = vmatpush2.bf16.msra.mxu0 %v2473
        %2601 = vmatprep.mubr.bf16.mxu0 %v2246
        %2602 = vmatmul.mubr.bf16.gmra.mxu0 %v2243
        %v2603 = vpop.f32.mrf.mxu0
        %v2604 = vadd.f32 0.0, %v2603
        %v2605 = vpop.f32.mrf.mxu0
        %v2606 = vadd.f32 0.0, %v2605
        %v2607 = vpop.f32.mrf.mxu0
        %v2608 = vadd.f32 0.0, %v2607
        %v2609 = vpop.f32.mrf.mxu0
        %v2610 = vadd.f32 0.0, %v2609
        %2611 = vdwg.mxu0
        %2612 = vmatprep.subr.bf16.mxu0 %v2472
        %2613 = vmatpush1.bf16.msra.mxu0 %v2471
        %2614 = vmatprep.subr.bf16.mxu0 %v2468
        %2615 = vmatpush1.bf16.msra.mxu0 %v2467
        %2616 = vmatprep.subr.bf16.mxu0 %v2464
        %2617 = vmatpush1.bf16.msra.mxu0 %v2463
        %2618 = vmatprep.subr.bf16.mxu0 %v2460
        %2619 = vmatpush1.bf16.msra.mxu0 %v2459
        %2620 = vmatprep.subr.bf16.mxu0 %v2456
        %2621 = vmatpush1.bf16.msra.mxu0 %v2455
        %2622 = vmatprep.subr.bf16.mxu0 %v2452
        %2623 = vmatpush1.bf16.msra.mxu0 %v2451
        %2624 = vmatprep.subr.bf16.mxu0 %v2448
        %2625 = vmatpush1.bf16.msra.mxu0 %v2447
        %2626 = vmatprep.subr.bf16.mxu0 %v2444
        %2627 = vmatpush1.bf16.msra.mxu0 %v2443
        %2628 = vmatprep.subr.bf16.mxu0 %v2504
        %2629 = vmatpush2.bf16.msra.mxu0 %v2503
        %2630 = vmatprep.subr.bf16.mxu0 %v2500
        %2631 = vmatpush2.bf16.msra.mxu0 %v2499
        %2632 = vmatprep.subr.bf16.mxu0 %v2496
        %2633 = vmatpush2.bf16.msra.mxu0 %v2495
        %2634 = vmatprep.subr.bf16.mxu0 %v2492
        %2635 = vmatpush2.bf16.msra.mxu0 %v2491
        %2636 = vmatprep.subr.bf16.mxu0 %v2488
        %2637 = vmatpush2.bf16.msra.mxu0 %v2487
        %2638 = vmatprep.subr.bf16.mxu0 %v2484
        %2639 = vmatpush2.bf16.msra.mxu0 %v2483
        %2640 = vmatprep.subr.bf16.mxu0 %v2480
        %2641 = vmatpush2.bf16.msra.mxu0 %v2479
        %2642 = vmatprep.subr.bf16.mxu0 %v2476
        %2643 = vmatpush2.bf16.msra.mxu0 %v2475
        %2644 = vmatprep.mubr.bf16.mxu0 %v2246
        %2645 = vmatmul.mubr.bf16.gmra.mxu0 %v2243
        %v2646 = vpop.f32.mrf.mxu0
        %v2647 = vadd.f32 0.0, %v2646
        %v2648 = vpop.f32.mrf.mxu0
        %v2649 = vadd.f32 0.0, %v2648
        %v2650 = vpop.f32.mrf.mxu0
        %v2651 = vadd.f32 0.0, %v2650
        %v2652 = vpop.f32.mrf.mxu0
        %v2653 = vadd.f32 0.0, %v2652
        %2654 = vdwg.mxu0
        %v2655 = vadd.f32 %v2168, %v2604
        %v2656 = vadd.f32 %v2169, %v2606
        %v2657 = vadd.f32 %v2170, %v2647
        %v2658 = vadd.f32 %v2171, %v2649
        %v2659 = vadd.f32 %v2172, %v2608
        %v2660 = vadd.f32 %v2173, %v2610
        %v2661 = vadd.f32 %v2174, %v2651
        %v2662 = vadd.f32 %v2175, %v2653
        %v2663 = vld [vmem:[%s2] sm:$0xf]
        %v2665 = vlaneseq
        %v2666 = vshrl.u32 %v2665, 7
        %v2667 = vsub.s32 0, %v2666
        %v2668 = vrot.slane %v2663, %v2667
        %v2669 = vlaneseq
        %v2670 = vshrl.u32 %v2669, 7
        %v2671 = vsub.s32 1, %v2670
        %v2672 = vrot.slane %v2663, %v2671
        %v2673 = vlaneseq
        %v2674 = vshrl.u32 %v2673, 7
        %v2675 = vsub.s32 2, %v2674
        %v2676 = vrot.slane %v2663, %v2675
        %v2677 = vlaneseq
        %v2678 = vshrl.u32 %v2677, 7
        %v2679 = vsub.s32 3, %v2678
        %v2680 = vrot.slane %v2663, %v2679
        %v2685 = vadd.f32 %v2655, %v2668
        %v2686 = vadd.f32 %v2656, %v2672
        %v2687 = vadd.f32 %v2657, %v2676
        %v2688 = vadd.f32 %v2658, %v2680
        %v2689 = vadd.f32 %v2659, %v2668
        %v2690 = vadd.f32 %v2660, %v2672
        %v2691 = vadd.f32 %v2661, %v2676
        %v2692 = vadd.f32 %v2662, %v2680
        %v2693 = vmax.f32 %v2685, 0.0
        %v2694 = vmax.f32 %v2686, 0.0
        %v2695 = vmax.f32 %v2687, 0.0
        %v2696 = vmax.f32 %v2688, 0.0
        %v2697 = vmax.f32 %v2689, 0.0
        %v2698 = vmax.f32 %v2690, 0.0
        %v2699 = vmax.f32 %v2691, 0.0
        %v2700 = vmax.f32 %v2692, 0.0
        %v2701 = vmax.f32 %v2693, %v2695
        %v2702 = vmax.f32 %v2694, %v2696
        %v2703 = vmax.f32 %v2697, %v2699
        %v2704 = vmax.f32 %v2698, %v2700
        %v2707 = vrot.slane %v2701, 1
        %v2708 = vrot.slane %v2702, 1
        %v2711 = vmax.f32 %v2701, %v2707
        %v2712 = vmax.f32 %v2702, %v2708
        %v2713 = vpack.c.bf16 %v2711, %v2711
        %v2714 = vpack.c.bf16 %v2712, %v2712
        %v2715 = vld [vmem:[%s3] sm:$0xf]
        %v2716 = vld [vmem:[%s3 + $0x4] sm:$0xf]
        %v2717 = vld [vmem:[%s3 + $0x8] sm:$0xf]
        %v2718 = vld [vmem:[%s3 + $0xc] sm:$0xf]
        %v2719 = vld [vmem:[%s3 + $0x10] sm:$0xf]
        %v2720 = vld [vmem:[%s3 + $0x14] sm:$0xf]
        %v2721 = vld [vmem:[%s3 + $0x18] sm:$0xf]
        %v2722 = vld [vmem:[%s3 + $0x1c] sm:$0xf]
        %v2723 = vld [vmem:[%s3 + $0x20] sm:$0xf]
        %v2724 = vld [vmem:[%s3 + $0x24] sm:$0xf]
        %v2725 = vld [vmem:[%s3 + $0x28] sm:$0xf]
        %v2726 = vld [vmem:[%s3 + $0x2c] sm:$0xf]
        %v2727 = vld [vmem:[%s3 + $0x30] sm:$0xf]
        %v2728 = vld [vmem:[%s3 + $0x34] sm:$0xf]
        %v2729 = vld [vmem:[%s3 + $0x38] sm:$0xf]
        %v2730 = vld [vmem:[%s3 + $0x3c] sm:$0xf]
        %v2731 = vld [vmem:[%s3 + $0x40] sm:$0xf]
        %v2732 = vld [vmem:[%s3 + $0x44] sm:$0xf]
        %v2733 = vld [vmem:[%s3 + $0x48] sm:$0xf]
        %v2734 = vld [vmem:[%s3 + $0x4c] sm:$0xf]
        %v2735 = vld [vmem:[%s3 + $0x50] sm:$0xf]
        %v2736 = vld [vmem:[%s3 + $0x54] sm:$0xf]
        %v2737 = vld [vmem:[%s3 + $0x58] sm:$0xf]
        %v2738 = vld [vmem:[%s3 + $0x5c] sm:$0xf]
        %v2739 = vld [vmem:[%s3 + $0x60] sm:$0xf]
        %v2740 = vld [vmem:[%s3 + $0x64] sm:$0xf]
        %v2741 = vld [vmem:[%s3 + $0x68] sm:$0xf]
        %v2742 = vld [vmem:[%s3 + $0x6c] sm:$0xf]
        %v2743 = vld [vmem:[%s3 + $0x70] sm:$0xf]
        %v2744 = vld [vmem:[%s3 + $0x74] sm:$0xf]
        %v2745 = vld [vmem:[%s3 + $0x78] sm:$0xf]
        %v2746 = vld [vmem:[%s3 + $0x7c] sm:$0xf]
        %v2747 = vld [vmem:[%s3 + $0x80] sm:$0xf]
        %v2748 = vld [vmem:[%s3 + $0x84] sm:$0xf]
        %v2749 = vld [vmem:[%s3 + $0x88] sm:$0xf]
        %v2750 = vld [vmem:[%s3 + $0x8c] sm:$0xf]
        %v2751 = vld [vmem:[%s3 + $0x90] sm:$0xf]
        %v2752 = vld [vmem:[%s3 + $0x94] sm:$0xf]
        %v2753 = vld [vmem:[%s3 + $0x98] sm:$0xf]
        %v2754 = vld [vmem:[%s3 + $0x9c] sm:$0xf]
        %v2755 = vld [vmem:[%s3 + $0xa0] sm:$0xf]
        %v2756 = vld [vmem:[%s3 + $0xa4] sm:$0xf]
        %v2757 = vld [vmem:[%s3 + $0xa8] sm:$0xf]
        %v2758 = vld [vmem:[%s3 + $0xac] sm:$0xf]
        %v2759 = vld [vmem:[%s3 + $0xb0] sm:$0xf]
        %v2760 = vld [vmem:[%s3 + $0xb4] sm:$0xf]
        %v2761 = vld [vmem:[%s3 + $0xb8] sm:$0xf]
        %v2762 = vld [vmem:[%s3 + $0xbc] sm:$0xf]
        %v2763 = vld [vmem:[%s3 + $0xc0] sm:$0xf]
        %v2764 = vld [vmem:[%s3 + $0xc4] sm:$0xf]
        %v2765 = vld [vmem:[%s3 + $0xc8] sm:$0xf]
        %v2766 = vld [vmem:[%s3 + $0xcc] sm:$0xf]
        %v2767 = vld [vmem:[%s3 + $0xd0] sm:$0xf]
        %v2768 = vld [vmem:[%s3 + $0xd4] sm:$0xf]
        %v2769 = vld [vmem:[%s3 + $0xd8] sm:$0xf]
        %v2770 = vld [vmem:[%s3 + $0xdc] sm:$0xf]
        %v2771 = vld [vmem:[%s3 + $0xe0] sm:$0xf]
        %v2772 = vld [vmem:[%s3 + $0xe4] sm:$0xf]
        %v2773 = vld [vmem:[%s3 + $0xe8] sm:$0xf]
        %v2774 = vld [vmem:[%s3 + $0xec] sm:$0xf]
        %v2775 = vld [vmem:[%s3 + $0xf0] sm:$0xf]
        %v2776 = vld [vmem:[%s3 + $0xf4] sm:$0xf]
        %v2777 = vld [vmem:[%s3 + $0xf8] sm:$0xf]
        %v2778 = vld [vmem:[%s3 + $0xfc] sm:$0xf]
        %v2781 = vrot.slane %v2713, 1
        %v2782 = vrot.slane %v2714, 1
        %v2817 = vunpack.c.l.b16 %v2747
        %v2818 = vunpack.c.l.b16 %v2748
        %v2819 = vunpack.c.l.b16 %v2749
        %v2820 = vunpack.c.l.b16 %v2750
        %v2821 = vunpack.c.l.b16 %v2751
        %v2822 = vunpack.c.l.b16 %v2752
        %v2823 = vunpack.c.l.b16 %v2753
        %v2824 = vunpack.c.l.b16 %v2754
        %v2825 = vunpack.c.l.b16 %v2755
        %v2826 = vunpack.c.l.b16 %v2756
        %v2827 = vunpack.c.l.b16 %v2757
        %v2828 = vunpack.c.l.b16 %v2758
        %v2829 = vunpack.c.l.b16 %v2759
        %v2830 = vunpack.c.l.b16 %v2760
        %v2831 = vunpack.c.l.b16 %v2761
        %v2832 = vunpack.c.l.b16 %v2762
        %v2833 = vunpack.c.l.b16 %v2763
        %v2834 = vunpack.c.l.b16 %v2764
        %v2835 = vunpack.c.l.b16 %v2765
        %v2836 = vunpack.c.l.b16 %v2766
        %v2837 = vunpack.c.l.b16 %v2767
        %v2838 = vunpack.c.l.b16 %v2768
        %v2839 = vunpack.c.l.b16 %v2769
        %v2840 = vunpack.c.l.b16 %v2770
        %v2841 = vunpack.c.l.b16 %v2771
        %v2842 = vunpack.c.l.b16 %v2772
        %v2843 = vunpack.c.l.b16 %v2773
        %v2844 = vunpack.c.l.b16 %v2774
        %v2845 = vunpack.c.l.b16 %v2775
        %v2846 = vunpack.c.l.b16 %v2776
        %v2847 = vunpack.c.l.b16 %v2777
        %v2848 = vunpack.c.l.b16 %v2778
        %v2849 = vpack.c.b16 %v2818, %v2817
        %v2850 = vpack.c.b16 %v2820, %v2819
        %v2851 = vpack.c.b16 %v2822, %v2821
        %v2852 = vpack.c.b16 %v2824, %v2823
        %v2853 = vpack.c.b16 %v2826, %v2825
        %v2854 = vpack.c.b16 %v2828, %v2827
        %v2855 = vpack.c.b16 %v2830, %v2829
        %v2856 = vpack.c.b16 %v2832, %v2831
        %v2857 = vpack.c.b16 %v2834, %v2833
        %v2858 = vpack.c.b16 %v2836, %v2835
        %v2859 = vpack.c.b16 %v2838, %v2837
        %v2860 = vpack.c.b16 %v2840, %v2839
        %v2861 = vpack.c.b16 %v2842, %v2841
        %v2862 = vpack.c.b16 %v2844, %v2843
        %v2863 = vpack.c.b16 %v2846, %v2845
        %v2864 = vpack.c.b16 %v2848, %v2847
        %2881 = vmatprep.subr.bf16.mxu0 0
        %2882 = vmatpush1.bf16.msra.mxu0 %v2856
        %2883 = vmatprep.subr.bf16.mxu0 0
        %2884 = vmatpush1.bf16.msra.mxu0 %v2855
        %2885 = vmatprep.subr.bf16.mxu0 0
        %2886 = vmatpush1.bf16.msra.mxu0 %v2854
        %2887 = vmatprep.subr.bf16.mxu0 0
        %2888 = vmatpush1.bf16.msra.mxu0 %v2853
        %2889 = vmatprep.subr.bf16.mxu0 0
        %2890 = vmatpush1.bf16.msra.mxu0 %v2852
        %2891 = vmatprep.subr.bf16.mxu0 0
        %2892 = vmatpush1.bf16.msra.mxu0 %v2851
        %2893 = vmatprep.subr.bf16.mxu0 0
        %2894 = vmatpush1.bf16.msra.mxu0 %v2850
        %2895 = vmatprep.subr.bf16.mxu0 0
        %2896 = vmatpush1.bf16.msra.mxu0 %v2849
        %2897 = vmatprep.subr.bf16.mxu0 0
        %2898 = vmatpush2.bf16.msra.mxu0 %v2864
        %2899 = vmatprep.subr.bf16.mxu0 0
        %2900 = vmatpush2.bf16.msra.mxu0 %v2863
        %2901 = vmatprep.subr.bf16.mxu0 0
        %2902 = vmatpush2.bf16.msra.mxu0 %v2862
        %2903 = vmatprep.subr.bf16.mxu0 0
        %2904 = vmatpush2.bf16.msra.mxu0 %v2861
        %2905 = vmatprep.subr.bf16.mxu0 0
        %2906 = vmatpush2.bf16.msra.mxu0 %v2860
        %2907 = vmatprep.subr.bf16.mxu0 0
        %2908 = vmatpush2.bf16.msra.mxu0 %v2859
        %2909 = vmatprep.subr.bf16.mxu0 0
        %2910 = vmatpush2.bf16.msra.mxu0 %v2858
        %2911 = vmatprep.subr.bf16.mxu0 0
        %2912 = vmatpush2.bf16.msra.mxu0 %v2857
        %2913 = vmatprep.mubr.bf16.mxu0 %v2782
        %2914 = vmatmul.mubr.bf16.gmra.mxu0 %v2781
        %v2915 = vpop.f32.mrf.mxu0
        %v2916 = vadd.f32 0.0, %v2915
        %v2917 = vpop.f32.mrf.mxu0
        %v2918 = vpop.f32.mrf.mxu0
        %v2919 = vpop.f32.mrf.mxu0
        %2920 = vdwg.mxu0
        %v2953 = vunpack.c.l.b16 %v2715
        %v2954 = vunpack.c.l.b16 %v2716
        %v2955 = vunpack.c.l.b16 %v2717
        %v2956 = vunpack.c.l.b16 %v2718
        %v2957 = vunpack.c.l.b16 %v2719
        %v2958 = vunpack.c.l.b16 %v2720
        %v2959 = vunpack.c.l.b16 %v2721
        %v2960 = vunpack.c.l.b16 %v2722
        %v2961 = vunpack.c.l.b16 %v2723
        %v2962 = vunpack.c.l.b16 %v2724
        %v2963 = vunpack.c.l.b16 %v2725
        %v2964 = vunpack.c.l.b16 %v2726
        %v2965 = vunpack.c.l.b16 %v2727
        %v2966 = vunpack.c.l.b16 %v2728
        %v2967 = vunpack.c.l.b16 %v2729
        %v2968 = vunpack.c.l.b16 %v2730
        %v2969 = vunpack.c.l.b16 %v2731
        %v2970 = vunpack.c.l.b16 %v2732
        %v2971 = vunpack.c.l.b16 %v2733
        %v2972 = vunpack.c.l.b16 %v2734
        %v2973 = vunpack.c.l.b16 %v2735
        %v2974 = vunpack.c.l.b16 %v2736
        %v2975 = vunpack.c.l.b16 %v2737
        %v2976 = vunpack.c.l.b16 %v2738
        %v2977 = vunpack.c.l.b16 %v2739
        %v2978 = vunpack.c.l.b16 %v2740
        %v2979 = vunpack.c.l.b16 %v2741
        %v2980 = vunpack.c.l.b16 %v2742
        %v2981 = vunpack.c.l.b16 %v2743
        %v2982 = vunpack.c.l.b16 %v2744
        %v2983 = vunpack.c.l.b16 %v2745
        %v2984 = vunpack.c.l.b16 %v2746
        %v2985 = vpack.c.b16 %v2954, %v2953
        %v2986 = vpack.c.b16 %v2956, %v2955
        %v2987 = vpack.c.b16 %v2958, %v2957
        %v2988 = vpack.c.b16 %v2960, %v2959
        %v2989 = vpack.c.b16 %v2962, %v2961
        %v2990 = vpack.c.b16 %v2964, %v2963
        %v2991 = vpack.c.b16 %v2966, %v2965
        %v2992 = vpack.c.b16 %v2968, %v2967
        %v2993 = vpack.c.b16 %v2970, %v2969
        %v2994 = vpack.c.b16 %v2972, %v2971
        %v2995 = vpack.c.b16 %v2974, %v2973
        %v2996 = vpack.c.b16 %v2976, %v2975
        %v2997 = vpack.c.b16 %v2978, %v2977
        %v2998 = vpack.c.b16 %v2980, %v2979
        %v2999 = vpack.c.b16 %v2982, %v2981
        %v3000 = vpack.c.b16 %v2984, %v2983
        %3017 = vmatprep.subr.bf16.mxu0 0
        %3018 = vmatpush1.bf16.msra.mxu0 %v2992
        %3019 = vmatprep.subr.bf16.mxu0 0
        %3020 = vmatpush1.bf16.msra.mxu0 %v2991
        %3021 = vmatprep.subr.bf16.mxu0 0
        %3022 = vmatpush1.bf16.msra.mxu0 %v2990
        %3023 = vmatprep.subr.bf16.mxu0 0
        %3024 = vmatpush1.bf16.msra.mxu0 %v2989
        %3025 = vmatprep.subr.bf16.mxu0 0
        %3026 = vmatpush1.bf16.msra.mxu0 %v2988
        %3027 = vmatprep.subr.bf16.mxu0 0
        %3028 = vmatpush1.bf16.msra.mxu0 %v2987
        %3029 = vmatprep.subr.bf16.mxu0 0
        %3030 = vmatpush1.bf16.msra.mxu0 %v2986
        %3031 = vmatprep.subr.bf16.mxu0 0
        %3032 = vmatpush1.bf16.msra.mxu0 %v2985
        %3033 = vmatprep.subr.bf16.mxu0 0
        %3034 = vmatpush2.bf16.msra.mxu0 %v3000
        %3035 = vmatprep.subr.bf16.mxu0 0
        %3036 = vmatpush2.bf16.msra.mxu0 %v2999
        %3037 = vmatprep.subr.bf16.mxu0 0
        %3038 = vmatpush2.bf16.msra.mxu0 %v2998
        %3039 = vmatprep.subr.bf16.mxu0 0
        %3040 = vmatpush2.bf16.msra.mxu0 %v2997
        %3041 = vmatprep.subr.bf16.mxu0 0
        %3042 = vmatpush2.bf16.msra.mxu0 %v2996
        %3043 = vmatprep.subr.bf16.mxu0 0
        %3044 = vmatpush2.bf16.msra.mxu0 %v2995
        %3045 = vmatprep.subr.bf16.mxu0 0
        %3046 = vmatpush2.bf16.msra.mxu0 %v2994
        %3047 = vmatprep.subr.bf16.mxu0 0
        %3048 = vmatpush2.bf16.msra.mxu0 %v2993
        %3049 = vmatprep.mubr.bf16.mxu0 %v2714
        %3050 = vmatmul.mubr.bf16.gmra.mxu0 %v2713
        %v3051 = vpop.f32.mrf.mxu0
        %v3052 = vadd.f32 %v2916, %v3051
        %v3053 = vpop.f32.mrf.mxu0
        %v3054 = vpop.f32.mrf.mxu0
        %v3055 = vpop.f32.mrf.mxu0
        %3056 = vdwg.mxu0
        %v3057 = vld [vmem:[%s3 + $0x100] sm:$0xf]
        %v3058 = vld [vmem:[%s3 + $0x104] sm:$0xf]
        %v3059 = vld [vmem:[%s3 + $0x108] sm:$0xf]
        %v3060 = vld [vmem:[%s3 + $0x10c] sm:$0xf]
        %v3061 = vld [vmem:[%s3 + $0x110] sm:$0xf]
        %v3062 = vld [vmem:[%s3 + $0x114] sm:$0xf]
        %v3063 = vld [vmem:[%s3 + $0x118] sm:$0xf]
        %v3064 = vld [vmem:[%s3 + $0x11c] sm:$0xf]
        %v3065 = vld [vmem:[%s3 + $0x120] sm:$0xf]
        %v3066 = vld [vmem:[%s3 + $0x124] sm:$0xf]
        %v3067 = vld [vmem:[%s3 + $0x128] sm:$0xf]
        %v3068 = vld [vmem:[%s3 + $0x12c] sm:$0xf]
        %v3069 = vld [vmem:[%s3 + $0x130] sm:$0xf]
        %v3070 = vld [vmem:[%s3 + $0x134] sm:$0xf]
        %v3071 = vld [vmem:[%s3 + $0x138] sm:$0xf]
        %v3072 = vld [vmem:[%s3 + $0x13c] sm:$0xf]
        %v3073 = vld [vmem:[%s3 + $0x140] sm:$0xf]
        %v3074 = vld [vmem:[%s3 + $0x144] sm:$0xf]
        %v3075 = vld [vmem:[%s3 + $0x148] sm:$0xf]
        %v3076 = vld [vmem:[%s3 + $0x14c] sm:$0xf]
        %v3077 = vld [vmem:[%s3 + $0x150] sm:$0xf]
        %v3078 = vld [vmem:[%s3 + $0x154] sm:$0xf]
        %v3079 = vld [vmem:[%s3 + $0x158] sm:$0xf]
        %v3080 = vld [vmem:[%s3 + $0x15c] sm:$0xf]
        %v3081 = vld [vmem:[%s3 + $0x160] sm:$0xf]
        %v3082 = vld [vmem:[%s3 + $0x164] sm:$0xf]
        %v3083 = vld [vmem:[%s3 + $0x168] sm:$0xf]
        %v3084 = vld [vmem:[%s3 + $0x16c] sm:$0xf]
        %v3085 = vld [vmem:[%s3 + $0x170] sm:$0xf]
        %v3086 = vld [vmem:[%s3 + $0x174] sm:$0xf]
        %v3087 = vld [vmem:[%s3 + $0x178] sm:$0xf]
        %v3088 = vld [vmem:[%s3 + $0x17c] sm:$0xf]
        %v3089 = vrot.slane %v2713, 2
        %v3090 = vrot.slane %v2714, 2
        %v3125 = vunpack.c.l.b16 %v3057
        %v3126 = vunpack.c.l.b16 %v3058
        %v3127 = vunpack.c.l.b16 %v3059
        %v3128 = vunpack.c.l.b16 %v3060
        %v3129 = vunpack.c.l.b16 %v3061
        %v3130 = vunpack.c.l.b16 %v3062
        %v3131 = vunpack.c.l.b16 %v3063
        %v3132 = vunpack.c.l.b16 %v3064
        %v3133 = vunpack.c.l.b16 %v3065
        %v3134 = vunpack.c.l.b16 %v3066
        %v3135 = vunpack.c.l.b16 %v3067
        %v3136 = vunpack.c.l.b16 %v3068
        %v3137 = vunpack.c.l.b16 %v3069
        %v3138 = vunpack.c.l.b16 %v3070
        %v3139 = vunpack.c.l.b16 %v3071
        %v3140 = vunpack.c.l.b16 %v3072
        %v3141 = vunpack.c.l.b16 %v3073
        %v3142 = vunpack.c.l.b16 %v3074
        %v3143 = vunpack.c.l.b16 %v3075
        %v3144 = vunpack.c.l.b16 %v3076
        %v3145 = vunpack.c.l.b16 %v3077
        %v3146 = vunpack.c.l.b16 %v3078
        %v3147 = vunpack.c.l.b16 %v3079
        %v3148 = vunpack.c.l.b16 %v3080
        %v3149 = vunpack.c.l.b16 %v3081
        %v3150 = vunpack.c.l.b16 %v3082
        %v3151 = vunpack.c.l.b16 %v3083
        %v3152 = vunpack.c.l.b16 %v3084
        %v3153 = vunpack.c.l.b16 %v3085
        %v3154 = vunpack.c.l.b16 %v3086
        %v3155 = vunpack.c.l.b16 %v3087
        %v3156 = vunpack.c.l.b16 %v3088
        %v3157 = vpack.c.b16 %v3126, %v3125
        %v3158 = vpack.c.b16 %v3128, %v3127
        %v3159 = vpack.c.b16 %v3130, %v3129
        %v3160 = vpack.c.b16 %v3132, %v3131
        %v3161 = vpack.c.b16 %v3134, %v3133
        %v3162 = vpack.c.b16 %v3136, %v3135
        %v3163 = vpack.c.b16 %v3138, %v3137
        %v3164 = vpack.c.b16 %v3140, %v3139
        %v3165 = vpack.c.b16 %v3142, %v3141
        %v3166 = vpack.c.b16 %v3144, %v3143
        %v3167 = vpack.c.b16 %v3146, %v3145
        %v3168 = vpack.c.b16 %v3148, %v3147
        %v3169 = vpack.c.b16 %v3150, %v3149
        %v3170 = vpack.c.b16 %v3152, %v3151
        %v3171 = vpack.c.b16 %v3154, %v3153
        %v3172 = vpack.c.b16 %v3156, %v3155
        %3189 = vmatprep.subr.bf16.mxu0 0
        %3190 = vmatpush1.bf16.msra.mxu0 %v3164
        %3191 = vmatprep.subr.bf16.mxu0 0
        %3192 = vmatpush1.bf16.msra.mxu0 %v3163
        %3193 = vmatprep.subr.bf16.mxu0 0
        %3194 = vmatpush1.bf16.msra.mxu0 %v3162
        %3195 = vmatprep.subr.bf16.mxu0 0
        %3196 = vmatpush1.bf16.msra.mxu0 %v3161
        %3197 = vmatprep.subr.bf16.mxu0 0
        %3198 = vmatpush1.bf16.msra.mxu0 %v3160
        %3199 = vmatprep.subr.bf16.mxu0 0
        %3200 = vmatpush1.bf16.msra.mxu0 %v3159
        %3201 = vmatprep.subr.bf16.mxu0 0
        %3202 = vmatpush1.bf16.msra.mxu0 %v3158
        %3203 = vmatprep.subr.bf16.mxu0 0
        %3204 = vmatpush1.bf16.msra.mxu0 %v3157
        %3205 = vmatprep.subr.bf16.mxu0 0
        %3206 = vmatpush2.bf16.msra.mxu0 %v3172
        %3207 = vmatprep.subr.bf16.mxu0 0
        %3208 = vmatpush2.bf16.msra.mxu0 %v3171
        %3209 = vmatprep.subr.bf16.mxu0 0
        %3210 = vmatpush2.bf16.msra.mxu0 %v3170
        %3211 = vmatprep.subr.bf16.mxu0 0
        %3212 = vmatpush2.bf16.msra.mxu0 %v3169
        %3213 = vmatprep.subr.bf16.mxu0 0
        %3214 = vmatpush2.bf16.msra.mxu0 %v3168
        %3215 = vmatprep.subr.bf16.mxu0 0
        %3216 = vmatpush2.bf16.msra.mxu0 %v3167
        %3217 = vmatprep.subr.bf16.mxu0 0
        %3218 = vmatpush2.bf16.msra.mxu0 %v3166
        %3219 = vmatprep.subr.bf16.mxu0 0
        %3220 = vmatpush2.bf16.msra.mxu0 %v3165
        %3221 = vmatprep.mubr.bf16.mxu0 %v3090
        %3222 = vmatmul.mubr.bf16.gmra.mxu0 %v3089
        %v3223 = vpop.f32.mrf.mxu0
        %v3224 = vadd.f32 0.0, %v3223
        %v3225 = vpop.f32.mrf.mxu0
        %v3226 = vpop.f32.mrf.mxu0
        %v3227 = vpop.f32.mrf.mxu0
        %3228 = vdwg.mxu0
        %v3229 = vadd.f32 %v3052, %v3224
        %v3230 = vld [vmem:[%s3 + $0x180] sm:$0xf]
        %v3231 = vld [vmem:[%s3 + $0x184] sm:$0xf]
        %v3232 = vld [vmem:[%s3 + $0x188] sm:$0xf]
        %v3233 = vld [vmem:[%s3 + $0x18c] sm:$0xf]
        %v3234 = vld [vmem:[%s3 + $0x190] sm:$0xf]
        %v3235 = vld [vmem:[%s3 + $0x194] sm:$0xf]
        %v3236 = vld [vmem:[%s3 + $0x198] sm:$0xf]
        %v3237 = vld [vmem:[%s3 + $0x19c] sm:$0xf]
        %v3238 = vld [vmem:[%s3 + $0x1a0] sm:$0xf]
        %v3239 = vld [vmem:[%s3 + $0x1a4] sm:$0xf]
        %v3240 = vld [vmem:[%s3 + $0x1a8] sm:$0xf]
        %v3241 = vld [vmem:[%s3 + $0x1ac] sm:$0xf]
        %v3242 = vld [vmem:[%s3 + $0x1b0] sm:$0xf]
        %v3243 = vld [vmem:[%s3 + $0x1b4] sm:$0xf]
        %v3244 = vld [vmem:[%s3 + $0x1b8] sm:$0xf]
        %v3245 = vld [vmem:[%s3 + $0x1bc] sm:$0xf]
        %v3246 = vld [vmem:[%s3 + $0x1c0] sm:$0xf]
        %v3247 = vld [vmem:[%s3 + $0x1c4] sm:$0xf]
        %v3248 = vld [vmem:[%s3 + $0x1c8] sm:$0xf]
        %v3249 = vld [vmem:[%s3 + $0x1cc] sm:$0xf]
        %v3250 = vld [vmem:[%s3 + $0x1d0] sm:$0xf]
        %v3251 = vld [vmem:[%s3 + $0x1d4] sm:$0xf]
        %v3252 = vld [vmem:[%s3 + $0x1d8] sm:$0xf]
        %v3253 = vld [vmem:[%s3 + $0x1dc] sm:$0xf]
        %v3254 = vld [vmem:[%s3 + $0x1e0] sm:$0xf]
        %v3255 = vld [vmem:[%s3 + $0x1e4] sm:$0xf]
        %v3256 = vld [vmem:[%s3 + $0x1e8] sm:$0xf]
        %v3257 = vld [vmem:[%s3 + $0x1ec] sm:$0xf]
        %v3258 = vld [vmem:[%s3 + $0x1f0] sm:$0xf]
        %v3259 = vld [vmem:[%s3 + $0x1f4] sm:$0xf]
        %v3260 = vld [vmem:[%s3 + $0x1f8] sm:$0xf]
        %v3261 = vld [vmem:[%s3 + $0x1fc] sm:$0xf]
        %v3262 = vrot.slane %v2713, 3
        %v3263 = vrot.slane %v2714, 3
        %v3298 = vunpack.c.l.b16 %v3230
        %v3299 = vunpack.c.l.b16 %v3231
        %v3300 = vunpack.c.l.b16 %v3232
        %v3301 = vunpack.c.l.b16 %v3233
        %v3302 = vunpack.c.l.b16 %v3234
        %v3303 = vunpack.c.l.b16 %v3235
        %v3304 = vunpack.c.l.b16 %v3236
        %v3305 = vunpack.c.l.b16 %v3237
        %v3306 = vunpack.c.l.b16 %v3238
        %v3307 = vunpack.c.l.b16 %v3239
        %v3308 = vunpack.c.l.b16 %v3240
        %v3309 = vunpack.c.l.b16 %v3241
        %v3310 = vunpack.c.l.b16 %v3242
        %v3311 = vunpack.c.l.b16 %v3243
        %v3312 = vunpack.c.l.b16 %v3244
        %v3313 = vunpack.c.l.b16 %v3245
        %v3314 = vunpack.c.l.b16 %v3246
        %v3315 = vunpack.c.l.b16 %v3247
        %v3316 = vunpack.c.l.b16 %v3248
        %v3317 = vunpack.c.l.b16 %v3249
        %v3318 = vunpack.c.l.b16 %v3250
        %v3319 = vunpack.c.l.b16 %v3251
        %v3320 = vunpack.c.l.b16 %v3252
        %v3321 = vunpack.c.l.b16 %v3253
        %v3322 = vunpack.c.l.b16 %v3254
        %v3323 = vunpack.c.l.b16 %v3255
        %v3324 = vunpack.c.l.b16 %v3256
        %v3325 = vunpack.c.l.b16 %v3257
        %v3326 = vunpack.c.l.b16 %v3258
        %v3327 = vunpack.c.l.b16 %v3259
        %v3328 = vunpack.c.l.b16 %v3260
        %v3329 = vunpack.c.l.b16 %v3261
        %v3330 = vpack.c.b16 %v3299, %v3298
        %v3331 = vpack.c.b16 %v3301, %v3300
        %v3332 = vpack.c.b16 %v3303, %v3302
        %v3333 = vpack.c.b16 %v3305, %v3304
        %v3334 = vpack.c.b16 %v3307, %v3306
        %v3335 = vpack.c.b16 %v3309, %v3308
        %v3336 = vpack.c.b16 %v3311, %v3310
        %v3337 = vpack.c.b16 %v3313, %v3312
        %v3338 = vpack.c.b16 %v3315, %v3314
        %v3339 = vpack.c.b16 %v3317, %v3316
        %v3340 = vpack.c.b16 %v3319, %v3318
        %v3341 = vpack.c.b16 %v3321, %v3320
        %v3342 = vpack.c.b16 %v3323, %v3322
        %v3343 = vpack.c.b16 %v3325, %v3324
        %v3344 = vpack.c.b16 %v3327, %v3326
        %v3345 = vpack.c.b16 %v3329, %v3328
        %3362 = vmatprep.subr.bf16.mxu0 0
        %3363 = vmatpush1.bf16.msra.mxu0 %v3337
        %3364 = vmatprep.subr.bf16.mxu0 0
        %3365 = vmatpush1.bf16.msra.mxu0 %v3336
        %3366 = vmatprep.subr.bf16.mxu0 0
        %3367 = vmatpush1.bf16.msra.mxu0 %v3335
        %3368 = vmatprep.subr.bf16.mxu0 0
        %3369 = vmatpush1.bf16.msra.mxu0 %v3334
        %3370 = vmatprep.subr.bf16.mxu0 0
        %3371 = vmatpush1.bf16.msra.mxu0 %v3333
        %3372 = vmatprep.subr.bf16.mxu0 0
        %3373 = vmatpush1.bf16.msra.mxu0 %v3332
        %3374 = vmatprep.subr.bf16.mxu0 0
        %3375 = vmatpush1.bf16.msra.mxu0 %v3331
        %3376 = vmatprep.subr.bf16.mxu0 0
        %3377 = vmatpush1.bf16.msra.mxu0 %v3330
        %3378 = vmatprep.subr.bf16.mxu0 0
        %3379 = vmatpush2.bf16.msra.mxu0 %v3345
        %3380 = vmatprep.subr.bf16.mxu0 0
        %3381 = vmatpush2.bf16.msra.mxu0 %v3344
        %3382 = vmatprep.subr.bf16.mxu0 0
        %3383 = vmatpush2.bf16.msra.mxu0 %v3343
        %3384 = vmatprep.subr.bf16.mxu0 0
        %3385 = vmatpush2.bf16.msra.mxu0 %v3342
        %3386 = vmatprep.subr.bf16.mxu0 0
        %3387 = vmatpush2.bf16.msra.mxu0 %v3341
        %3388 = vmatprep.subr.bf16.mxu0 0
        %3389 = vmatpush2.bf16.msra.mxu0 %v3340
        %3390 = vmatprep.subr.bf16.mxu0 0
        %3391 = vmatpush2.bf16.msra.mxu0 %v3339
        %3392 = vmatprep.subr.bf16.mxu0 0
        %3393 = vmatpush2.bf16.msra.mxu0 %v3338
        %3394 = vmatprep.mubr.bf16.mxu0 %v3263
        %3395 = vmatmul.mubr.bf16.gmra.mxu0 %v3262
        %v3396 = vpop.f32.mrf.mxu0
        %v3397 = vadd.f32 0.0, %v3396
        %v3398 = vpop.f32.mrf.mxu0
        %v3399 = vpop.f32.mrf.mxu0
        %v3400 = vpop.f32.mrf.mxu0
        %3401 = vdwg.mxu0
        %v3402 = vadd.f32 %v3229, %v3397
        %v3405 = vrot.slane %v2703, 1
        %v3406 = vrot.slane %v2704, 1
        %v3409 = vmax.f32 %v2703, %v3405
        %v3410 = vmax.f32 %v2704, %v3406
        %v3411 = vpack.c.bf16 %v3409, %v3409
        %v3412 = vpack.c.bf16 %v3410, %v3410
        %v3413 = vld [vmem:[%s3 + $0x200] sm:$0xf]
        %v3414 = vld [vmem:[%s3 + $0x204] sm:$0xf]
        %v3415 = vld [vmem:[%s3 + $0x208] sm:$0xf]
        %v3416 = vld [vmem:[%s3 + $0x20c] sm:$0xf]
        %v3417 = vld [vmem:[%s3 + $0x210] sm:$0xf]
        %v3418 = vld [vmem:[%s3 + $0x214] sm:$0xf]
        %v3419 = vld [vmem:[%s3 + $0x218] sm:$0xf]
        %v3420 = vld [vmem:[%s3 + $0x21c] sm:$0xf]
        %v3421 = vld [vmem:[%s3 + $0x220] sm:$0xf]
        %v3422 = vld [vmem:[%s3 + $0x224] sm:$0xf]
        %v3423 = vld [vmem:[%s3 + $0x228] sm:$0xf]
        %v3424 = vld [vmem:[%s3 + $0x22c] sm:$0xf]
        %v3425 = vld [vmem:[%s3 + $0x230] sm:$0xf]
        %v3426 = vld [vmem:[%s3 + $0x234] sm:$0xf]
        %v3427 = vld [vmem:[%s3 + $0x238] sm:$0xf]
        %v3428 = vld [vmem:[%s3 + $0x23c] sm:$0xf]
        %v3429 = vld [vmem:[%s3 + $0x240] sm:$0xf]
        %v3430 = vld [vmem:[%s3 + $0x244] sm:$0xf]
        %v3431 = vld [vmem:[%s3 + $0x248] sm:$0xf]
        %v3432 = vld [vmem:[%s3 + $0x24c] sm:$0xf]
        %v3433 = vld [vmem:[%s3 + $0x250] sm:$0xf]
        %v3434 = vld [vmem:[%s3 + $0x254] sm:$0xf]
        %v3435 = vld [vmem:[%s3 + $0x258] sm:$0xf]
        %v3436 = vld [vmem:[%s3 + $0x25c] sm:$0xf]
        %v3437 = vld [vmem:[%s3 + $0x260] sm:$0xf]
        %v3438 = vld [vmem:[%s3 + $0x264] sm:$0xf]
        %v3439 = vld [vmem:[%s3 + $0x268] sm:$0xf]
        %v3440 = vld [vmem:[%s3 + $0x26c] sm:$0xf]
        %v3441 = vld [vmem:[%s3 + $0x270] sm:$0xf]
        %v3442 = vld [vmem:[%s3 + $0x274] sm:$0xf]
        %v3443 = vld [vmem:[%s3 + $0x278] sm:$0xf]
        %v3444 = vld [vmem:[%s3 + $0x27c] sm:$0xf]
        %v3477 = vunpack.c.l.b16 %v3413
        %v3478 = vunpack.c.l.b16 %v3414
        %v3479 = vunpack.c.l.b16 %v3415
        %v3480 = vunpack.c.l.b16 %v3416
        %v3481 = vunpack.c.l.b16 %v3417
        %v3482 = vunpack.c.l.b16 %v3418
        %v3483 = vunpack.c.l.b16 %v3419
        %v3484 = vunpack.c.l.b16 %v3420
        %v3485 = vunpack.c.l.b16 %v3421
        %v3486 = vunpack.c.l.b16 %v3422
        %v3487 = vunpack.c.l.b16 %v3423
        %v3488 = vunpack.c.l.b16 %v3424
        %v3489 = vunpack.c.l.b16 %v3425
        %v3490 = vunpack.c.l.b16 %v3426
        %v3491 = vunpack.c.l.b16 %v3427
        %v3492 = vunpack.c.l.b16 %v3428
        %v3493 = vunpack.c.l.b16 %v3429
        %v3494 = vunpack.c.l.b16 %v3430
        %v3495 = vunpack.c.l.b16 %v3431
        %v3496 = vunpack.c.l.b16 %v3432
        %v3497 = vunpack.c.l.b16 %v3433
        %v3498 = vunpack.c.l.b16 %v3434
        %v3499 = vunpack.c.l.b16 %v3435
        %v3500 = vunpack.c.l.b16 %v3436
        %v3501 = vunpack.c.l.b16 %v3437
        %v3502 = vunpack.c.l.b16 %v3438
        %v3503 = vunpack.c.l.b16 %v3439
        %v3504 = vunpack.c.l.b16 %v3440
        %v3505 = vunpack.c.l.b16 %v3441
        %v3506 = vunpack.c.l.b16 %v3442
        %v3507 = vunpack.c.l.b16 %v3443
        %v3508 = vunpack.c.l.b16 %v3444
        %v3509 = vpack.c.b16 %v3478, %v3477
        %v3510 = vpack.c.b16 %v3480, %v3479
        %v3511 = vpack.c.b16 %v3482, %v3481
        %v3512 = vpack.c.b16 %v3484, %v3483
        %v3513 = vpack.c.b16 %v3486, %v3485
        %v3514 = vpack.c.b16 %v3488, %v3487
        %v3515 = vpack.c.b16 %v3490, %v3489
        %v3516 = vpack.c.b16 %v3492, %v3491
        %v3517 = vpack.c.b16 %v3494, %v3493
        %v3518 = vpack.c.b16 %v3496, %v3495
        %v3519 = vpack.c.b16 %v3498, %v3497
        %v3520 = vpack.c.b16 %v3500, %v3499
        %v3521 = vpack.c.b16 %v3502, %v3501
        %v3522 = vpack.c.b16 %v3504, %v3503
        %v3523 = vpack.c.b16 %v3506, %v3505
        %v3524 = vpack.c.b16 %v3508, %v3507
        %3541 = vmatprep.subr.bf16.mxu0 0
        %3542 = vmatpush1.bf16.msra.mxu0 %v3516
        %3543 = vmatprep.subr.bf16.mxu0 0
        %3544 = vmatpush1.bf16.msra.mxu0 %v3515
        %3545 = vmatprep.subr.bf16.mxu0 0
        %3546 = vmatpush1.bf16.msra.mxu0 %v3514
        %3547 = vmatprep.subr.bf16.mxu0 0
        %3548 = vmatpush1.bf16.msra.mxu0 %v3513
        %3549 = vmatprep.subr.bf16.mxu0 0
        %3550 = vmatpush1.bf16.msra.mxu0 %v3512
        %3551 = vmatprep.subr.bf16.mxu0 0
        %3552 = vmatpush1.bf16.msra.mxu0 %v3511
        %3553 = vmatprep.subr.bf16.mxu0 0
        %3554 = vmatpush1.bf16.msra.mxu0 %v3510
        %3555 = vmatprep.subr.bf16.mxu0 0
        %3556 = vmatpush1.bf16.msra.mxu0 %v3509
        %3557 = vmatprep.subr.bf16.mxu0 0
        %3558 = vmatpush2.bf16.msra.mxu0 %v3524
        %3559 = vmatprep.subr.bf16.mxu0 0
        %3560 = vmatpush2.bf16.msra.mxu0 %v3523
        %3561 = vmatprep.subr.bf16.mxu0 0
        %3562 = vmatpush2.bf16.msra.mxu0 %v3522
        %3563 = vmatprep.subr.bf16.mxu0 0
        %3564 = vmatpush2.bf16.msra.mxu0 %v3521
        %3565 = vmatprep.subr.bf16.mxu0 0
        %3566 = vmatpush2.bf16.msra.mxu0 %v3520
        %3567 = vmatprep.subr.bf16.mxu0 0
        %3568 = vmatpush2.bf16.msra.mxu0 %v3519
        %3569 = vmatprep.subr.bf16.mxu0 0
        %3570 = vmatpush2.bf16.msra.mxu0 %v3518
        %3571 = vmatprep.subr.bf16.mxu0 0
        %3572 = vmatpush2.bf16.msra.mxu0 %v3517
        %3573 = vmatprep.mubr.bf16.mxu0 %v3412
        %3574 = vmatmul.mubr.bf16.gmra.mxu0 %v3411
        %v3575 = vpop.f32.mrf.mxu0
        %v3576 = vadd.f32 0.0, %v3575
        %v3577 = vpop.f32.mrf.mxu0
        %v3578 = vpop.f32.mrf.mxu0
        %v3579 = vpop.f32.mrf.mxu0
        %3580 = vdwg.mxu0
        %v3581 = vadd.f32 %v3402, %v3576
        %v3582 = vld [vmem:[%s3 + $0x280] sm:$0xf]
        %v3583 = vld [vmem:[%s3 + $0x284] sm:$0xf]
        %v3584 = vld [vmem:[%s3 + $0x288] sm:$0xf]
        %v3585 = vld [vmem:[%s3 + $0x28c] sm:$0xf]
        %v3586 = vld [vmem:[%s3 + $0x290] sm:$0xf]
        %v3587 = vld [vmem:[%s3 + $0x294] sm:$0xf]
        %v3588 = vld [vmem:[%s3 + $0x298] sm:$0xf]
        %v3589 = vld [vmem:[%s3 + $0x29c] sm:$0xf]
        %v3590 = vld [vmem:[%s3 + $0x2a0] sm:$0xf]
        %v3591 = vld [vmem:[%s3 + $0x2a4] sm:$0xf]
        %v3592 = vld [vmem:[%s3 + $0x2a8] sm:$0xf]
        %v3593 = vld [vmem:[%s3 + $0x2ac] sm:$0xf]
        %v3594 = vld [vmem:[%s3 + $0x2b0] sm:$0xf]
        %v3595 = vld [vmem:[%s3 + $0x2b4] sm:$0xf]
        %v3596 = vld [vmem:[%s3 + $0x2b8] sm:$0xf]
        %v3597 = vld [vmem:[%s3 + $0x2bc] sm:$0xf]
        %v3598 = vld [vmem:[%s3 + $0x2c0] sm:$0xf]
        %v3599 = vld [vmem:[%s3 + $0x2c4] sm:$0xf]
        %v3600 = vld [vmem:[%s3 + $0x2c8] sm:$0xf]
        %v3601 = vld [vmem:[%s3 + $0x2cc] sm:$0xf]
        %v3602 = vld [vmem:[%s3 + $0x2d0] sm:$0xf]
        %v3603 = vld [vmem:[%s3 + $0x2d4] sm:$0xf]
        %v3604 = vld [vmem:[%s3 + $0x2d8] sm:$0xf]
        %v3605 = vld [vmem:[%s3 + $0x2dc] sm:$0xf]
        %v3606 = vld [vmem:[%s3 + $0x2e0] sm:$0xf]
        %v3607 = vld [vmem:[%s3 + $0x2e4] sm:$0xf]
        %v3608 = vld [vmem:[%s3 + $0x2e8] sm:$0xf]
        %v3609 = vld [vmem:[%s3 + $0x2ec] sm:$0xf]
        %v3610 = vld [vmem:[%s3 + $0x2f0] sm:$0xf]
        %v3611 = vld [vmem:[%s3 + $0x2f4] sm:$0xf]
        %v3612 = vld [vmem:[%s3 + $0x2f8] sm:$0xf]
        %v3613 = vld [vmem:[%s3 + $0x2fc] sm:$0xf]
        %v3616 = vrot.slane %v3411, 1
        %v3617 = vrot.slane %v3412, 1
        %v3652 = vunpack.c.l.b16 %v3582
        %v3653 = vunpack.c.l.b16 %v3583
        %v3654 = vunpack.c.l.b16 %v3584
        %v3655 = vunpack.c.l.b16 %v3585
        %v3656 = vunpack.c.l.b16 %v3586
        %v3657 = vunpack.c.l.b16 %v3587
        %v3658 = vunpack.c.l.b16 %v3588
        %v3659 = vunpack.c.l.b16 %v3589
        %v3660 = vunpack.c.l.b16 %v3590
        %v3661 = vunpack.c.l.b16 %v3591
        %v3662 = vunpack.c.l.b16 %v3592
        %v3663 = vunpack.c.l.b16 %v3593
        %v3664 = vunpack.c.l.b16 %v3594
        %v3665 = vunpack.c.l.b16 %v3595
        %v3666 = vunpack.c.l.b16 %v3596
        %v3667 = vunpack.c.l.b16 %v3597
        %v3668 = vunpack.c.l.b16 %v3598
        %v3669 = vunpack.c.l.b16 %v3599
        %v3670 = vunpack.c.l.b16 %v3600
        %v3671 = vunpack.c.l.b16 %v3601
        %v3672 = vunpack.c.l.b16 %v3602
        %v3673 = vunpack.c.l.b16 %v3603
        %v3674 = vunpack.c.l.b16 %v3604
        %v3675 = vunpack.c.l.b16 %v3605
        %v3676 = vunpack.c.l.b16 %v3606
        %v3677 = vunpack.c.l.b16 %v3607
        %v3678 = vunpack.c.l.b16 %v3608
        %v3679 = vunpack.c.l.b16 %v3609
        %v3680 = vunpack.c.l.b16 %v3610
        %v3681 = vunpack.c.l.b16 %v3611
        %v3682 = vunpack.c.l.b16 %v3612
        %v3683 = vunpack.c.l.b16 %v3613
        %v3684 = vpack.c.b16 %v3653, %v3652
        %v3685 = vpack.c.b16 %v3655, %v3654
        %v3686 = vpack.c.b16 %v3657, %v3656
        %v3687 = vpack.c.b16 %v3659, %v3658
        %v3688 = vpack.c.b16 %v3661, %v3660
        %v3689 = vpack.c.b16 %v3663, %v3662
        %v3690 = vpack.c.b16 %v3665, %v3664
        %v3691 = vpack.c.b16 %v3667, %v3666
        %v3692 = vpack.c.b16 %v3669, %v3668
        %v3693 = vpack.c.b16 %v3671, %v3670
        %v3694 = vpack.c.b16 %v3673, %v3672
        %v3695 = vpack.c.b16 %v3675, %v3674
        %v3696 = vpack.c.b16 %v3677, %v3676
        %v3697 = vpack.c.b16 %v3679, %v3678
        %v3698 = vpack.c.b16 %v3681, %v3680
        %v3699 = vpack.c.b16 %v3683, %v3682
        %3716 = vmatprep.subr.bf16.mxu0 0
        %3717 = vmatpush1.bf16.msra.mxu0 %v3691
        %3718 = vmatprep.subr.bf16.mxu0 0
        %3719 = vmatpush1.bf16.msra.mxu0 %v3690
        %3720 = vmatprep.subr.bf16.mxu0 0
        %3721 = vmatpush1.bf16.msra.mxu0 %v3689
        %3722 = vmatprep.subr.bf16.mxu0 0
        %3723 = vmatpush1.bf16.msra.mxu0 %v3688
        %3724 = vmatprep.subr.bf16.mxu0 0
        %3725 = vmatpush1.bf16.msra.mxu0 %v3687
        %3726 = vmatprep.subr.bf16.mxu0 0
        %3727 = vmatpush1.bf16.msra.mxu0 %v3686
        %3728 = vmatprep.subr.bf16.mxu0 0
        %3729 = vmatpush1.bf16.msra.mxu0 %v3685
        %3730 = vmatprep.subr.bf16.mxu0 0
        %3731 = vmatpush1.bf16.msra.mxu0 %v3684
        %3732 = vmatprep.subr.bf16.mxu0 0
        %3733 = vmatpush2.bf16.msra.mxu0 %v3699
        %3734 = vmatprep.subr.bf16.mxu0 0
        %3735 = vmatpush2.bf16.msra.mxu0 %v3698
        %3736 = vmatprep.subr.bf16.mxu0 0
        %3737 = vmatpush2.bf16.msra.mxu0 %v3697
        %3738 = vmatprep.subr.bf16.mxu0 0
        %3739 = vmatpush2.bf16.msra.mxu0 %v3696
        %3740 = vmatprep.subr.bf16.mxu0 0
        %3741 = vmatpush2.bf16.msra.mxu0 %v3695
        %3742 = vmatprep.subr.bf16.mxu0 0
        %3743 = vmatpush2.bf16.msra.mxu0 %v3694
        %3744 = vmatprep.subr.bf16.mxu0 0
        %3745 = vmatpush2.bf16.msra.mxu0 %v3693
        %3746 = vmatprep.subr.bf16.mxu0 0
        %3747 = vmatpush2.bf16.msra.mxu0 %v3692
        %3748 = vmatprep.mubr.bf16.mxu0 %v3617
        %3749 = vmatmul.mubr.bf16.gmra.mxu0 %v3616
        %v3750 = vpop.f32.mrf.mxu0
        %v3751 = vadd.f32 0.0, %v3750
        %v3752 = vpop.f32.mrf.mxu0
        %v3753 = vpop.f32.mrf.mxu0
        %v3754 = vpop.f32.mrf.mxu0
        %3755 = vdwg.mxu0
        %v3756 = vadd.f32 %v3581, %v3751
        %v3757 = vld [vmem:[%s3 + $0x300] sm:$0xf]
        %v3758 = vld [vmem:[%s3 + $0x304] sm:$0xf]
        %v3759 = vld [vmem:[%s3 + $0x308] sm:$0xf]
        %v3760 = vld [vmem:[%s3 + $0x30c] sm:$0xf]
        %v3761 = vld [vmem:[%s3 + $0x310] sm:$0xf]
        %v3762 = vld [vmem:[%s3 + $0x314] sm:$0xf]
        %v3763 = vld [vmem:[%s3 + $0x318] sm:$0xf]
        %v3764 = vld [vmem:[%s3 + $0x31c] sm:$0xf]
        %v3765 = vld [vmem:[%s3 + $0x320] sm:$0xf]
        %v3766 = vld [vmem:[%s3 + $0x324] sm:$0xf]
        %v3767 = vld [vmem:[%s3 + $0x328] sm:$0xf]
        %v3768 = vld [vmem:[%s3 + $0x32c] sm:$0xf]
        %v3769 = vld [vmem:[%s3 + $0x330] sm:$0xf]
        %v3770 = vld [vmem:[%s3 + $0x334] sm:$0xf]
        %v3771 = vld [vmem:[%s3 + $0x338] sm:$0xf]
        %v3772 = vld [vmem:[%s3 + $0x33c] sm:$0xf]
        %v3773 = vld [vmem:[%s3 + $0x340] sm:$0xf]
        %v3774 = vld [vmem:[%s3 + $0x344] sm:$0xf]
        %v3775 = vld [vmem:[%s3 + $0x348] sm:$0xf]
        %v3776 = vld [vmem:[%s3 + $0x34c] sm:$0xf]
        %v3777 = vld [vmem:[%s3 + $0x350] sm:$0xf]
        %v3778 = vld [vmem:[%s3 + $0x354] sm:$0xf]
        %v3779 = vld [vmem:[%s3 + $0x358] sm:$0xf]
        %v3780 = vld [vmem:[%s3 + $0x35c] sm:$0xf]
        %v3781 = vld [vmem:[%s3 + $0x360] sm:$0xf]
        %v3782 = vld [vmem:[%s3 + $0x364] sm:$0xf]
        %v3783 = vld [vmem:[%s3 + $0x368] sm:$0xf]
        %v3784 = vld [vmem:[%s3 + $0x36c] sm:$0xf]
        %v3785 = vld [vmem:[%s3 + $0x370] sm:$0xf]
        %v3786 = vld [vmem:[%s3 + $0x374] sm:$0xf]
        %v3787 = vld [vmem:[%s3 + $0x378] sm:$0xf]
        %v3788 = vld [vmem:[%s3 + $0x37c] sm:$0xf]
        %v3789 = vrot.slane %v3411, 2
        %v3790 = vrot.slane %v3412, 2
        %v3825 = vunpack.c.l.b16 %v3757
        %v3826 = vunpack.c.l.b16 %v3758
        %v3827 = vunpack.c.l.b16 %v3759
        %v3828 = vunpack.c.l.b16 %v3760
        %v3829 = vunpack.c.l.b16 %v3761
        %v3830 = vunpack.c.l.b16 %v3762
        %v3831 = vunpack.c.l.b16 %v3763
        %v3832 = vunpack.c.l.b16 %v3764
        %v3833 = vunpack.c.l.b16 %v3765
        %v3834 = vunpack.c.l.b16 %v3766
        %v3835 = vunpack.c.l.b16 %v3767
        %v3836 = vunpack.c.l.b16 %v3768
        %v3837 = vunpack.c.l.b16 %v3769
        %v3838 = vunpack.c.l.b16 %v3770
        %v3839 = vunpack.c.l.b16 %v3771
        %v3840 = vunpack.c.l.b16 %v3772
        %v3841 = vunpack.c.l.b16 %v3773
        %v3842 = vunpack.c.l.b16 %v3774
        %v3843 = vunpack.c.l.b16 %v3775
        %v3844 = vunpack.c.l.b16 %v3776
        %v3845 = vunpack.c.l.b16 %v3777
        %v3846 = vunpack.c.l.b16 %v3778
        %v3847 = vunpack.c.l.b16 %v3779
        %v3848 = vunpack.c.l.b16 %v3780
        %v3849 = vunpack.c.l.b16 %v3781
        %v3850 = vunpack.c.l.b16 %v3782
        %v3851 = vunpack.c.l.b16 %v3783
        %v3852 = vunpack.c.l.b16 %v3784
        %v3853 = vunpack.c.l.b16 %v3785
        %v3854 = vunpack.c.l.b16 %v3786
        %v3855 = vunpack.c.l.b16 %v3787
        %v3856 = vunpack.c.l.b16 %v3788
        %v3857 = vpack.c.b16 %v3826, %v3825
        %v3858 = vpack.c.b16 %v3828, %v3827
        %v3859 = vpack.c.b16 %v3830, %v3829
        %v3860 = vpack.c.b16 %v3832, %v3831
        %v3861 = vpack.c.b16 %v3834, %v3833
        %v3862 = vpack.c.b16 %v3836, %v3835
        %v3863 = vpack.c.b16 %v3838, %v3837
        %v3864 = vpack.c.b16 %v3840, %v3839
        %v3865 = vpack.c.b16 %v3842, %v3841
        %v3866 = vpack.c.b16 %v3844, %v3843
        %v3867 = vpack.c.b16 %v3846, %v3845
        %v3868 = vpack.c.b16 %v3848, %v3847
        %v3869 = vpack.c.b16 %v3850, %v3849
        %v3870 = vpack.c.b16 %v3852, %v3851
        %v3871 = vpack.c.b16 %v3854, %v3853
        %v3872 = vpack.c.b16 %v3856, %v3855
        %3889 = vmatprep.subr.bf16.mxu0 0
        %3890 = vmatpush1.bf16.msra.mxu0 %v3864
        %3891 = vmatprep.subr.bf16.mxu0 0
        %3892 = vmatpush1.bf16.msra.mxu0 %v3863
        %3893 = vmatprep.subr.bf16.mxu0 0
        %3894 = vmatpush1.bf16.msra.mxu0 %v3862
        %3895 = vmatprep.subr.bf16.mxu0 0
        %3896 = vmatpush1.bf16.msra.mxu0 %v3861
        %3897 = vmatprep.subr.bf16.mxu0 0
        %3898 = vmatpush1.bf16.msra.mxu0 %v3860
        %3899 = vmatprep.subr.bf16.mxu0 0
        %3900 = vmatpush1.bf16.msra.mxu0 %v3859
        %3901 = vmatprep.subr.bf16.mxu0 0
        %3902 = vmatpush1.bf16.msra.mxu0 %v3858
        %3903 = vmatprep.subr.bf16.mxu0 0
        %3904 = vmatpush1.bf16.msra.mxu0 %v3857
        %3905 = vmatprep.subr.bf16.mxu0 0
        %3906 = vmatpush2.bf16.msra.mxu0 %v3872
        %3907 = vmatprep.subr.bf16.mxu0 0
        %3908 = vmatpush2.bf16.msra.mxu0 %v3871
        %3909 = vmatprep.subr.bf16.mxu0 0
        %3910 = vmatpush2.bf16.msra.mxu0 %v3870
        %3911 = vmatprep.subr.bf16.mxu0 0
        %3912 = vmatpush2.bf16.msra.mxu0 %v3869
        %3913 = vmatprep.subr.bf16.mxu0 0
        %3914 = vmatpush2.bf16.msra.mxu0 %v3868
        %3915 = vmatprep.subr.bf16.mxu0 0
        %3916 = vmatpush2.bf16.msra.mxu0 %v3867
        %3917 = vmatprep.subr.bf16.mxu0 0
        %3918 = vmatpush2.bf16.msra.mxu0 %v3866
        %3919 = vmatprep.subr.bf16.mxu0 0
        %3920 = vmatpush2.bf16.msra.mxu0 %v3865
        %3921 = vmatprep.mubr.bf16.mxu0 %v3790
        %3922 = vmatmul.mubr.bf16.gmra.mxu0 %v3789
        %v3923 = vpop.f32.mrf.mxu0
        %v3924 = vadd.f32 0.0, %v3923
        %v3925 = vpop.f32.mrf.mxu0
        %v3926 = vpop.f32.mrf.mxu0
        %v3927 = vpop.f32.mrf.mxu0
        %3928 = vdwg.mxu0
        %v3929 = vadd.f32 %v3756, %v3924
        %v3930 = vld [vmem:[%s4] sm:$0x1]
        %v3931 = vadd.f32 %v3929, %v3930
        %3932 = vst [vmem:[%s216] sm:$0x1] %v3931
        %s3933 = sand.u32 %s137, 1
        %s3934 = scalar_lea.sflag [#allocation3], %s3933
        %s3935 = sand.u32 %s137, 1
        %s3936 = scalar_lea.vmem [#allocation2], %s3935
        // Predicated region
        $region41: #{cnn_forward.3} parent=39 // pred_check
          %p3937 = pneg %p147
        $region42: #{cnn_forward.3} parent=39 // pred_check_branch
          %3939 = sbr.rel (%p3937) target = $region44
        $region43: #{cnn_forward.3} parent=39 // pred_region
          %s3941 = ssub.s32 16, 16
          %3942 = vsyncadd %s3934, %s3941
          %s3943 = smul.addr %s19, 16
          %s3944 = scalar_lea.hbm %s5, %s3943
          %s3946 = sshll.u32 %s3936, 4
          %s3947 = int_to_ptr.vmem [resolvable:$true] %s3946
          %3949 = dma.vmem_to_hbm [thread:$0]  %s3947, 16, %s3944, %s3934
        $region44: #{cnn_forward.3} parent=39 // pred_fallthru
          _
      $region40: #{cnn_forward.3} parent=5 // pred_fallthru
        _
      %p3950 = scmp.le.s32.totalorder 2, %s14
      // Predicated region
      $region45: #{cnn_forward.3} parent=5 // pred_check
        %p3951 = pneg %p3950
      $region46: #{cnn_forward.3} parent=5 // pred_check_branch
        %3953 = sbr.rel (%p3951) target = $region48
      $region47: #{cnn_forward.3} parent=5 // pred_region
        %s3954 = ssub.s32 %s14, 2
        // Predicated region
        $region49: #{cnn_forward.3} parent=47 // pred_check
          %p3955 = pneg %p153
        $region50: #{cnn_forward.3} parent=47 // pred_check_branch
          %3957 = sbr.rel (%p3955) target = $region52
        $region51: #{cnn_forward.3} parent=47 // pred_region
          %s3958 = sand.u32 %s138, 1
          %s3959 = scalar_lea.sflag [#allocation3], %s3958
          %s3960 = sand.u32 %s138, 1
          %s3961 = scalar_lea.vmem [#allocation2], %s3960
          %3962 = dma.done %s3959, 16
        $region52: #{cnn_forward.3} parent=47 // pred_fallthru
          _
      $region48: #{cnn_forward.3} parent=5 // pred_fallthru
        _
    $region6: #{cnn_forward.3} parent=1 // loop_footer
      %s18 = sadd.s32 1, %s14
    $region7: #{cnn_forward.3} parent=1 // loop_footer_branch
      %13 = sbr.rel target = $region3
    $region8: #{cnn_forward.3} parent=1 // loop_exit
      _
    %3963 = vsyncpa [#allocation3], 1
    %s3964 = scalar_lea.sflag [#allocation3], 1
    %3965 = vsyncpa %s3964, 1

</llo_original>
